<compile_context>
chip_gen: v6e
topology: v6e:2x2x1
jax: 0.10.0
libtpu: 0.0.40
codegen_flags: <defaults>
</compile_context>

<pallas_src>
import jax
import jax.numpy as jnp
from jax.experimental import pallas as pl
from jax.experimental.pallas import tpu as pltpu

# ----------------------------- config -------------------------------------
VOCAB = 128
HIDDEN = 32
N_LAYERS = 2
N_HEADS = 2
HEAD_DIM = HIDDEN // N_HEADS
INTERMEDIATE = 64
MAX_POS = 64
LN_EPS = 1e-12
NEG_BIG = -1e9  # f32 activations; revisit if activations ever go bf16


def _full_spec(shape):
    # whole-array block (tiny shapes -> single VMEM tile), grid=(1,)
    return pl.BlockSpec(shape, lambda i, _s=shape: (0,) * len(_s))


# --------------------- in-kernel helper functions ---------------------------
def _layer_norm(x, g, b):
    mu = jnp.mean(x, axis=-1, keepdims=True)
    var = jnp.mean(jnp.square(x - mu), axis=-1, keepdims=True)
    return (x - mu) * jax.lax.rsqrt(var + LN_EPS) * g + b


def _gelu(x):
    # TODO(synk): BERT uses exact erf-GELU; tanh approximation used here.
    return 0.5 * x * (
        1.0 + jnp.tanh(0.7978845608028654 * (x + 0.044715 * x * x * x))
    )


def _encoder(enc_refs):
    """Embedding gather + embeddings-LN + all transformer layers, VMEM-resident."""
    (ids_ref, mask_ref, word_emb_ref, pos_emb_ref, type_emb_ref,
     emb_ln_g_ref, emb_ln_b_ref,
     qkv_w_ref, qkv_b_ref, ao_w_ref, ao_b_ref,
     ln1_g_ref, ln1_b_ref,
     ff1_w_ref, ff1_b_ref, ff2_w_ref, ff2_b_ref,
     ln2_g_ref, ln2_b_ref) = enc_refs

    B = mask_ref.shape[0]
    S = mask_ref.shape[2]
    H, NH, D = HIDDEN, N_HEADS, HEAD_DIM
    M = B * S

    # ---- in-kernel token-embedding gather: one-hot matmul on the MXU ----
    ids = ids_ref[...]                                           # [M, 1] int32
    cols = jax.lax.broadcasted_iota(jnp.int32, (M, VOCAB), 1)
    onehot = (cols == ids).astype(jnp.float32)                   # [M, V]
    emb = jnp.dot(onehot, word_emb_ref[...],
                  preferred_element_type=jnp.float32)            # [M, H]

    # position + token-type(=0) embeddings, tiled over batch in-kernel
    pos_pt = pos_emb_ref[0:S, :] + type_emb_ref[0:1, :]          # [S, H]
    pos_bs = jnp.concatenate([pos_pt] * B, axis=0)               # [M, H]

    x = _layer_norm(emb + pos_bs, emb_ln_g_ref[...], emb_ln_b_ref[...])

    # attention bias: computed ONCE (hoisted out of the layer/head loops)
    bias = (1.0 - mask_ref[...]) * NEG_BIG                       # [B, 1, S]

    # NOTE: at L=2 a static Python loop is fine; use lax.fori_loop for depth.
    for l in range(N_LAYERS):
        # packed QKV projection; 1/sqrt(D) already folded into Q weight cols
        qkv = (jnp.dot(x, qkv_w_ref[l], preferred_element_type=jnp.float32)
               + qkv_b_ref[l])                                   # [M, 3H]

        head_ctx = []
        for h in range(NH):   # NH=2; batched over B via einsum below
            qh = qkv[:, h * D:(h + 1) * D].reshape(B, S, D)
            kh = qkv[:, H + h * D:H + (h + 1) * D].reshape(B, S, D)
            vh = qkv[:, 2 * H + h * D:2 * H + (h + 1) * D].reshape(B, S, D)
            # K consumed along its last dim (trans_b-style contraction)
            s = jnp.einsum("bqd,bkd->bqk", qh, kh,
                           preferred_element_type=jnp.float32) + bias
            s = s - jnp.max(s, axis=-1, keepdims=True)
            p = jnp.exp(s)
            p = p * pl.reciprocal(
                jnp.sum(p, axis=-1, keepdims=True), approx=True)
            ctx_h = jnp.einsum("bqk,bkd->bqd", p, vh,
                               preferred_element_type=jnp.float32)  # [B,S,D]
            head_ctx.append(ctx_h.reshape(M, D))
        ctx = jnp.concatenate(head_ctx, axis=-1)                 # [M, H]

        attn_out = (jnp.dot(ctx, ao_w_ref[l],
                            preferred_element_type=jnp.float32) + ao_b_ref[l])
        x = _layer_norm(x + attn_out, ln1_g_ref[l], ln1_b_ref[l])  # fused residual

        ff = _gelu(jnp.dot(x, ff1_w_ref[l],
                           preferred_element_type=jnp.float32) + ff1_b_ref[l])
        ff = (jnp.dot(ff, ff2_w_ref[l],
                      preferred_element_type=jnp.float32) + ff2_b_ref[l])
        x = _layer_norm(x + ff, ln2_g_ref[l], ln2_b_ref[l])        # fused residual
    return x                                                       # [M, H]


# --------------------------- fused kernels ----------------------------------
def _fwd_probs_kernel(*refs):
    *enc_refs, cls_w_ref, cls_b_ref, o_ref = refs
    x = _encoder(enc_refs)
    logits = (jnp.dot(x, cls_w_ref[...], preferred_element_type=jnp.float32)
              + cls_b_ref[...])
    logits = logits - jnp.max(logits, axis=-1, keepdims=True)
    e = jnp.exp(logits)
    inv = 1.0 / jnp.sum(e, axis=-1, keepdims=True)   # exact: 1 recip/row + V muls
    o_ref[...] = e * inv


def _fwd_loss_kernel(*refs):
    *enc_refs, cls_w_ref, cls_b_ref, labels_ref, o_ref = refs
    x = _encoder(enc_refs)
    logits = (jnp.dot(x, cls_w_ref[...], preferred_element_type=jnp.float32)
              + cls_b_ref[...])
    Mrows, V = logits.shape
    m = jnp.max(logits, axis=-1, keepdims=True)
    lse = jnp.log(jnp.sum(jnp.exp(logits - m), axis=-1, keepdims=True)) + m
    labels = labels_ref[...]                                   # [M, 1] int32
    cols = jax.lax.broadcasted_iota(jnp.int32, (Mrows, V), 1)
    onehot = cols == labels
    tgt = jnp.sum(jnp.where(onehot, logits, 0.0), axis=-1, keepdims=True)
    nll = lse - tgt                                            # [M, 1]
    valid = (labels != -1).astype(jnp.float32)
    num = jnp.sum(nll * valid, axis=0, keepdims=True)          # [1, 1]
    den = jnp.sum(valid, axis=0, keepdims=True)                # [1, 1]
    # matches torch CrossEntropyLoss(ignore_index=-1): mean over valid rows
    # (NaN if *all* labels are -1, same as PyTorch).
    o_ref[...] = num / den


# ---------------------------- parameters -----------------------------------
def init_params(key):
    def nrm(k, shape):
        return (0.02 * jax.random.normal(k, shape)).astype(jnp.float32)

    ks = iter(jax.random.split(key, 32))
    L, H, I, V = N_LAYERS, HIDDEN, INTERMEDIATE, VOCAB

    # One-time parameter transform: fold 1/sqrt(head_dim) into the Q output
    # columns of the packed QKV weight (and bias, which is zero here), so the
    # kernel never multiplies activations by the scale.
    inv_sqrt_d = 1.0 / float(HEAD_DIM) ** 0.5
    qkv_w = nrm(next(ks), (L, H, 3 * H)).at[:, :, :H].multiply(inv_sqrt_d)
    qkv_b = jnp.zeros((L, 1, 3 * H), jnp.float32)  # Q slice would be scaled too

    return {
        "word_emb": nrm(next(ks), (V, H)),
        "pos_emb": nrm(next(ks), (MAX_POS, H)),
        "type_emb": nrm(next(ks), (2, H)),
        "emb_ln_g": jnp.ones((1, H), jnp.float32),
        "emb_ln_b": jnp.zeros((1, H), jnp.float32),
        # per-layer weights stacked on a leading layer axis (indexed in-kernel)
        "qkv_w": qkv_w,
        "qkv_b": qkv_b,
        "ao_w": nrm(next(ks), (L, H, H)),
        "ao_b": jnp.zeros((L, 1, H), jnp.float32),
        "ln1_g": jnp.ones((L, 1, H), jnp.float32),
        "ln1_b": jnp.zeros((L, 1, H), jnp.float32),
        "ff1_w": nrm(next(ks), (L, H, I)),
        "ff1_b": jnp.zeros((L, 1, I), jnp.float32),
        "ff2_w": nrm(next(ks), (L, I, H)),
        "ff2_b": jnp.zeros((L, 1, H), jnp.float32),
        "ln2_g": jnp.ones((L, 1, H), jnp.float32),
        "ln2_b": jnp.zeros((L, 1, H), jnp.float32),
        "cls_w": nrm(next(ks), (H, V)),
        "cls_b": jnp.zeros((1, V), jnp.float32),
    }


# ------------------------------ forward ------------------------------------
def language_model_forward(params, input_ids, attention_mask, labels=None):
    B, S = input_ids.shape
    assert S <= MAX_POS

    # Only trivially small reshapes happen outside the kernel.
    ids_flat = input_ids.reshape(B * S, 1).astype(jnp.int32)
    mask3 = attention_mask.astype(jnp.float32).reshape(B, 1, S)  # [B, 1, S]

    inputs = [
        ids_flat, mask3,
        params["word_emb"], params["pos_emb"], params["type_emb"],
        params["emb_ln_g"], params["emb_ln_b"],
        params["qkv_w"], params["qkv_b"],
        params["ao_w"], params["ao_b"],
        params["ln1_g"], params["ln1_b"],
        params["ff1_w"], params["ff1_b"],
        params["ff2_w"], params["ff2_b"],
        params["ln2_g"], params["ln2_b"],
        params["cls_w"], params["cls_b"],
    ]
    in_specs = [_full_spec(tuple(a.shape)) for a in inputs]
    cparams = pltpu.CompilerParams(dimension_semantics=("arbitrary",))

    if labels is not None:
        labels_flat = labels.reshape(B * S, 1).astype(jnp.int32)
        loss = pl.pallas_call(
            _fwd_loss_kernel,
            out_shape=jax.ShapeDtypeStruct((1, 1), jnp.float32),
            grid=(1,),
            in_specs=in_specs + [_full_spec((B * S, 1))],
            out_specs=_full_spec((1, 1)),
            compiler_params=cparams,
        )(*inputs, labels_flat)
        return loss[0, 0]

    probs = pl.pallas_call(
        _fwd_probs_kernel,
        out_shape=jax.ShapeDtypeStruct((B * S, VOCAB), jnp.float32),
        grid=(1,),
        in_specs=in_specs,
        out_specs=_full_spec((B * S, VOCAB)),   # 128-lane dense output
        compiler_params=cparams,
    )(*inputs)
    return probs.reshape(B, S, VOCAB)


# ------------------------------- main --------------------------------------
if __name__ == "__main__":
    B, S = 2, 8
    key = jax.random.PRNGKey(0)
    k_ids, k_lab = jax.random.split(key)

    input_ids = jax.random.randint(k_ids, (B, S), 0, VOCAB, dtype=jnp.int32)
    attention_mask = jnp.ones((B, S), jnp.int32).at[1, 6:].set(0)
    labels = jax.random.randint(k_lab, (B, S), 0, VOCAB, dtype=jnp.int32)
    labels = labels.at[:, 0].set(-1)  # exercise ignore_index=-1

    params = init_params(jax.random.PRNGKey(42))

    probs = language_model_forward(params, input_ids, attention_mask)
    loss = language_model_forward(params, input_ids, attention_mask, labels)
    jax.block_until_ready((probs, loss))

    assert probs.shape == (B, S, VOCAB)
    assert bool(jnp.all(jnp.isfinite(probs))) and bool(jnp.isfinite(loss))
    # softmax rows sum to 1
    assert jnp.allclose(jnp.sum(probs, axis=-1), 1.0, atol=1e-4)
    print("KERNEL_OK")
</pallas_src>

<mosaic_0001>
module attributes {stable_mosaic.version = 11 : i64} {
  func.func @_fwd_probs_kernel(%arg0: i32, %arg1: memref<16x1xi32, #tpu.memory_space<vmem>>, %arg2: memref<2x1x8xf32, #tpu.memory_space<vmem>>, %arg3: memref<128x32xf32, #tpu.memory_space<vmem>>, %arg4: memref<64x32xf32, #tpu.memory_space<vmem>>, %arg5: memref<2x32xf32, #tpu.memory_space<vmem>>, %arg6: memref<1x32xf32, #tpu.memory_space<vmem>>, %arg7: memref<1x32xf32, #tpu.memory_space<vmem>>, %arg8: memref<2x32x96xf32, #tpu.memory_space<vmem>>, %arg9: memref<2x1x96xf32, #tpu.memory_space<vmem>>, %arg10: memref<2x32x32xf32, #tpu.memory_space<vmem>>, %arg11: memref<2x1x32xf32, #tpu.memory_space<vmem>>, %arg12: memref<2x1x32xf32, #tpu.memory_space<vmem>>, %arg13: memref<2x1x32xf32, #tpu.memory_space<vmem>>, %arg14: memref<2x32x64xf32, #tpu.memory_space<vmem>>, %arg15: memref<2x1x64xf32, #tpu.memory_space<vmem>>, %arg16: memref<2x64x32xf32, #tpu.memory_space<vmem>>, %arg17: memref<2x1x32xf32, #tpu.memory_space<vmem>>, %arg18: memref<2x1x32xf32, #tpu.memory_space<vmem>>, %arg19: memref<2x1x32xf32, #tpu.memory_space<vmem>>, %arg20: memref<32x128xf32, #tpu.memory_space<vmem>>, %arg21: memref<1x128xf32, #tpu.memory_space<vmem>>, %arg22: memref<16x128xf32, #tpu.memory_space<vmem>>) attributes {dimension_semantics = [#tpu.dimension_semantics<arbitrary>], iteration_bounds = array<i64: 1>, scalar_prefetch = 0 : i64, scratch_operands = 0 : i64, tpu.core_type = #tpu.core_type<tc>, window_params = [{pipeline_mode = #tpu.pipeline_mode<synchronous>, transform_indices = @transform_0, window_bounds = array<i64: 16, 1>}, {pipeline_mode = #tpu.pipeline_mode<synchronous>, transform_indices = @transform_1, window_bounds = array<i64: 2, 1, 8>}, {pipeline_mode = #tpu.pipeline_mode<synchronous>, transform_indices = @transform_2, window_bounds = array<i64: 128, 32>}, {pipeline_mode = #tpu.pipeline_mode<synchronous>, transform_indices = @transform_3, window_bounds = array<i64: 64, 32>}, {pipeline_mode = #tpu.pipeline_mode<synchronous>, transform_indices = @transform_4, window_bounds = array<i64: 2, 32>}, {pipeline_mode = #tpu.pipeline_mode<synchronous>, transform_indices = @transform_5, window_bounds = array<i64: 1, 32>}, {pipeline_mode = #tpu.pipeline_mode<synchronous>, transform_indices = @transform_6, window_bounds = array<i64: 1, 32>}, {pipeline_mode = #tpu.pipeline_mode<synchronous>, transform_indices = @transform_7, window_bounds = array<i64: 2, 32, 96>}, {pipeline_mode = #tpu.pipeline_mode<synchronous>, transform_indices = @transform_8, window_bounds = array<i64: 2, 1, 96>}, {pipeline_mode = #tpu.pipeline_mode<synchronous>, transform_indices = @transform_9, window_bounds = array<i64: 2, 32, 32>}, {pipeline_mode = #tpu.pipeline_mode<synchronous>, transform_indices = @transform_10, window_bounds = array<i64: 2, 1, 32>}, {pipeline_mode = #tpu.pipeline_mode<synchronous>, transform_indices = @transform_11, window_bounds = array<i64: 2, 1, 32>}, {pipeline_mode = #tpu.pipeline_mode<synchronous>, transform_indices = @transform_12, window_bounds = array<i64: 2, 1, 32>}, {pipeline_mode = #tpu.pipeline_mode<synchronous>, transform_indices = @transform_13, window_bounds = array<i64: 2, 32, 64>}, {pipeline_mode = #tpu.pipeline_mode<synchronous>, transform_indices = @transform_14, window_bounds = array<i64: 2, 1, 64>}, {pipeline_mode = #tpu.pipeline_mode<synchronous>, transform_indices = @transform_15, window_bounds = array<i64: 2, 64, 32>}, {pipeline_mode = #tpu.pipeline_mode<synchronous>, transform_indices = @transform_16, window_bounds = array<i64: 2, 1, 32>}, {pipeline_mode = #tpu.pipeline_mode<synchronous>, transform_indices = @transform_17, window_bounds = array<i64: 2, 1, 32>}, {pipeline_mode = #tpu.pipeline_mode<synchronous>, transform_indices = @transform_18, window_bounds = array<i64: 2, 1, 32>}, {pipeline_mode = #tpu.pipeline_mode<synchronous>, transform_indices = @transform_19, window_bounds = array<i64: 32, 128>}, {pipeline_mode = #tpu.pipeline_mode<synchronous>, transform_indices = @transform_20, window_bounds = array<i64: 1, 128>}, {pipeline_mode = #tpu.pipeline_mode<synchronous>, transform_indices = @transform_21, window_bounds = array<i64: 16, 128>}]} {
    %c0 = arith.constant 0 : index
    %c0_0 = arith.constant 0 : index
    %0 = vector.load %arg1[%c0, %c0_0] : memref<16x1xi32, #tpu.memory_space<vmem>>, vector<16x1xi32>
    %1 = tpu.iota {dimensions = array<i32: 1>} : vector<16x128xi32>
    %2 = vector.broadcast %0 : vector<16x1xi32> to vector<16x128xi32>
    %3 = arith.cmpi eq, %1, %2 : vector<16x128xi32>
    %4 = arith.extui %3 : vector<16x128xi1> to vector<16x128xi32>
    %5 = arith.sitofp %4 : vector<16x128xi32> to vector<16x128xf32>
    %c0_1 = arith.constant 0 : index
    %c0_2 = arith.constant 0 : index
    %6 = vector.load %arg3[%c0_1, %c0_2] : memref<128x32xf32, #tpu.memory_space<vmem>>, vector<128x32xf32>
    %cst = arith.constant dense<0.000000e+00> : vector<16x32xf32>
    %7 = tpu.matmul %5, %6, %cst {dimension_numbers = #tpu.dot_dimension_numbers<[1], [0], [0], [1], [0, 0, 1, 1], [], []>} : vector<16x128xf32>, vector<128x32xf32>, vector<16x32xf32> -> vector<16x32xf32>
    %c0_3 = arith.constant 0 : index
    %c0_4 = arith.constant 0 : index
    %8 = vector.load %arg4[%c0_3, %c0_4] : memref<64x32xf32, #tpu.memory_space<vmem>>, vector<8x32xf32>
    %c0_5 = arith.constant 0 : index
    %c0_6 = arith.constant 0 : index
    %9 = vector.load %arg5[%c0_5, %c0_6] : memref<2x32xf32, #tpu.memory_space<vmem>>, vector<1x32xf32>
    %10 = vector.broadcast %9 : vector<1x32xf32> to vector<8x32xf32>
    %11 = arith.addf %8, %10 : vector<8x32xf32>
    %12 = tpu.concatenate %11, %11 in 0 : vector<8x32xf32>, vector<8x32xf32> -> vector<16x32xf32>
    %13 = arith.addf %7, %12 : vector<16x32xf32>
    %c0_7 = arith.constant 0 : index
    %c0_8 = arith.constant 0 : index
    %14 = vector.load %arg6[%c0_7, %c0_8] : memref<1x32xf32, #tpu.memory_space<vmem>>, vector<1x32xf32>
    %c0_9 = arith.constant 0 : index
    %c0_10 = arith.constant 0 : index
    %15 = vector.load %arg7[%c0_9, %c0_10] : memref<1x32xf32, #tpu.memory_space<vmem>>, vector<1x32xf32>
    %cst_11 = arith.constant dense<0.000000e+00> : vector<16xf32>
    %16 = vector.multi_reduction <add>, %13, %cst_11 [1] : vector<16x32xf32> to vector<16xf32>
    %17 = vector.shape_cast %16 : vector<16xf32> to vector<16x1xf32>
    %cst_12 = arith.constant 3.200000e+01 : f32
    %18 = vector.broadcast %cst_12 : f32 to vector<16x1xf32>
    %19 = arith.divf %17, %18 : vector<16x1xf32>
    %20 = vector.broadcast %19 : vector<16x1xf32> to vector<16x32xf32>
    %21 = arith.subf %13, %20 : vector<16x32xf32>
    %22 = arith.mulf %21, %21 : vector<16x32xf32>
    %cst_13 = arith.constant dense<0.000000e+00> : vector<16xf32>
    %23 = vector.multi_reduction <add>, %22, %cst_13 [1] : vector<16x32xf32> to vector<16xf32>
    %24 = vector.shape_cast %23 : vector<16xf32> to vector<16x1xf32>
    %cst_14 = arith.constant 3.200000e+01 : f32
    %25 = vector.broadcast %cst_14 : f32 to vector<16x1xf32>
    %26 = arith.divf %24, %25 : vector<16x1xf32>
    %27 = vector.broadcast %19 : vector<16x1xf32> to vector<16x32xf32>
    %28 = arith.subf %13, %27 : vector<16x32xf32>
    %cst_15 = arith.constant 9.99999996E-13 : f32
    %29 = vector.broadcast %cst_15 : f32 to vector<16x1xf32>
    %30 = arith.addf %26, %29 : vector<16x1xf32>
    %31 = math.rsqrt %30 : vector<16x1xf32>
    %32 = vector.broadcast %31 : vector<16x1xf32> to vector<16x32xf32>
    %33 = arith.mulf %28, %32 : vector<16x32xf32>
    %34 = vector.broadcast %14 : vector<1x32xf32> to vector<16x32xf32>
    %35 = arith.mulf %33, %34 : vector<16x32xf32>
    %36 = vector.broadcast %15 : vector<1x32xf32> to vector<16x32xf32>
    %37 = arith.addf %35, %36 : vector<16x32xf32>
    %c0_16 = arith.constant 0 : index
    %c0_17 = arith.constant 0 : index
    %c0_18 = arith.constant 0 : index
    %38 = vector.load %arg2[%c0_16, %c0_17, %c0_18] : memref<2x1x8xf32, #tpu.memory_space<vmem>>, vector<2x1x8xf32>
    %cst_19 = arith.constant 1.000000e+00 : f32
    %39 = vector.broadcast %cst_19 : f32 to vector<2x1x8xf32>
    %40 = arith.subf %39, %38 : vector<2x1x8xf32>
    %cst_20 = arith.constant -1.000000e+09 : f32
    %41 = vector.broadcast %cst_20 : f32 to vector<2x1x8xf32>
    %42 = arith.mulf %40, %41 : vector<2x1x8xf32>
    %c0_21 = arith.constant 0 : index
    %c0_22 = arith.constant 0 : index
    %c0_23 = arith.constant 0 : index
    %43 = vector.load %arg8[%c0_21, %c0_22, %c0_23] : memref<2x32x96xf32, #tpu.memory_space<vmem>>, vector<1x32x96xf32>
    %44 = vector.shape_cast %43 : vector<1x32x96xf32> to vector<32x96xf32>
    %cst_24 = arith.constant dense<0.000000e+00> : vector<16x96xf32>
    %45 = tpu.matmul %37, %44, %cst_24 {dimension_numbers = #tpu.dot_dimension_numbers<[1], [0], [0], [1], [0, 0, 1, 1], [], []>} : vector<16x32xf32>, vector<32x96xf32>, vector<16x96xf32> -> vector<16x96xf32>
    %c0_25 = arith.constant 0 : index
    %c0_26 = arith.constant 0 : index
    %c0_27 = arith.constant 0 : index
    %46 = vector.load %arg9[%c0_25, %c0_26, %c0_27] : memref<2x1x96xf32, #tpu.memory_space<vmem>>, vector<1x1x96xf32>
    %47 = vector.shape_cast %46 : vector<1x1x96xf32> to vector<1x96xf32>
    %48 = vector.broadcast %47 : vector<1x96xf32> to vector<16x96xf32>
    %49 = arith.addf %45, %48 : vector<16x96xf32>
    %50 = vector.extract_strided_slice %49 {offsets = [0, 0], sizes = [16, 16], strides = [1, 1]} : vector<16x96xf32> to vector<16x16xf32>
    %51 = vector.shape_cast %50 : vector<16x16xf32> to vector<2x8x16xf32>
    %52 = vector.extract_strided_slice %49 {offsets = [0, 32], sizes = [16, 16], strides = [1, 1]} : vector<16x96xf32> to vector<16x16xf32>
    %53 = vector.shape_cast %52 : vector<16x16xf32> to vector<2x8x16xf32>
    %54 = vector.extract_strided_slice %49 {offsets = [0, 64], sizes = [16, 16], strides = [1, 1]} : vector<16x96xf32> to vector<16x16xf32>
    %55 = vector.shape_cast %54 : vector<16x16xf32> to vector<2x8x16xf32>
    "tpu.trace_start"() <{level = 10 : i32, message = "bqd,bkd->bqk"}> : () -> ()
    %cst_28 = arith.constant dense<0.000000e+00> : vector<2x8x8xf32>
    %56 = tpu.matmul %51, %53, %cst_28 {dimension_numbers = #tpu.dot_dimension_numbers<[2], [2], [1], [1], [0, 0, 0, 1, 1, 1], [0], [0]>} : vector<2x8x16xf32>, vector<2x8x16xf32>, vector<2x8x8xf32> -> vector<2x8x8xf32>
    "tpu.trace_stop"() : () -> ()
    %57 = vector.broadcast %42 : vector<2x1x8xf32> to vector<2x8x8xf32>
    %58 = arith.addf %56, %57 : vector<2x8x8xf32>
    %cst_29 = arith.constant dense<0xFF800000> : vector<2x8xf32>
    %59 = vector.multi_reduction <maximumf>, %58, %cst_29 [2] : vector<2x8x8xf32> to vector<2x8xf32>
    %60 = vector.shape_cast %59 : vector<2x8xf32> to vector<2x8x1xf32>
    %61 = vector.broadcast %60 : vector<2x8x1xf32> to vector<2x8x8xf32>
    %62 = arith.subf %58, %61 : vector<2x8x8xf32>
    %63 = math.exp %62 : vector<2x8x8xf32>
    %cst_30 = arith.constant dense<0.000000e+00> : vector<2x8xf32>
    %64 = vector.multi_reduction <add>, %63, %cst_30 [2] : vector<2x8x8xf32> to vector<2x8xf32>
    %65 = vector.shape_cast %64 : vector<2x8xf32> to vector<2x8x1xf32>
    %66 = tpu.reciprocal %65 {approx = true} : vector<2x8x1xf32> -> vector<2x8x1xf32>
    %67 = vector.broadcast %66 : vector<2x8x1xf32> to vector<2x8x8xf32>
    %68 = arith.mulf %63, %67 : vector<2x8x8xf32>
    "tpu.trace_start"() <{level = 10 : i32, message = "bqk,bkd->bqd"}> : () -> ()
    %cst_31 = arith.constant dense<0.000000e+00> : vector<2x8x16xf32>
    %69 = tpu.matmul %68, %55, %cst_31 {dimension_numbers = #tpu.dot_dimension_numbers<[2], [1], [1], [2], [0, 0, 0, 1, 1, 2], [0], [0]>} : vector<2x8x8xf32>, vector<2x8x16xf32>, vector<2x8x16xf32> -> vector<2x8x16xf32>
    "tpu.trace_stop"() : () -> ()
    %70 = vector.shape_cast %69 : vector<2x8x16xf32> to vector<16x16xf32>
    %71 = vector.extract_strided_slice %49 {offsets = [0, 16], sizes = [16, 16], strides = [1, 1]} : vector<16x96xf32> to vector<16x16xf32>
    %72 = vector.shape_cast %71 : vector<16x16xf32> to vector<2x8x16xf32>
    %73 = vector.extract_strided_slice %49 {offsets = [0, 48], sizes = [16, 16], strides = [1, 1]} : vector<16x96xf32> to vector<16x16xf32>
    %74 = vector.shape_cast %73 : vector<16x16xf32> to vector<2x8x16xf32>
    %75 = vector.extract_strided_slice %49 {offsets = [0, 80], sizes = [16, 16], strides = [1, 1]} : vector<16x96xf32> to vector<16x16xf32>
    %76 = vector.shape_cast %75 : vector<16x16xf32> to vector<2x8x16xf32>
    "tpu.trace_start"() <{level = 10 : i32, message = "bqd,bkd->bqk"}> : () -> ()
    %cst_32 = arith.constant dense<0.000000e+00> : vector<2x8x8xf32>
    %77 = tpu.matmul %72, %74, %cst_32 {dimension_numbers = #tpu.dot_dimension_numbers<[2], [2], [1], [1], [0, 0, 0, 1, 1, 1], [0], [0]>} : vector<2x8x16xf32>, vector<2x8x16xf32>, vector<2x8x8xf32> -> vector<2x8x8xf32>
    "tpu.trace_stop"() : () -> ()
    %78 = vector.broadcast %42 : vector<2x1x8xf32> to vector<2x8x8xf32>
    %79 = arith.addf %77, %78 : vector<2x8x8xf32>
    %cst_33 = arith.constant dense<0xFF800000> : vector<2x8xf32>
    %80 = vector.multi_reduction <maximumf>, %79, %cst_33 [2] : vector<2x8x8xf32> to vector<2x8xf32>
    %81 = vector.shape_cast %80 : vector<2x8xf32> to vector<2x8x1xf32>
    %82 = vector.broadcast %81 : vector<2x8x1xf32> to vector<2x8x8xf32>
    %83 = arith.subf %79, %82 : vector<2x8x8xf32>
    %84 = math.exp %83 : vector<2x8x8xf32>
    %cst_34 = arith.constant dense<0.000000e+00> : vector<2x8xf32>
    %85 = vector.multi_reduction <add>, %84, %cst_34 [2] : vector<2x8x8xf32> to vector<2x8xf32>
    %86 = vector.shape_cast %85 : vector<2x8xf32> to vector<2x8x1xf32>
    %87 = tpu.reciprocal %86 {approx = true} : vector<2x8x1xf32> -> vector<2x8x1xf32>
    %88 = vector.broadcast %87 : vector<2x8x1xf32> to vector<2x8x8xf32>
    %89 = arith.mulf %84, %88 : vector<2x8x8xf32>
    "tpu.trace_start"() <{level = 10 : i32, message = "bqk,bkd->bqd"}> : () -> ()
    %cst_35 = arith.constant dense<0.000000e+00> : vector<2x8x16xf32>
    %90 = tpu.matmul %89, %76, %cst_35 {dimension_numbers = #tpu.dot_dimension_numbers<[2], [1], [1], [2], [0, 0, 0, 1, 1, 2], [0], [0]>} : vector<2x8x8xf32>, vector<2x8x16xf32>, vector<2x8x16xf32> -> vector<2x8x16xf32>
    "tpu.trace_stop"() : () -> ()
    %91 = vector.shape_cast %90 : vector<2x8x16xf32> to vector<16x16xf32>
    %92 = tpu.concatenate %70, %91 in 1 : vector<16x16xf32>, vector<16x16xf32> -> vector<16x32xf32>
    %c0_36 = arith.constant 0 : index
    %c0_37 = arith.constant 0 : index
    %c0_38 = arith.constant 0 : index
    %93 = vector.load %arg10[%c0_36, %c0_37, %c0_38] : memref<2x32x32xf32, #tpu.memory_space<vmem>>, vector<1x32x32xf32>
    %94 = vector.shape_cast %93 : vector<1x32x32xf32> to vector<32x32xf32>
    %cst_39 = arith.constant dense<0.000000e+00> : vector<16x32xf32>
    %95 = tpu.matmul %92, %94, %cst_39 {dimension_numbers = #tpu.dot_dimension_numbers<[1], [0], [0], [1], [0, 0, 1, 1], [], []>} : vector<16x32xf32>, vector<32x32xf32>, vector<16x32xf32> -> vector<16x32xf32>
    %c0_40 = arith.constant 0 : index
    %c0_41 = arith.constant 0 : index
    %c0_42 = arith.constant 0 : index
    %96 = vector.load %arg11[%c0_40, %c0_41, %c0_42] : memref<2x1x32xf32, #tpu.memory_space<vmem>>, vector<1x1x32xf32>
    %97 = vector.shape_cast %96 : vector<1x1x32xf32> to vector<1x32xf32>
    %98 = vector.broadcast %97 : vector<1x32xf32> to vector<16x32xf32>
    %99 = arith.addf %95, %98 : vector<16x32xf32>
    %100 = arith.addf %37, %99 : vector<16x32xf32>
    %c0_43 = arith.constant 0 : index
    %c0_44 = arith.constant 0 : index
    %c0_45 = arith.constant 0 : index
    %101 = vector.load %arg12[%c0_43, %c0_44, %c0_45] : memref<2x1x32xf32, #tpu.memory_space<vmem>>, vector<1x1x32xf32>
    %102 = vector.shape_cast %101 : vector<1x1x32xf32> to vector<1x32xf32>
    %c0_46 = arith.constant 0 : index
    %c0_47 = arith.constant 0 : index
    %c0_48 = arith.constant 0 : index
    %103 = vector.load %arg13[%c0_46, %c0_47, %c0_48] : memref<2x1x32xf32, #tpu.memory_space<vmem>>, vector<1x1x32xf32>
    %104 = vector.shape_cast %103 : vector<1x1x32xf32> to vector<1x32xf32>
    %cst_49 = arith.constant dense<0.000000e+00> : vector<16xf32>
    %105 = vector.multi_reduction <add>, %100, %cst_49 [1] : vector<16x32xf32> to vector<16xf32>
    %106 = vector.shape_cast %105 : vector<16xf32> to vector<16x1xf32>
    %cst_50 = arith.constant 3.200000e+01 : f32
    %107 = vector.broadcast %cst_50 : f32 to vector<16x1xf32>
    %108 = arith.divf %106, %107 : vector<16x1xf32>
    %109 = vector.broadcast %108 : vector<16x1xf32> to vector<16x32xf32>
    %110 = arith.subf %100, %109 : vector<16x32xf32>
    %111 = arith.mulf %110, %110 : vector<16x32xf32>
    %cst_51 = arith.constant dense<0.000000e+00> : vector<16xf32>
    %112 = vector.multi_reduction <add>, %111, %cst_51 [1] : vector<16x32xf32> to vector<16xf32>
    %113 = vector.shape_cast %112 : vector<16xf32> to vector<16x1xf32>
    %cst_52 = arith.constant 3.200000e+01 : f32
    %114 = vector.broadcast %cst_52 : f32 to vector<16x1xf32>
    %115 = arith.divf %113, %114 : vector<16x1xf32>
    %116 = vector.broadcast %108 : vector<16x1xf32> to vector<16x32xf32>
    %117 = arith.subf %100, %116 : vector<16x32xf32>
    %cst_53 = arith.constant 9.99999996E-13 : f32
    %118 = vector.broadcast %cst_53 : f32 to vector<16x1xf32>
    %119 = arith.addf %115, %118 : vector<16x1xf32>
    %120 = math.rsqrt %119 : vector<16x1xf32>
    %121 = vector.broadcast %120 : vector<16x1xf32> to vector<16x32xf32>
    %122 = arith.mulf %117, %121 : vector<16x32xf32>
    %123 = vector.broadcast %102 : vector<1x32xf32> to vector<16x32xf32>
    %124 = arith.mulf %122, %123 : vector<16x32xf32>
    %125 = vector.broadcast %104 : vector<1x32xf32> to vector<16x32xf32>
    %126 = arith.addf %124, %125 : vector<16x32xf32>
    %c0_54 = arith.constant 0 : index
    %c0_55 = arith.constant 0 : index
    %c0_56 = arith.constant 0 : index
    %127 = vector.load %arg14[%c0_54, %c0_55, %c0_56] : memref<2x32x64xf32, #tpu.memory_space<vmem>>, vector<1x32x64xf32>
    %128 = vector.shape_cast %127 : vector<1x32x64xf32> to vector<32x64xf32>
    %cst_57 = arith.constant dense<0.000000e+00> : vector<16x64xf32>
    %129 = tpu.matmul %126, %128, %cst_57 {dimension_numbers = #tpu.dot_dimension_numbers<[1], [0], [0], [1], [0, 0, 1, 1], [], []>} : vector<16x32xf32>, vector<32x64xf32>, vector<16x64xf32> -> vector<16x64xf32>
    %c0_58 = arith.constant 0 : index
    %c0_59 = arith.constant 0 : index
    %c0_60 = arith.constant 0 : index
    %130 = vector.load %arg15[%c0_58, %c0_59, %c0_60] : memref<2x1x64xf32, #tpu.memory_space<vmem>>, vector<1x1x64xf32>
    %131 = vector.shape_cast %130 : vector<1x1x64xf32> to vector<1x64xf32>
    %132 = vector.broadcast %131 : vector<1x64xf32> to vector<16x64xf32>
    %133 = arith.addf %129, %132 : vector<16x64xf32>
    %cst_61 = arith.constant 5.000000e-01 : f32
    %134 = vector.broadcast %cst_61 : f32 to vector<16x64xf32>
    %135 = arith.mulf %134, %133 : vector<16x64xf32>
    %cst_62 = arith.constant 4.471500e-02 : f32
    %136 = vector.broadcast %cst_62 : f32 to vector<16x64xf32>
    %137 = arith.mulf %136, %133 : vector<16x64xf32>
    %138 = arith.mulf %137, %133 : vector<16x64xf32>
    %139 = arith.mulf %138, %133 : vector<16x64xf32>
    %140 = arith.addf %133, %139 : vector<16x64xf32>
    %cst_63 = arith.constant 0.797884583 : f32
    %141 = vector.broadcast %cst_63 : f32 to vector<16x64xf32>
    %142 = arith.mulf %141, %140 : vector<16x64xf32>
    %143 = math.tanh %142 : vector<16x64xf32>
    %cst_64 = arith.constant 1.000000e+00 : f32
    %144 = vector.broadcast %cst_64 : f32 to vector<16x64xf32>
    %145 = arith.addf %144, %143 : vector<16x64xf32>
    %146 = arith.mulf %135, %145 : vector<16x64xf32>
    %c0_65 = arith.constant 0 : index
    %c0_66 = arith.constant 0 : index
    %c0_67 = arith.constant 0 : index
    %147 = vector.load %arg16[%c0_65, %c0_66, %c0_67] : memref<2x64x32xf32, #tpu.memory_space<vmem>>, vector<1x64x32xf32>
    %148 = vector.shape_cast %147 : vector<1x64x32xf32> to vector<64x32xf32>
    %cst_68 = arith.constant dense<0.000000e+00> : vector<16x32xf32>
    %149 = tpu.matmul %146, %148, %cst_68 {dimension_numbers = #tpu.dot_dimension_numbers<[1], [0], [0], [1], [0, 0, 1, 1], [], []>} : vector<16x64xf32>, vector<64x32xf32>, vector<16x32xf32> -> vector<16x32xf32>
    %c0_69 = arith.constant 0 : index
    %c0_70 = arith.constant 0 : index
    %c0_71 = arith.constant 0 : index
    %150 = vector.load %arg17[%c0_69, %c0_70, %c0_71] : memref<2x1x32xf32, #tpu.memory_space<vmem>>, vector<1x1x32xf32>
    %151 = vector.shape_cast %150 : vector<1x1x32xf32> to vector<1x32xf32>
    %152 = vector.broadcast %151 : vector<1x32xf32> to vector<16x32xf32>
    %153 = arith.addf %149, %152 : vector<16x32xf32>
    %154 = arith.addf %126, %153 : vector<16x32xf32>
    %c0_72 = arith.constant 0 : index
    %c0_73 = arith.constant 0 : index
    %c0_74 = arith.constant 0 : index
    %155 = vector.load %arg18[%c0_72, %c0_73, %c0_74] : memref<2x1x32xf32, #tpu.memory_space<vmem>>, vector<1x1x32xf32>
    %156 = vector.shape_cast %155 : vector<1x1x32xf32> to vector<1x32xf32>
    %c0_75 = arith.constant 0 : index
    %c0_76 = arith.constant 0 : index
    %c0_77 = arith.constant 0 : index
    %157 = vector.load %arg19[%c0_75, %c0_76, %c0_77] : memref<2x1x32xf32, #tpu.memory_space<vmem>>, vector<1x1x32xf32>
    %158 = vector.shape_cast %157 : vector<1x1x32xf32> to vector<1x32xf32>
    %cst_78 = arith.constant dense<0.000000e+00> : vector<16xf32>
    %159 = vector.multi_reduction <add>, %154, %cst_78 [1] : vector<16x32xf32> to vector<16xf32>
    %160 = vector.shape_cast %159 : vector<16xf32> to vector<16x1xf32>
    %cst_79 = arith.constant 3.200000e+01 : f32
    %161 = vector.broadcast %cst_79 : f32 to vector<16x1xf32>
    %162 = arith.divf %160, %161 : vector<16x1xf32>
    %163 = vector.broadcast %162 : vector<16x1xf32> to vector<16x32xf32>
    %164 = arith.subf %154, %163 : vector<16x32xf32>
    %165 = arith.mulf %164, %164 : vector<16x32xf32>
    %cst_80 = arith.constant dense<0.000000e+00> : vector<16xf32>
    %166 = vector.multi_reduction <add>, %165, %cst_80 [1] : vector<16x32xf32> to vector<16xf32>
    %167 = vector.shape_cast %166 : vector<16xf32> to vector<16x1xf32>
    %cst_81 = arith.constant 3.200000e+01 : f32
    %168 = vector.broadcast %cst_81 : f32 to vector<16x1xf32>
    %169 = arith.divf %167, %168 : vector<16x1xf32>
    %170 = vector.broadcast %162 : vector<16x1xf32> to vector<16x32xf32>
    %171 = arith.subf %154, %170 : vector<16x32xf32>
    %cst_82 = arith.constant 9.99999996E-13 : f32
    %172 = vector.broadcast %cst_82 : f32 to vector<16x1xf32>
    %173 = arith.addf %169, %172 : vector<16x1xf32>
    %174 = math.rsqrt %173 : vector<16x1xf32>
    %175 = vector.broadcast %174 : vector<16x1xf32> to vector<16x32xf32>
    %176 = arith.mulf %171, %175 : vector<16x32xf32>
    %177 = vector.broadcast %156 : vector<1x32xf32> to vector<16x32xf32>
    %178 = arith.mulf %176, %177 : vector<16x32xf32>
    %179 = vector.broadcast %158 : vector<1x32xf32> to vector<16x32xf32>
    %180 = arith.addf %178, %179 : vector<16x32xf32>
    %c1 = arith.constant 1 : index
    %c0_83 = arith.constant 0 : index
    %c0_84 = arith.constant 0 : index
    %181 = vector.load %arg8[%c1, %c0_83, %c0_84] : memref<2x32x96xf32, #tpu.memory_space<vmem>>, vector<1x32x96xf32>
    %182 = vector.shape_cast %181 : vector<1x32x96xf32> to vector<32x96xf32>
    %cst_85 = arith.constant dense<0.000000e+00> : vector<16x96xf32>
    %183 = tpu.matmul %180, %182, %cst_85 {dimension_numbers = #tpu.dot_dimension_numbers<[1], [0], [0], [1], [0, 0, 1, 1], [], []>} : vector<16x32xf32>, vector<32x96xf32>, vector<16x96xf32> -> vector<16x96xf32>
    %c1_86 = arith.constant 1 : index
    %c0_87 = arith.constant 0 : index
    %c0_88 = arith.constant 0 : index
    %184 = vector.load %arg9[%c1_86, %c0_87, %c0_88] : memref<2x1x96xf32, #tpu.memory_space<vmem>>, vector<1x1x96xf32>
    %185 = vector.shape_cast %184 : vector<1x1x96xf32> to vector<1x96xf32>
    %186 = vector.broadcast %185 : vector<1x96xf32> to vector<16x96xf32>
    %187 = arith.addf %183, %186 : vector<16x96xf32>
    %188 = vector.extract_strided_slice %187 {offsets = [0, 0], sizes = [16, 16], strides = [1, 1]} : vector<16x96xf32> to vector<16x16xf32>
    %189 = vector.shape_cast %188 : vector<16x16xf32> to vector<2x8x16xf32>
    %190 = vector.extract_strided_slice %187 {offsets = [0, 32], sizes = [16, 16], strides = [1, 1]} : vector<16x96xf32> to vector<16x16xf32>
    %191 = vector.shape_cast %190 : vector<16x16xf32> to vector<2x8x16xf32>
    %192 = vector.extract_strided_slice %187 {offsets = [0, 64], sizes = [16, 16], strides = [1, 1]} : vector<16x96xf32> to vector<16x16xf32>
    %193 = vector.shape_cast %192 : vector<16x16xf32> to vector<2x8x16xf32>
    "tpu.trace_start"() <{level = 10 : i32, message = "bqd,bkd->bqk"}> : () -> ()
    %cst_89 = arith.constant dense<0.000000e+00> : vector<2x8x8xf32>
    %194 = tpu.matmul %189, %191, %cst_89 {dimension_numbers = #tpu.dot_dimension_numbers<[2], [2], [1], [1], [0, 0, 0, 1, 1, 1], [0], [0]>} : vector<2x8x16xf32>, vector<2x8x16xf32>, vector<2x8x8xf32> -> vector<2x8x8xf32>
    "tpu.trace_stop"() : () -> ()
    %195 = vector.broadcast %42 : vector<2x1x8xf32> to vector<2x8x8xf32>
    %196 = arith.addf %194, %195 : vector<2x8x8xf32>
    %cst_90 = arith.constant dense<0xFF800000> : vector<2x8xf32>
    %197 = vector.multi_reduction <maximumf>, %196, %cst_90 [2] : vector<2x8x8xf32> to vector<2x8xf32>
    %198 = vector.shape_cast %197 : vector<2x8xf32> to vector<2x8x1xf32>
    %199 = vector.broadcast %198 : vector<2x8x1xf32> to vector<2x8x8xf32>
    %200 = arith.subf %196, %199 : vector<2x8x8xf32>
    %201 = math.exp %200 : vector<2x8x8xf32>
    %cst_91 = arith.constant dense<0.000000e+00> : vector<2x8xf32>
    %202 = vector.multi_reduction <add>, %201, %cst_91 [2] : vector<2x8x8xf32> to vector<2x8xf32>
    %203 = vector.shape_cast %202 : vector<2x8xf32> to vector<2x8x1xf32>
    %204 = tpu.reciprocal %203 {approx = true} : vector<2x8x1xf32> -> vector<2x8x1xf32>
    %205 = vector.broadcast %204 : vector<2x8x1xf32> to vector<2x8x8xf32>
    %206 = arith.mulf %201, %205 : vector<2x8x8xf32>
    "tpu.trace_start"() <{level = 10 : i32, message = "bqk,bkd->bqd"}> : () -> ()
    %cst_92 = arith.constant dense<0.000000e+00> : vector<2x8x16xf32>
    %207 = tpu.matmul %206, %193, %cst_92 {dimension_numbers = #tpu.dot_dimension_numbers<[2], [1], [1], [2], [0, 0, 0, 1, 1, 2], [0], [0]>} : vector<2x8x8xf32>, vector<2x8x16xf32>, vector<2x8x16xf32> -> vector<2x8x16xf32>
    "tpu.trace_stop"() : () -> ()
    %208 = vector.shape_cast %207 : vector<2x8x16xf32> to vector<16x16xf32>
    %209 = vector.extract_strided_slice %187 {offsets = [0, 16], sizes = [16, 16], strides = [1, 1]} : vector<16x96xf32> to vector<16x16xf32>
    %210 = vector.shape_cast %209 : vector<16x16xf32> to vector<2x8x16xf32>
    %211 = vector.extract_strided_slice %187 {offsets = [0, 48], sizes = [16, 16], strides = [1, 1]} : vector<16x96xf32> to vector<16x16xf32>
    %212 = vector.shape_cast %211 : vector<16x16xf32> to vector<2x8x16xf32>
    %213 = vector.extract_strided_slice %187 {offsets = [0, 80], sizes = [16, 16], strides = [1, 1]} : vector<16x96xf32> to vector<16x16xf32>
    %214 = vector.shape_cast %213 : vector<16x16xf32> to vector<2x8x16xf32>
    "tpu.trace_start"() <{level = 10 : i32, message = "bqd,bkd->bqk"}> : () -> ()
    %cst_93 = arith.constant dense<0.000000e+00> : vector<2x8x8xf32>
    %215 = tpu.matmul %210, %212, %cst_93 {dimension_numbers = #tpu.dot_dimension_numbers<[2], [2], [1], [1], [0, 0, 0, 1, 1, 1], [0], [0]>} : vector<2x8x16xf32>, vector<2x8x16xf32>, vector<2x8x8xf32> -> vector<2x8x8xf32>
    "tpu.trace_stop"() : () -> ()
    %216 = vector.broadcast %42 : vector<2x1x8xf32> to vector<2x8x8xf32>
    %217 = arith.addf %215, %216 : vector<2x8x8xf32>
    %cst_94 = arith.constant dense<0xFF800000> : vector<2x8xf32>
    %218 = vector.multi_reduction <maximumf>, %217, %cst_94 [2] : vector<2x8x8xf32> to vector<2x8xf32>
    %219 = vector.shape_cast %218 : vector<2x8xf32> to vector<2x8x1xf32>
    %220 = vector.broadcast %219 : vector<2x8x1xf32> to vector<2x8x8xf32>
    %221 = arith.subf %217, %220 : vector<2x8x8xf32>
    %222 = math.exp %221 : vector<2x8x8xf32>
    %cst_95 = arith.constant dense<0.000000e+00> : vector<2x8xf32>
    %223 = vector.multi_reduction <add>, %222, %cst_95 [2] : vector<2x8x8xf32> to vector<2x8xf32>
    %224 = vector.shape_cast %223 : vector<2x8xf32> to vector<2x8x1xf32>
    %225 = tpu.reciprocal %224 {approx = true} : vector<2x8x1xf32> -> vector<2x8x1xf32>
    %226 = vector.broadcast %225 : vector<2x8x1xf32> to vector<2x8x8xf32>
    %227 = arith.mulf %222, %226 : vector<2x8x8xf32>
    "tpu.trace_start"() <{level = 10 : i32, message = "bqk,bkd->bqd"}> : () -> ()
    %cst_96 = arith.constant dense<0.000000e+00> : vector<2x8x16xf32>
    %228 = tpu.matmul %227, %214, %cst_96 {dimension_numbers = #tpu.dot_dimension_numbers<[2], [1], [1], [2], [0, 0, 0, 1, 1, 2], [0], [0]>} : vector<2x8x8xf32>, vector<2x8x16xf32>, vector<2x8x16xf32> -> vector<2x8x16xf32>
    "tpu.trace_stop"() : () -> ()
    %229 = vector.shape_cast %228 : vector<2x8x16xf32> to vector<16x16xf32>
    %230 = tpu.concatenate %208, %229 in 1 : vector<16x16xf32>, vector<16x16xf32> -> vector<16x32xf32>
    %c1_97 = arith.constant 1 : index
    %c0_98 = arith.constant 0 : index
    %c0_99 = arith.constant 0 : index
    %231 = vector.load %arg10[%c1_97, %c0_98, %c0_99] : memref<2x32x32xf32, #tpu.memory_space<vmem>>, vector<1x32x32xf32>
    %232 = vector.shape_cast %231 : vector<1x32x32xf32> to vector<32x32xf32>
    %cst_100 = arith.constant dense<0.000000e+00> : vector<16x32xf32>
    %233 = tpu.matmul %230, %232, %cst_100 {dimension_numbers = #tpu.dot_dimension_numbers<[1], [0], [0], [1], [0, 0, 1, 1], [], []>} : vector<16x32xf32>, vector<32x32xf32>, vector<16x32xf32> -> vector<16x32xf32>
    %c1_101 = arith.constant 1 : index
    %c0_102 = arith.constant 0 : index
    %c0_103 = arith.constant 0 : index
    %234 = vector.load %arg11[%c1_101, %c0_102, %c0_103] : memref<2x1x32xf32, #tpu.memory_space<vmem>>, vector<1x1x32xf32>
    %235 = vector.shape_cast %234 : vector<1x1x32xf32> to vector<1x32xf32>
    %236 = vector.broadcast %235 : vector<1x32xf32> to vector<16x32xf32>
    %237 = arith.addf %233, %236 : vector<16x32xf32>
    %238 = arith.addf %180, %237 : vector<16x32xf32>
    %c1_104 = arith.constant 1 : index
    %c0_105 = arith.constant 0 : index
    %c0_106 = arith.constant 0 : index
    %239 = vector.load %arg12[%c1_104, %c0_105, %c0_106] : memref<2x1x32xf32, #tpu.memory_space<vmem>>, vector<1x1x32xf32>
    %240 = vector.shape_cast %239 : vector<1x1x32xf32> to vector<1x32xf32>
    %c1_107 = arith.constant 1 : index
    %c0_108 = arith.constant 0 : index
    %c0_109 = arith.constant 0 : index
    %241 = vector.load %arg13[%c1_107, %c0_108, %c0_109] : memref<2x1x32xf32, #tpu.memory_space<vmem>>, vector<1x1x32xf32>
    %242 = vector.shape_cast %241 : vector<1x1x32xf32> to vector<1x32xf32>
    %cst_110 = arith.constant dense<0.000000e+00> : vector<16xf32>
    %243 = vector.multi_reduction <add>, %238, %cst_110 [1] : vector<16x32xf32> to vector<16xf32>
    %244 = vector.shape_cast %243 : vector<16xf32> to vector<16x1xf32>
    %cst_111 = arith.constant 3.200000e+01 : f32
    %245 = vector.broadcast %cst_111 : f32 to vector<16x1xf32>
    %246 = arith.divf %244, %245 : vector<16x1xf32>
    %247 = vector.broadcast %246 : vector<16x1xf32> to vector<16x32xf32>
    %248 = arith.subf %238, %247 : vector<16x32xf32>
    %249 = arith.mulf %248, %248 : vector<16x32xf32>
    %cst_112 = arith.constant dense<0.000000e+00> : vector<16xf32>
    %250 = vector.multi_reduction <add>, %249, %cst_112 [1] : vector<16x32xf32> to vector<16xf32>
    %251 = vector.shape_cast %250 : vector<16xf32> to vector<16x1xf32>
    %cst_113 = arith.constant 3.200000e+01 : f32
    %252 = vector.broadcast %cst_113 : f32 to vector<16x1xf32>
    %253 = arith.divf %251, %252 : vector<16x1xf32>
    %254 = vector.broadcast %246 : vector<16x1xf32> to vector<16x32xf32>
    %255 = arith.subf %238, %254 : vector<16x32xf32>
    %cst_114 = arith.constant 9.99999996E-13 : f32
    %256 = vector.broadcast %cst_114 : f32 to vector<16x1xf32>
    %257 = arith.addf %253, %256 : vector<16x1xf32>
    %258 = math.rsqrt %257 : vector<16x1xf32>
    %259 = vector.broadcast %258 : vector<16x1xf32> to vector<16x32xf32>
    %260 = arith.mulf %255, %259 : vector<16x32xf32>
    %261 = vector.broadcast %240 : vector<1x32xf32> to vector<16x32xf32>
    %262 = arith.mulf %260, %261 : vector<16x32xf32>
    %263 = vector.broadcast %242 : vector<1x32xf32> to vector<16x32xf32>
    %264 = arith.addf %262, %263 : vector<16x32xf32>
    %c1_115 = arith.constant 1 : index
    %c0_116 = arith.constant 0 : index
    %c0_117 = arith.constant 0 : index
    %265 = vector.load %arg14[%c1_115, %c0_116, %c0_117] : memref<2x32x64xf32, #tpu.memory_space<vmem>>, vector<1x32x64xf32>
    %266 = vector.shape_cast %265 : vector<1x32x64xf32> to vector<32x64xf32>
    %cst_118 = arith.constant dense<0.000000e+00> : vector<16x64xf32>
    %267 = tpu.matmul %264, %266, %cst_118 {dimension_numbers = #tpu.dot_dimension_numbers<[1], [0], [0], [1], [0, 0, 1, 1], [], []>} : vector<16x32xf32>, vector<32x64xf32>, vector<16x64xf32> -> vector<16x64xf32>
    %c1_119 = arith.constant 1 : index
    %c0_120 = arith.constant 0 : index
    %c0_121 = arith.constant 0 : index
    %268 = vector.load %arg15[%c1_119, %c0_120, %c0_121] : memref<2x1x64xf32, #tpu.memory_space<vmem>>, vector<1x1x64xf32>
    %269 = vector.shape_cast %268 : vector<1x1x64xf32> to vector<1x64xf32>
    %270 = vector.broadcast %269 : vector<1x64xf32> to vector<16x64xf32>
    %271 = arith.addf %267, %270 : vector<16x64xf32>
    %cst_122 = arith.constant 5.000000e-01 : f32
    %272 = vector.broadcast %cst_122 : f32 to vector<16x64xf32>
    %273 = arith.mulf %272, %271 : vector<16x64xf32>
    %cst_123 = arith.constant 4.471500e-02 : f32
    %274 = vector.broadcast %cst_123 : f32 to vector<16x64xf32>
    %275 = arith.mulf %274, %271 : vector<16x64xf32>
    %276 = arith.mulf %275, %271 : vector<16x64xf32>
    %277 = arith.mulf %276, %271 : vector<16x64xf32>
    %278 = arith.addf %271, %277 : vector<16x64xf32>
    %cst_124 = arith.constant 0.797884583 : f32
    %279 = vector.broadcast %cst_124 : f32 to vector<16x64xf32>
    %280 = arith.mulf %279, %278 : vector<16x64xf32>
    %281 = math.tanh %280 : vector<16x64xf32>
    %cst_125 = arith.constant 1.000000e+00 : f32
    %282 = vector.broadcast %cst_125 : f32 to vector<16x64xf32>
    %283 = arith.addf %282, %281 : vector<16x64xf32>
    %284 = arith.mulf %273, %283 : vector<16x64xf32>
    %c1_126 = arith.constant 1 : index
    %c0_127 = arith.constant 0 : index
    %c0_128 = arith.constant 0 : index
    %285 = vector.load %arg16[%c1_126, %c0_127, %c0_128] : memref<2x64x32xf32, #tpu.memory_space<vmem>>, vector<1x64x32xf32>
    %286 = vector.shape_cast %285 : vector<1x64x32xf32> to vector<64x32xf32>
    %cst_129 = arith.constant dense<0.000000e+00> : vector<16x32xf32>
    %287 = tpu.matmul %284, %286, %cst_129 {dimension_numbers = #tpu.dot_dimension_numbers<[1], [0], [0], [1], [0, 0, 1, 1], [], []>} : vector<16x64xf32>, vector<64x32xf32>, vector<16x32xf32> -> vector<16x32xf32>
    %c1_130 = arith.constant 1 : index
    %c0_131 = arith.constant 0 : index
    %c0_132 = arith.constant 0 : index
    %288 = vector.load %arg17[%c1_130, %c0_131, %c0_132] : memref<2x1x32xf32, #tpu.memory_space<vmem>>, vector<1x1x32xf32>
    %289 = vector.shape_cast %288 : vector<1x1x32xf32> to vector<1x32xf32>
    %290 = vector.broadcast %289 : vector<1x32xf32> to vector<16x32xf32>
    %291 = arith.addf %287, %290 : vector<16x32xf32>
    %292 = arith.addf %264, %291 : vector<16x32xf32>
    %c1_133 = arith.constant 1 : index
    %c0_134 = arith.constant 0 : index
    %c0_135 = arith.constant 0 : index
    %293 = vector.load %arg18[%c1_133, %c0_134, %c0_135] : memref<2x1x32xf32, #tpu.memory_space<vmem>>, vector<1x1x32xf32>
    %294 = vector.shape_cast %293 : vector<1x1x32xf32> to vector<1x32xf32>
    %c1_136 = arith.constant 1 : index
    %c0_137 = arith.constant 0 : index
    %c0_138 = arith.constant 0 : index
    %295 = vector.load %arg19[%c1_136, %c0_137, %c0_138] : memref<2x1x32xf32, #tpu.memory_space<vmem>>, vector<1x1x32xf32>
    %296 = vector.shape_cast %295 : vector<1x1x32xf32> to vector<1x32xf32>
    %cst_139 = arith.constant dense<0.000000e+00> : vector<16xf32>
    %297 = vector.multi_reduction <add>, %292, %cst_139 [1] : vector<16x32xf32> to vector<16xf32>
    %298 = vector.shape_cast %297 : vector<16xf32> to vector<16x1xf32>
    %cst_140 = arith.constant 3.200000e+01 : f32
    %299 = vector.broadcast %cst_140 : f32 to vector<16x1xf32>
    %300 = arith.divf %298, %299 : vector<16x1xf32>
    %301 = vector.broadcast %300 : vector<16x1xf32> to vector<16x32xf32>
    %302 = arith.subf %292, %301 : vector<16x32xf32>
    %303 = arith.mulf %302, %302 : vector<16x32xf32>
    %cst_141 = arith.constant dense<0.000000e+00> : vector<16xf32>
    %304 = vector.multi_reduction <add>, %303, %cst_141 [1] : vector<16x32xf32> to vector<16xf32>
    %305 = vector.shape_cast %304 : vector<16xf32> to vector<16x1xf32>
    %cst_142 = arith.constant 3.200000e+01 : f32
    %306 = vector.broadcast %cst_142 : f32 to vector<16x1xf32>
    %307 = arith.divf %305, %306 : vector<16x1xf32>
    %308 = vector.broadcast %300 : vector<16x1xf32> to vector<16x32xf32>
    %309 = arith.subf %292, %308 : vector<16x32xf32>
    %cst_143 = arith.constant 9.99999996E-13 : f32
    %310 = vector.broadcast %cst_143 : f32 to vector<16x1xf32>
    %311 = arith.addf %307, %310 : vector<16x1xf32>
    %312 = math.rsqrt %311 : vector<16x1xf32>
    %313 = vector.broadcast %312 : vector<16x1xf32> to vector<16x32xf32>
    %314 = arith.mulf %309, %313 : vector<16x32xf32>
    %315 = vector.broadcast %294 : vector<1x32xf32> to vector<16x32xf32>
    %316 = arith.mulf %314, %315 : vector<16x32xf32>
    %317 = vector.broadcast %296 : vector<1x32xf32> to vector<16x32xf32>
    %318 = arith.addf %316, %317 : vector<16x32xf32>
    %c0_144 = arith.constant 0 : index
    %c0_145 = arith.constant 0 : index
    %319 = vector.load %arg20[%c0_144, %c0_145] : memref<32x128xf32, #tpu.memory_space<vmem>>, vector<32x128xf32>
    %cst_146 = arith.constant dense<0.000000e+00> : vector<16x128xf32>
    %320 = tpu.matmul %318, %319, %cst_146 {dimension_numbers = #tpu.dot_dimension_numbers<[1], [0], [0], [1], [0, 0, 1, 1], [], []>} : vector<16x32xf32>, vector<32x128xf32>, vector<16x128xf32> -> vector<16x128xf32>
    %c0_147 = arith.constant 0 : index
    %c0_148 = arith.constant 0 : index
    %321 = vector.load %arg21[%c0_147, %c0_148] : memref<1x128xf32, #tpu.memory_space<vmem>>, vector<1x128xf32>
    %322 = vector.broadcast %321 : vector<1x128xf32> to vector<16x128xf32>
    %323 = arith.addf %320, %322 : vector<16x128xf32>
    %cst_149 = arith.constant dense<0xFF800000> : vector<16xf32>
    %324 = vector.multi_reduction <maximumf>, %323, %cst_149 [1] : vector<16x128xf32> to vector<16xf32>
    %325 = vector.shape_cast %324 : vector<16xf32> to vector<16x1xf32>
    %326 = vector.broadcast %325 : vector<16x1xf32> to vector<16x128xf32>
    %327 = arith.subf %323, %326 : vector<16x128xf32>
    %328 = math.exp %327 : vector<16x128xf32>
    %cst_150 = arith.constant dense<0.000000e+00> : vector<16xf32>
    %329 = vector.multi_reduction <add>, %328, %cst_150 [1] : vector<16x128xf32> to vector<16xf32>
    %330 = vector.shape_cast %329 : vector<16xf32> to vector<16x1xf32>
    %cst_151 = arith.constant 1.000000e+00 : f32
    %331 = vector.broadcast %cst_151 : f32 to vector<16x1xf32>
    %332 = arith.divf %331, %330 : vector<16x1xf32>
    %333 = vector.broadcast %332 : vector<16x1xf32> to vector<16x128xf32>
    %334 = arith.mulf %328, %333 : vector<16x128xf32>
    %c0_152 = arith.constant 0 : index
    %c0_153 = arith.constant 0 : index
    %335 = vector.load %arg22[%c0_152, %c0_153] : memref<16x128xf32, #tpu.memory_space<vmem>>, vector<16x128xf32>
    tpu.vector_store %arg22[%c0_152, %c0_153], %334 {strides = array<i32>} : memref<16x128xf32, #tpu.memory_space<vmem>>, vector<16x128xf32>,
    return
  }
  func.func @transform_0(%arg0: i32) -> (i32, i32) {
    %c0_i32 = arith.constant 0 : i32
    %c0_i32_0 = arith.constant 0 : i32
    %c0_i32_1 = arith.constant 0 : i32
    return %c0_i32, %c0_i32_0 : i32, i32
  }
  func.func @transform_1(%arg0: i32) -> (i32, i32, i32) {
    %c0_i32 = arith.constant 0 : i32
    %c0_i32_0 = arith.constant 0 : i32
    %c0_i32_1 = arith.constant 0 : i32
    %c0_i32_2 = arith.constant 0 : i32
    return %c0_i32, %c0_i32_0, %c0_i32_1 : i32, i32, i32
  }
  func.func @transform_2(%arg0: i32) -> (i32, i32) {
    %c0_i32 = arith.constant 0 : i32
    %c0_i32_0 = arith.constant 0 : i32
    %c0_i32_1 = arith.constant 0 : i32
    return %c0_i32, %c0_i32_0 : i32, i32
  }
  func.func @transform_3(%arg0: i32) -> (i32, i32) {
    %c0_i32 = arith.constant 0 : i32
    %c0_i32_0 = arith.constant 0 : i32
    %c0_i32_1 = arith.constant 0 : i32
    return %c0_i32, %c0_i32_0 : i32, i32
  }
  func.func @transform_4(%arg0: i32) -> (i32, i32) {
    %c0_i32 = arith.constant 0 : i32
    %c0_i32_0 = arith.constant 0 : i32
    %c0_i32_1 = arith.constant 0 : i32
    return %c0_i32, %c0_i32_0 : i32, i32
  }
  func.func @transform_5(%arg0: i32) -> (i32, i32) {
    %c0_i32 = arith.constant 0 : i32
    %c0_i32_0 = arith.constant 0 : i32
    %c0_i32_1 = arith.constant 0 : i32
    return %c0_i32, %c0_i32_0 : i32, i32
  }
  func.func @transform_6(%arg0: i32) -> (i32, i32) {
    %c0_i32 = arith.constant 0 : i32
    %c0_i32_0 = arith.constant 0 : i32
    %c0_i32_1 = arith.constant 0 : i32
    return %c0_i32, %c0_i32_0 : i32, i32
  }
  func.func @transform_7(%arg0: i32) -> (i32, i32, i32) {
    %c0_i32 = arith.constant 0 : i32
    %c0_i32_0 = arith.constant 0 : i32
    %c0_i32_1 = arith.constant 0 : i32
    %c0_i32_2 = arith.constant 0 : i32
    return %c0_i32, %c0_i32_0, %c0_i32_1 : i32, i32, i32
  }
  func.func @transform_8(%arg0: i32) -> (i32, i32, i32) {
    %c0_i32 = arith.constant 0 : i32
    %c0_i32_0 = arith.constant 0 : i32
    %c0_i32_1 = arith.constant 0 : i32
    %c0_i32_2 = arith.constant 0 : i32
    return %c0_i32, %c0_i32_0, %c0_i32_1 : i32, i32, i32
  }
  func.func @transform_9(%arg0: i32) -> (i32, i32, i32) {
    %c0_i32 = arith.constant 0 : i32
    %c0_i32_0 = arith.constant 0 : i32
    %c0_i32_1 = arith.constant 0 : i32
    %c0_i32_2 = arith.constant 0 : i32
    return %c0_i32, %c0_i32_0, %c0_i32_1 : i32, i32, i32
  }
  func.func @transform_10(%arg0: i32) -> (i32, i32, i32) {
    %c0_i32 = arith.constant 0 : i32
    %c0_i32_0 = arith.constant 0 : i32
    %c0_i32_1 = arith.constant 0 : i32
    %c0_i32_2 = arith.constant 0 : i32
    return %c0_i32, %c0_i32_0, %c0_i32_1 : i32, i32, i32
  }
  func.func @transform_11(%arg0: i32) -> (i32, i32, i32) {
    %c0_i32 = arith.constant 0 : i32
    %c0_i32_0 = arith.constant 0 : i32
    %c0_i32_1 = arith.constant 0 : i32
    %c0_i32_2 = arith.constant 0 : i32
    return %c0_i32, %c0_i32_0, %c0_i32_1 : i32, i32, i32
  }
  func.func @transform_12(%arg0: i32) -> (i32, i32, i32) {
    %c0_i32 = arith.constant 0 : i32
    %c0_i32_0 = arith.constant 0 : i32
    %c0_i32_1 = arith.constant 0 : i32
    %c0_i32_2 = arith.constant 0 : i32
    return %c0_i32, %c0_i32_0, %c0_i32_1 : i32, i32, i32
  }
  func.func @transform_13(%arg0: i32) -> (i32, i32, i32) {
    %c0_i32 = arith.constant 0 : i32
    %c0_i32_0 = arith.constant 0 : i32
    %c0_i32_1 = arith.constant 0 : i32
    %c0_i32_2 = arith.constant 0 : i32
    return %c0_i32, %c0_i32_0, %c0_i32_1 : i32, i32, i32
  }
  func.func @transform_14(%arg0: i32) -> (i32, i32, i32) {
    %c0_i32 = arith.constant 0 : i32
    %c0_i32_0 = arith.constant 0 : i32
    %c0_i32_1 = arith.constant 0 : i32
    %c0_i32_2 = arith.constant 0 : i32
    return %c0_i32, %c0_i32_0, %c0_i32_1 : i32, i32, i32
  }
  func.func @transform_15(%arg0: i32) -> (i32, i32, i32) {
    %c0_i32 = arith.constant 0 : i32
    %c0_i32_0 = arith.constant 0 : i32
    %c0_i32_1 = arith.constant 0 : i32
    %c0_i32_2 = arith.constant 0 : i32
    return %c0_i32, %c0_i32_0, %c0_i32_1 : i32, i32, i32
  }
  func.func @transform_16(%arg0: i32) -> (i32, i32, i32) {
    %c0_i32 = arith.constant 0 : i32
    %c0_i32_0 = arith.constant 0 : i32
    %c0_i32_1 = arith.constant 0 : i32
    %c0_i32_2 = arith.constant 0 : i32
    return %c0_i32, %c0_i32_0, %c0_i32_1 : i32, i32, i32
  }
  func.func @transform_17(%arg0: i32) -> (i32, i32, i32) {
    %c0_i32 = arith.constant 0 : i32
    %c0_i32_0 = arith.constant 0 : i32
    %c0_i32_1 = arith.constant 0 : i32
    %c0_i32_2 = arith.constant 0 : i32
    return %c0_i32, %c0_i32_0, %c0_i32_1 : i32, i32, i32
  }
  func.func @transform_18(%arg0: i32) -> (i32, i32, i32) {
    %c0_i32 = arith.constant 0 : i32
    %c0_i32_0 = arith.constant 0 : i32
    %c0_i32_1 = arith.constant 0 : i32
    %c0_i32_2 = arith.constant 0 : i32
    return %c0_i32, %c0_i32_0, %c0_i32_1 : i32, i32, i32
  }
  func.func @transform_19(%arg0: i32) -> (i32, i32) {
    %c0_i32 = arith.constant 0 : i32
    %c0_i32_0 = arith.constant 0 : i32
    %c0_i32_1 = arith.constant 0 : i32
    return %c0_i32, %c0_i32_0 : i32, i32
  }
  func.func @transform_20(%arg0: i32) -> (i32, i32) {
    %c0_i32 = arith.constant 0 : i32
    %c0_i32_0 = arith.constant 0 : i32
    %c0_i32_1 = arith.constant 0 : i32
    return %c0_i32, %c0_i32_0 : i32, i32
  }
  func.func @transform_21(%arg0: i32) -> (i32, i32) {
    %c0_i32 = arith.constant 0 : i32
    %c0_i32_0 = arith.constant 0 : i32
    %c0_i32_1 = arith.constant 0 : i32
    return %c0_i32, %c0_i32_0 : i32, i32
  }
}

</mosaic_0001>

<llo_original>
// kernel: tpu_custom_call.1
$region0: #{tpu_custom_call.1}
  #allocation0 [shape = 'u32[]', space=smem, size = 0x4, offset = 0x4, fixed_abs, tag = 'smem constant byte address 0x4 - core index']
  #allocation1 [shape = 'u32[144,128]{1,0:T(1,128)}', space=vmem, size = 0x12000, scoped, tag = 'internal scratch']
  %s0 = inlined_call_operand.vmem [shape: s32[16,1], index: 0, kind: input, shape index: {}]
  %s1 = inlined_call_operand.vmem [shape: f32[2,1,8], index: 1, kind: input, shape index: {}]
  %s2 = inlined_call_operand.vmem [shape: f32[128,32], index: 2, kind: input, shape index: {}]
  %s3 = inlined_call_operand.vmem [shape: f32[64,32], index: 3, kind: input, shape index: {}]
  %s4 = inlined_call_operand.vmem [shape: f32[2,32], index: 4, kind: input, shape index: {}]
  %s5 = inlined_call_operand.vmem [shape: f32[1,32], index: 5, kind: input, shape index: {}]
  %s6 = inlined_call_operand.vmem [shape: f32[1,32], index: 6, kind: input, shape index: {}]
  %s7 = inlined_call_operand.vmem [shape: f32[2,32,96], index: 7, kind: input, shape index: {}]
  %s8 = inlined_call_operand.vmem [shape: f32[2,1,96], index: 8, kind: input, shape index: {}]
  %s9 = inlined_call_operand.vmem [shape: f32[2,32,32], index: 9, kind: input, shape index: {}]
  %s10 = inlined_call_operand.vmem [shape: f32[2,1,32], index: 10, kind: input, shape index: {}]
  %s11 = inlined_call_operand.vmem [shape: f32[2,1,32], index: 11, kind: input, shape index: {}]
  %s12 = inlined_call_operand.vmem [shape: f32[2,1,32], index: 12, kind: input, shape index: {}]
  %s13 = inlined_call_operand.vmem [shape: f32[2,32,64], index: 13, kind: input, shape index: {}]
  %s14 = inlined_call_operand.vmem [shape: f32[2,1,64], index: 14, kind: input, shape index: {}]
  %s15 = inlined_call_operand.vmem [shape: f32[2,64,32], index: 15, kind: input, shape index: {}]
  %s16 = inlined_call_operand.vmem [shape: f32[2,1,32], index: 16, kind: input, shape index: {}]
  %s17 = inlined_call_operand.vmem [shape: f32[2,1,32], index: 17, kind: input, shape index: {}]
  %s18 = inlined_call_operand.vmem [shape: f32[2,1,32], index: 18, kind: input, shape index: {}]
  %s19 = inlined_call_operand.vmem [shape: f32[32,128], index: 19, kind: input, shape index: {}]
  %s20 = inlined_call_operand.vmem [shape: f32[1,128], index: 20, kind: input, shape index: {}]
  %s21 = inlined_call_operand.hbm [shape: f32[16,128], index: 21, kind: output, shape index: {}]
  %s22 = sld [smem:[#allocation0]]
  $region94: #{tpu_custom_call.1} parent=0
    _
  %s24 = ssub.s32 1, %s22
  %s25 = scalar_select 0, %s24, %s22
  $region1: #{tpu_custom_call.1} parent=0
    #allocation2 [shape = 'u8[8192]{0}', space=vmem, size = 0x2000, scoped, tag = 'output window, operand 0, single buffered']
    #allocation3 [shape = 's32[1]{0}', space=sflag, size = 0x4, scoped, tag = 'scoped memory for tpu_custom_call.1']
    %26 = vsyncpa [#allocation3], 0
    // Predicated region
    $region2: #{tpu_custom_call.1} parent=1 // pred_check
      _
    $region3: #{tpu_custom_call.1} parent=1 // pred_check_branch
      %28 = sbr.rel (0) target = $region5
    $region4: #{tpu_custom_call.1} parent=1 // pred_region
      _
    $region5: #{tpu_custom_call.1} parent=1 // pred_fallthru
      _
    // Predicated region
    $region6: #{tpu_custom_call.1} parent=1 // pred_check
      _
    $region7: #{tpu_custom_call.1} parent=1 // pred_check_branch
      %30 = sbr.rel (0) target = $region9
    $region8: #{tpu_custom_call.1} parent=1 // pred_region
      _
    $region9: #{tpu_custom_call.1} parent=1 // pred_fallthru
      _
    // Predicated region
    $region10: #{tpu_custom_call.1} parent=1 // pred_check
      _
    $region11: #{tpu_custom_call.1} parent=1 // pred_check_branch
      %32 = sbr.rel (0) target = $region13
    $region12: #{tpu_custom_call.1} parent=1 // pred_region
      _
    $region13: #{tpu_custom_call.1} parent=1 // pred_fallthru
      _
    // Predicated region
    $region14: #{tpu_custom_call.1} parent=1 // pred_check
      _
    $region15: #{tpu_custom_call.1} parent=1 // pred_check_branch
      %34 = sbr.rel (0) target = $region17
    $region16: #{tpu_custom_call.1} parent=1 // pred_region
      _
    $region17: #{tpu_custom_call.1} parent=1 // pred_fallthru
      _
    // Predicated region
    $region18: #{tpu_custom_call.1} parent=1 // pred_check
      _
    $region19: #{tpu_custom_call.1} parent=1 // pred_check_branch
      %36 = sbr.rel (0) target = $region21
    $region20: #{tpu_custom_call.1} parent=1 // pred_region
      _
    $region21: #{tpu_custom_call.1} parent=1 // pred_fallthru
      _
    // Predicated region
    $region22: #{tpu_custom_call.1} parent=1 // pred_check
      _
    $region23: #{tpu_custom_call.1} parent=1 // pred_check_branch
      %38 = sbr.rel (0) target = $region25
    $region24: #{tpu_custom_call.1} parent=1 // pred_region
      _
    $region25: #{tpu_custom_call.1} parent=1 // pred_fallthru
      _
    // Predicated region
    $region26: #{tpu_custom_call.1} parent=1 // pred_check
      _
    $region27: #{tpu_custom_call.1} parent=1 // pred_check_branch
      %40 = sbr.rel (0) target = $region29
    $region28: #{tpu_custom_call.1} parent=1 // pred_region
      _
    $region29: #{tpu_custom_call.1} parent=1 // pred_fallthru
      _
    // Predicated region
    $region30: #{tpu_custom_call.1} parent=1 // pred_check
      _
    $region31: #{tpu_custom_call.1} parent=1 // pred_check_branch
      %42 = sbr.rel (0) target = $region33
    $region32: #{tpu_custom_call.1} parent=1 // pred_region
      _
    $region33: #{tpu_custom_call.1} parent=1 // pred_fallthru
      _
    // Predicated region
    $region34: #{tpu_custom_call.1} parent=1 // pred_check
      _
    $region35: #{tpu_custom_call.1} parent=1 // pred_check_branch
      %44 = sbr.rel (0) target = $region37
    $region36: #{tpu_custom_call.1} parent=1 // pred_region
      _
    $region37: #{tpu_custom_call.1} parent=1 // pred_fallthru
      _
    // Predicated region
    $region38: #{tpu_custom_call.1} parent=1 // pred_check
      _
    $region39: #{tpu_custom_call.1} parent=1 // pred_check_branch
      %46 = sbr.rel (0) target = $region41
    $region40: #{tpu_custom_call.1} parent=1 // pred_region
      _
    $region41: #{tpu_custom_call.1} parent=1 // pred_fallthru
      _
    // Predicated region
    $region42: #{tpu_custom_call.1} parent=1 // pred_check
      _
    $region43: #{tpu_custom_call.1} parent=1 // pred_check_branch
      %48 = sbr.rel (0) target = $region45
    $region44: #{tpu_custom_call.1} parent=1 // pred_region
      _
    $region45: #{tpu_custom_call.1} parent=1 // pred_fallthru
      _
    // Predicated region
    $region46: #{tpu_custom_call.1} parent=1 // pred_check
      _
    $region47: #{tpu_custom_call.1} parent=1 // pred_check_branch
      %50 = sbr.rel (0) target = $region49
    $region48: #{tpu_custom_call.1} parent=1 // pred_region
      _
    $region49: #{tpu_custom_call.1} parent=1 // pred_fallthru
      _
    // Predicated region
    $region50: #{tpu_custom_call.1} parent=1 // pred_check
      _
    $region51: #{tpu_custom_call.1} parent=1 // pred_check_branch
      %52 = sbr.rel (0) target = $region53
    $region52: #{tpu_custom_call.1} parent=1 // pred_region
      _
    $region53: #{tpu_custom_call.1} parent=1 // pred_fallthru
      _
    // Predicated region
    $region54: #{tpu_custom_call.1} parent=1 // pred_check
      _
    $region55: #{tpu_custom_call.1} parent=1 // pred_check_branch
      %54 = sbr.rel (0) target = $region57
    $region56: #{tpu_custom_call.1} parent=1 // pred_region
      _
    $region57: #{tpu_custom_call.1} parent=1 // pred_fallthru
      _
    // Predicated region
    $region58: #{tpu_custom_call.1} parent=1 // pred_check
      _
    $region59: #{tpu_custom_call.1} parent=1 // pred_check_branch
      %56 = sbr.rel (0) target = $region61
    $region60: #{tpu_custom_call.1} parent=1 // pred_region
      _
    $region61: #{tpu_custom_call.1} parent=1 // pred_fallthru
      _
    // Predicated region
    $region62: #{tpu_custom_call.1} parent=1 // pred_check
      _
    $region63: #{tpu_custom_call.1} parent=1 // pred_check_branch
      %58 = sbr.rel (0) target = $region65
    $region64: #{tpu_custom_call.1} parent=1 // pred_region
      _
    $region65: #{tpu_custom_call.1} parent=1 // pred_fallthru
      _
    // Predicated region
    $region66: #{tpu_custom_call.1} parent=1 // pred_check
      _
    $region67: #{tpu_custom_call.1} parent=1 // pred_check_branch
      %60 = sbr.rel (0) target = $region69
    $region68: #{tpu_custom_call.1} parent=1 // pred_region
      _
    $region69: #{tpu_custom_call.1} parent=1 // pred_fallthru
      _
    // Predicated region
    $region70: #{tpu_custom_call.1} parent=1 // pred_check
      _
    $region71: #{tpu_custom_call.1} parent=1 // pred_check_branch
      %62 = sbr.rel (0) target = $region73
    $region72: #{tpu_custom_call.1} parent=1 // pred_region
      _
    $region73: #{tpu_custom_call.1} parent=1 // pred_fallthru
      _
    // Predicated region
    $region74: #{tpu_custom_call.1} parent=1 // pred_check
      _
    $region75: #{tpu_custom_call.1} parent=1 // pred_check_branch
      %64 = sbr.rel (0) target = $region77
    $region76: #{tpu_custom_call.1} parent=1 // pred_region
      _
    $region77: #{tpu_custom_call.1} parent=1 // pred_fallthru
      _
    // Predicated region
    $region78: #{tpu_custom_call.1} parent=1 // pred_check
      _
    $region79: #{tpu_custom_call.1} parent=1 // pred_check_branch
      %66 = sbr.rel (0) target = $region81
    $region80: #{tpu_custom_call.1} parent=1 // pred_region
      _
    $region81: #{tpu_custom_call.1} parent=1 // pred_fallthru
      _
    // Predicated region
    $region82: #{tpu_custom_call.1} parent=1 // pred_check
      _
    $region83: #{tpu_custom_call.1} parent=1 // pred_check_branch
      %68 = sbr.rel (0) target = $region85
    $region84: #{tpu_custom_call.1} parent=1 // pred_region
      _
    $region85: #{tpu_custom_call.1} parent=1 // pred_fallthru
      _
    %v69 = vld [vmem:[%s0] sm:$0xff]
    %v70 = vld [vmem:[%s0 + $0x8] sm:$0xff]
    %v71 = vlaneseq
    %v72 = vand.u32 %v71, 127
    %73 = vset.pattern.permute.xlu0 0
    %74 = vperm.xlu0 %73, %v69
    %v75 = vpop.permute.xlu0 %74
    %76 = vset.pattern.permute.xlu0 0
    %77 = vperm.xlu0 %76, %v70
    %v78 = vpop.permute.xlu0 %77
    %vm79 = vcmp.eq.s32.totalorder %v72, %v75
    %vm80 = vcmp.eq.s32.totalorder %v72, %v78
    %v81 = vsel %vm79, 1, 0
    %v82 = vsel %vm80, 1, 0
    %v83 = vcvt.s32.f32 %v81
    %v84 = vcvt.s32.f32 %v82
    %v85 = vld [vmem:[%s2] sm:$0xff]
    %v86 = vld [vmem:[%s2 + $0x8] sm:$0xff]
    %v87 = vld [vmem:[%s2 + $0x10] sm:$0xff]
    %v88 = vld [vmem:[%s2 + $0x18] sm:$0xff]
    %v89 = vld [vmem:[%s2 + $0x20] sm:$0xff]
    %v90 = vld [vmem:[%s2 + $0x28] sm:$0xff]
    %v91 = vld [vmem:[%s2 + $0x30] sm:$0xff]
    %v92 = vld [vmem:[%s2 + $0x38] sm:$0xff]
    %v93 = vld [vmem:[%s2 + $0x40] sm:$0xff]
    %v94 = vld [vmem:[%s2 + $0x48] sm:$0xff]
    %v95 = vld [vmem:[%s2 + $0x50] sm:$0xff]
    %v96 = vld [vmem:[%s2 + $0x58] sm:$0xff]
    %v97 = vld [vmem:[%s2 + $0x60] sm:$0xff]
    %v98 = vld [vmem:[%s2 + $0x68] sm:$0xff]
    %v99 = vld [vmem:[%s2 + $0x70] sm:$0xff]
    %v100 = vld [vmem:[%s2 + $0x78] sm:$0xff]
    %v101 = vld [vmem:[%s3] sm:$0xff]
    %v102 = vld [vmem:[%s4] sm:$0x1]
    %v103 = vlaneseq
    %v104 = vshrl.u32 %v103, 7
    %v105 = vsub.s32 0, %v104
    %v106 = vrot.slane %v102, %v105
    %v107 = vadd.f32 %v101, %v106
    %108 = vmatprep.subr.mxu0 0.0
    %109 = vmatpush1.msra.mxu0 %v100
    %110 = vmatprep.subr.mxu0 0.0
    %111 = vmatpush1.msra.mxu0 %v99
    %112 = vmatprep.subr.mxu0 0.0
    %113 = vmatpush1.msra.mxu0 %v98
    %114 = vmatprep.subr.mxu0 0.0
    %115 = vmatpush1.msra.mxu0 %v97
    %116 = vmatprep.subr.mxu0 0.0
    %117 = vmatpush1.msra.mxu0 %v96
    %118 = vmatprep.subr.mxu0 0.0
    %119 = vmatpush1.msra.mxu0 %v95
    %120 = vmatprep.subr.mxu0 0.0
    %121 = vmatpush1.msra.mxu0 %v94
    %122 = vmatprep.subr.mxu0 0.0
    %123 = vmatpush1.msra.mxu0 %v93
    %124 = vmatprep.subr.mxu0 0.0
    %125 = vmatpush1.msra.mxu0 %v92
    %126 = vmatprep.subr.mxu0 0.0
    %127 = vmatpush1.msra.mxu0 %v91
    %128 = vmatprep.subr.mxu0 0.0
    %129 = vmatpush1.msra.mxu0 %v90
    %130 = vmatprep.subr.mxu0 0.0
    %131 = vmatpush1.msra.mxu0 %v89
    %132 = vmatprep.subr.mxu0 0.0
    %133 = vmatpush1.msra.mxu0 %v88
    %134 = vmatprep.subr.mxu0 0.0
    %135 = vmatpush1.msra.mxu0 %v87
    %136 = vmatprep.subr.mxu0 0.0
    %137 = vmatpush1.msra.mxu0 %v86
    %138 = vmatprep.subr.mxu0 0.0
    %139 = vmatpush1.msra.mxu0 %v85
    %140 = vmatprep.subr.mxu0 0.0
    %141 = vmatpush2.msra.mxu0 0.0
    %142 = vmatprep.subr.mxu0 0.0
    %143 = vmatpush2.msra.mxu0 0.0
    %144 = vmatprep.subr.mxu0 0.0
    %145 = vmatpush2.msra.mxu0 0.0
    %146 = vmatprep.subr.mxu0 0.0
    %147 = vmatpush2.msra.mxu0 0.0
    %148 = vmatprep.subr.mxu0 0.0
    %149 = vmatpush2.msra.mxu0 0.0
    %150 = vmatprep.subr.mxu0 0.0
    %151 = vmatpush2.msra.mxu0 0.0
    %152 = vmatprep.subr.mxu0 0.0
    %153 = vmatpush2.msra.mxu0 0.0
    %154 = vmatprep.subr.mxu0 0.0
    %155 = vmatpush2.msra.mxu0 0.0
    %156 = vmatprep.subr.mxu0 0.0
    %157 = vmatpush2.msra.mxu0 0.0
    %158 = vmatprep.subr.mxu0 0.0
    %159 = vmatpush2.msra.mxu0 0.0
    %160 = vmatprep.subr.mxu0 0.0
    %161 = vmatpush2.msra.mxu0 0.0
    %162 = vmatprep.subr.mxu0 0.0
    %163 = vmatpush2.msra.mxu0 0.0
    %164 = vmatprep.subr.mxu0 0.0
    %165 = vmatpush2.msra.mxu0 0.0
    %166 = vmatprep.subr.mxu0 0.0
    %167 = vmatpush2.msra.mxu0 0.0
    %168 = vmatprep.subr.mxu0 0.0
    %169 = vmatpush2.msra.mxu0 0.0
    %170 = vmatprep.subr.mxu0 0.0
    %171 = vmatpush2.msra.mxu0 0.0
    %172 = vmatprep.mubr.f32.mxu0 0.0
    %173 = vmatmul.mubr.f32.gmra.mxu0 %v83
    %v174 = vpop.f32.mrf.mxu0
    %v175 = vadd.f32 %v107, %v174
    %v176 = vpop.f32.mrf.mxu0
    %177 = vmatprep.mubr.f32.mxu0 0.0
    %178 = vmatmul.mubr.f32.gmra.mxu0 %v84
    %v179 = vpop.f32.mrf.mxu0
    %v180 = vadd.f32 %v107, %v179
    %v181 = vpop.f32.mrf.mxu0
    %182 = vdwg.mxu0
    %v183 = vld [vmem:[%s5] sm:$0x1]
    %v184 = vld [vmem:[%s6] sm:$0x1]
    %vm185 = vcmask 261120
    %v186 = vsel %vm185, %v175, 0.0
    %187 = vadd.xlane.f32.xlu0 %v186
    %v188 = vpop.xlane.xlu0 %187
    %v189 = vsel %vm185, %v180, 0.0
    %190 = vadd.xlane.f32.xlu0 %v189
    %v191 = vpop.xlane.xlu0 %190
    %v192 = vrcp.pop 32.0
    %v193 = vmul.f32 %v188, %v192
    %v194 = vmul.f32 %v191, %v192
    %v195 = vsub.f32 %v175, %v193
    %v196 = vsub.f32 %v180, %v194
    %v197 = vmul.f32 %v195, %v195
    %v198 = vmul.f32 %v196, %v196
    %v199 = vsel %vm185, %v197, 0.0
    %200 = vadd.xlane.f32.xlu0 %v199
    %v201 = vpop.xlane.xlu0 %200
    %v202 = vsel %vm185, %v198, 0.0
    %203 = vadd.xlane.f32.xlu0 %v202
    %v204 = vpop.xlane.xlu0 %203
    %v205 = vmul.f32 %v201, %v192
    %v206 = vmul.f32 %v204, %v192
    %v207 = vadd.f32 %v205, 1e-12
    %v208 = vadd.f32 %v206, 1e-12
    %v209 = vrsqrt.pop %v207
    %v210 = vrsqrt.pop %v208
    %v211 = vmul.f32 %v195, %v209
    %v212 = vmul.f32 %v196, %v210
    %v214 = vlaneseq
    %v215 = vshrl.u32 %v214, 7
    %v216 = vsub.s32 0, %v215
    %v217 = vrot.slane %v183, %v216
    %v219 = vmul.f32 %v211, %v217
    %v220 = vmul.f32 %v212, %v217
    %v222 = vlaneseq
    %v223 = vshrl.u32 %v222, 7
    %v224 = vsub.s32 0, %v223
    %v225 = vrot.slane %v184, %v224
    %v227 = vadd.f32 %v219, %v225
    %v228 = vadd.f32 %v220, %v225
    %v229 = vld [vmem:[%s1] sm:$0x1]
    %v230 = vld [vmem:[%s1 + $0x1] sm:$0x1]
    %v231 = vsub.f32 1.0, %v229
    %v232 = vsub.f32 1.0, %v230
    %v233 = vmul.f32 %v231, -1e+09
    %v234 = vmul.f32 %v232, -1e+09
    %v235 = vld [vmem:[%s7] sm:$0xff]
    %v236 = vld [vmem:[%s7 + $0x8] sm:$0xff]
    %v237 = vld [vmem:[%s7 + $0x10] sm:$0xff]
    %v238 = vld [vmem:[%s7 + $0x18] sm:$0xff]
    %v239 = vld [vmem:[%s8] sm:$0x1]
    %v241 = vlaneseq
    %v242 = vshrl.u32 %v241, 7
    %v243 = vsub.s32 0, %v242
    %v244 = vrot.slane %v239, %v243
    %v247 = vsel %vm185, %v227, 0
    %v250 = vsel %vm185, %v228, 0
    %252 = vmatprep.subr.mxu0 0.0
    %253 = vmatpush1.msra.mxu0 0.0
    %254 = vmatprep.subr.mxu0 0.0
    %255 = vmatpush1.msra.mxu0 0.0
    %256 = vmatprep.subr.mxu0 0.0
    %257 = vmatpush1.msra.mxu0 0.0
    %258 = vmatprep.subr.mxu0 0.0
    %259 = vmatpush1.msra.mxu0 0.0
    %260 = vmatprep.subr.mxu0 0.0
    %261 = vmatpush1.msra.mxu0 0.0
    %262 = vmatprep.subr.mxu0 0.0
    %263 = vmatpush1.msra.mxu0 0.0
    %264 = vmatprep.subr.mxu0 0.0
    %265 = vmatpush1.msra.mxu0 0.0
    %266 = vmatprep.subr.mxu0 0.0
    %267 = vmatpush1.msra.mxu0 0.0
    %268 = vmatprep.subr.mxu0 0.0
    %269 = vmatpush1.msra.mxu0 0.0
    %270 = vmatprep.subr.mxu0 0.0
    %271 = vmatpush1.msra.mxu0 0.0
    %272 = vmatprep.subr.mxu0 0.0
    %273 = vmatpush1.msra.mxu0 0.0
    %274 = vmatprep.subr.mxu0 0.0
    %275 = vmatpush1.msra.mxu0 0.0
    %276 = vmatprep.subr.mxu0 0.0
    %277 = vmatpush1.msra.mxu0 %v238
    %278 = vmatprep.subr.mxu0 0.0
    %279 = vmatpush1.msra.mxu0 %v237
    %280 = vmatprep.subr.mxu0 0.0
    %281 = vmatpush1.msra.mxu0 %v236
    %282 = vmatprep.subr.mxu0 0.0
    %283 = vmatpush1.msra.mxu0 %v235
    %284 = vmatprep.subr.mxu0 0.0
    %285 = vmatpush2.msra.mxu0 0.0
    %286 = vmatprep.subr.mxu0 0.0
    %287 = vmatpush2.msra.mxu0 0.0
    %288 = vmatprep.subr.mxu0 0.0
    %289 = vmatpush2.msra.mxu0 0.0
    %290 = vmatprep.subr.mxu0 0.0
    %291 = vmatpush2.msra.mxu0 0.0
    %292 = vmatprep.subr.mxu0 0.0
    %293 = vmatpush2.msra.mxu0 0.0
    %294 = vmatprep.subr.mxu0 0.0
    %295 = vmatpush2.msra.mxu0 0.0
    %296 = vmatprep.subr.mxu0 0.0
    %297 = vmatpush2.msra.mxu0 0.0
    %298 = vmatprep.subr.mxu0 0.0
    %299 = vmatpush2.msra.mxu0 0.0
    %300 = vmatprep.subr.mxu0 0.0
    %301 = vmatpush2.msra.mxu0 0.0
    %302 = vmatprep.subr.mxu0 0.0
    %303 = vmatpush2.msra.mxu0 0.0
    %304 = vmatprep.subr.mxu0 0.0
    %305 = vmatpush2.msra.mxu0 0.0
    %306 = vmatprep.subr.mxu0 0.0
    %307 = vmatpush2.msra.mxu0 0.0
    %308 = vmatprep.subr.mxu0 0.0
    %309 = vmatpush2.msra.mxu0 0.0
    %310 = vmatprep.subr.mxu0 0.0
    %311 = vmatpush2.msra.mxu0 0.0
    %312 = vmatprep.subr.mxu0 0.0
    %313 = vmatpush2.msra.mxu0 0.0
    %314 = vmatprep.subr.mxu0 0.0
    %315 = vmatpush2.msra.mxu0 0.0
    %316 = vmatprep.mubr.f32.mxu0 0.0
    %317 = vmatmul.mubr.f32.gmra.mxu0 %v247
    %v318 = vpop.f32.mrf.mxu0
    %v319 = vadd.f32 %v244, %v318
    %v320 = vpop.f32.mrf.mxu0
    %321 = vmatprep.mubr.f32.mxu0 0.0
    %322 = vmatmul.mubr.f32.gmra.mxu0 %v250
    %v323 = vpop.f32.mrf.mxu0
    %v324 = vadd.f32 %v244, %v323
    %v325 = vpop.f32.mrf.mxu0
    %326 = vdwg.mxu0
    %v329 = vlaneseq
    %v330 = vshrl.u32 %v329, 7
    %v331 = vsub.s32 0, %v330
    %v332 = vrot.slane %v233, %v331
    %v333 = vlaneseq
    %v334 = vshrl.u32 %v333, 7
    %v335 = vsub.s32 0, %v334
    %v336 = vrot.slane %v234, %v335
    %340 = vrot.lane.b32.xlu0 %v319, 96
    %v341 = vpop.permute.xlu0 %340
    %vm342 = vcmask 130048
    %v343 = vsel %vm342, %v319, 0
    %v345 = vsel %vm342, %v341, 0
    %347 = vmatprep.subr.mxu0 0.0
    %348 = vmatpush1.xpose.msra.mxu0 0.0
    %349 = vmatprep.subr.mxu0 0.0
    %350 = vmatpush1.xpose.msra.mxu0 0.0
    %351 = vmatprep.subr.mxu0 0.0
    %352 = vmatpush1.xpose.msra.mxu0 0.0
    %353 = vmatprep.subr.mxu0 0.0
    %354 = vmatpush1.xpose.msra.mxu0 0.0
    %355 = vmatprep.subr.mxu0 0.0
    %356 = vmatpush1.xpose.msra.mxu0 0.0
    %357 = vmatprep.subr.mxu0 0.0
    %358 = vmatpush1.xpose.msra.mxu0 0.0
    %359 = vmatprep.subr.mxu0 0.0
    %360 = vmatpush1.xpose.msra.mxu0 0.0
    %361 = vmatprep.subr.mxu0 0.0
    %362 = vmatpush1.xpose.msra.mxu0 0.0
    %363 = vmatprep.subr.mxu0 0.0
    %364 = vmatpush1.xpose.msra.mxu0 0.0
    %365 = vmatprep.subr.mxu0 0.0
    %366 = vmatpush1.xpose.msra.mxu0 0.0
    %367 = vmatprep.subr.mxu0 0.0
    %368 = vmatpush1.xpose.msra.mxu0 0.0
    %369 = vmatprep.subr.mxu0 0.0
    %370 = vmatpush1.xpose.msra.mxu0 0.0
    %371 = vmatprep.subr.mxu0 0.0
    %372 = vmatpush1.xpose.msra.mxu0 0.0
    %373 = vmatprep.subr.mxu0 0.0
    %374 = vmatpush1.xpose.msra.mxu0 0.0
    %375 = vmatprep.subr.mxu0 0.0
    %376 = vmatpush1.xpose.msra.mxu0 0.0
    %377 = vmatprep.subr.mxu0 0.0
    %378 = vmatpush1.xpose.msra.mxu0 %v345
    %379 = vmatprep.subr.mxu0 0.0
    %380 = vmatpush2.xpose.msra.mxu0 0.0
    %381 = vmatprep.subr.mxu0 0.0
    %382 = vmatpush2.xpose.msra.mxu0 0.0
    %383 = vmatprep.subr.mxu0 0.0
    %384 = vmatpush2.xpose.msra.mxu0 0.0
    %385 = vmatprep.subr.mxu0 0.0
    %386 = vmatpush2.xpose.msra.mxu0 0.0
    %387 = vmatprep.subr.mxu0 0.0
    %388 = vmatpush2.xpose.msra.mxu0 0.0
    %389 = vmatprep.subr.mxu0 0.0
    %390 = vmatpush2.xpose.msra.mxu0 0.0
    %391 = vmatprep.subr.mxu0 0.0
    %392 = vmatpush2.xpose.msra.mxu0 0.0
    %393 = vmatprep.subr.mxu0 0.0
    %394 = vmatpush2.xpose.msra.mxu0 0.0
    %395 = vmatprep.subr.mxu0 0.0
    %396 = vmatpush2.xpose.msra.mxu0 0.0
    %397 = vmatprep.subr.mxu0 0.0
    %398 = vmatpush2.xpose.msra.mxu0 0.0
    %399 = vmatprep.subr.mxu0 0.0
    %400 = vmatpush2.xpose.msra.mxu0 0.0
    %401 = vmatprep.subr.mxu0 0.0
    %402 = vmatpush2.xpose.msra.mxu0 0.0
    %403 = vmatprep.subr.mxu0 0.0
    %404 = vmatpush2.xpose.msra.mxu0 0.0
    %405 = vmatprep.subr.mxu0 0.0
    %406 = vmatpush2.xpose.msra.mxu0 0.0
    %407 = vmatprep.subr.mxu0 0.0
    %408 = vmatpush2.xpose.msra.mxu0 0.0
    %409 = vmatprep.subr.mxu0 0.0
    %410 = vmatpush2.xpose.msra.mxu0 0.0
    %411 = vmatprep.mubr.f32.mxu0 0.0
    %412 = vmatmul.mubr.f32.gmra.mxu0 %v343
    %v413 = vpop.f32.mrf.mxu0
    %v414 = vadd.f32 %v332, %v413
    %v415 = vpop.f32.mrf.mxu0
    %416 = vdwg.mxu0
    %418 = vrot.lane.b32.xlu0 %v324, 96
    %v419 = vpop.permute.xlu0 %418
    %v420 = vsel %vm342, %v324, 0
    %v422 = vsel %vm342, %v419, 0
    %424 = vmatprep.subr.mxu0 0.0
    %425 = vmatpush1.xpose.msra.mxu0 0.0
    %426 = vmatprep.subr.mxu0 0.0
    %427 = vmatpush1.xpose.msra.mxu0 0.0
    %428 = vmatprep.subr.mxu0 0.0
    %429 = vmatpush1.xpose.msra.mxu0 0.0
    %430 = vmatprep.subr.mxu0 0.0
    %431 = vmatpush1.xpose.msra.mxu0 0.0
    %432 = vmatprep.subr.mxu0 0.0
    %433 = vmatpush1.xpose.msra.mxu0 0.0
    %434 = vmatprep.subr.mxu0 0.0
    %435 = vmatpush1.xpose.msra.mxu0 0.0
    %436 = vmatprep.subr.mxu0 0.0
    %437 = vmatpush1.xpose.msra.mxu0 0.0
    %438 = vmatprep.subr.mxu0 0.0
    %439 = vmatpush1.xpose.msra.mxu0 0.0
    %440 = vmatprep.subr.mxu0 0.0
    %441 = vmatpush1.xpose.msra.mxu0 0.0
    %442 = vmatprep.subr.mxu0 0.0
    %443 = vmatpush1.xpose.msra.mxu0 0.0
    %444 = vmatprep.subr.mxu0 0.0
    %445 = vmatpush1.xpose.msra.mxu0 0.0
    %446 = vmatprep.subr.mxu0 0.0
    %447 = vmatpush1.xpose.msra.mxu0 0.0
    %448 = vmatprep.subr.mxu0 0.0
    %449 = vmatpush1.xpose.msra.mxu0 0.0
    %450 = vmatprep.subr.mxu0 0.0
    %451 = vmatpush1.xpose.msra.mxu0 0.0
    %452 = vmatprep.subr.mxu0 0.0
    %453 = vmatpush1.xpose.msra.mxu0 0.0
    %454 = vmatprep.subr.mxu0 0.0
    %455 = vmatpush1.xpose.msra.mxu0 %v422
    %456 = vmatprep.subr.mxu0 0.0
    %457 = vmatpush2.xpose.msra.mxu0 0.0
    %458 = vmatprep.subr.mxu0 0.0
    %459 = vmatpush2.xpose.msra.mxu0 0.0
    %460 = vmatprep.subr.mxu0 0.0
    %461 = vmatpush2.xpose.msra.mxu0 0.0
    %462 = vmatprep.subr.mxu0 0.0
    %463 = vmatpush2.xpose.msra.mxu0 0.0
    %464 = vmatprep.subr.mxu0 0.0
    %465 = vmatpush2.xpose.msra.mxu0 0.0
    %466 = vmatprep.subr.mxu0 0.0
    %467 = vmatpush2.xpose.msra.mxu0 0.0
    %468 = vmatprep.subr.mxu0 0.0
    %469 = vmatpush2.xpose.msra.mxu0 0.0
    %470 = vmatprep.subr.mxu0 0.0
    %471 = vmatpush2.xpose.msra.mxu0 0.0
    %472 = vmatprep.subr.mxu0 0.0
    %473 = vmatpush2.xpose.msra.mxu0 0.0
    %474 = vmatprep.subr.mxu0 0.0
    %475 = vmatpush2.xpose.msra.mxu0 0.0
    %476 = vmatprep.subr.mxu0 0.0
    %477 = vmatpush2.xpose.msra.mxu0 0.0
    %478 = vmatprep.subr.mxu0 0.0
    %479 = vmatpush2.xpose.msra.mxu0 0.0
    %480 = vmatprep.subr.mxu0 0.0
    %481 = vmatpush2.xpose.msra.mxu0 0.0
    %482 = vmatprep.subr.mxu0 0.0
    %483 = vmatpush2.xpose.msra.mxu0 0.0
    %484 = vmatprep.subr.mxu0 0.0
    %485 = vmatpush2.xpose.msra.mxu0 0.0
    %486 = vmatprep.subr.mxu0 0.0
    %487 = vmatpush2.xpose.msra.mxu0 0.0
    %488 = vmatprep.mubr.f32.mxu0 0.0
    %489 = vmatmul.mubr.f32.gmra.mxu0 %v420
    %v490 = vpop.f32.mrf.mxu0
    %v491 = vadd.f32 %v336, %v490
    %v492 = vpop.f32.mrf.mxu0
    %493 = vdwg.mxu0
    %vm494 = vcmask 64512
    %v495 = vsel %vm494, %v414, -inf
    %496 = vmax.xlane.f32.xlu0 %v495
    %v497 = vpop.xlane.xlu0 %496
    %v498 = vsel %vm494, %v491, -inf
    %499 = vmax.xlane.f32.xlu0 %v498
    %v500 = vpop.xlane.xlu0 %499
    %v501 = vsub.f32 %v414, %v497
    %v502 = vsub.f32 %v491, %v500
    %v503 = vmul.f32 %v501, 1.442695
    %v504 = vpow.pop %v503
    %v505 = vmul.f32 %v502, 1.442695
    %v506 = vpow.pop %v505
    %v507 = vsel %vm494, %v504, 0.0
    %508 = vadd.xlane.f32.xlu0 %v507
    %v509 = vpop.xlane.xlu0 %508
    %v510 = vsel %vm494, %v506, 0.0
    %511 = vadd.xlane.f32.xlu0 %v510
    %v512 = vpop.xlane.xlu0 %511
    %v513 = vrcp.pop %v509
    %v514 = vrcp.pop %v512
    %v515 = vmul.f32 %v504, %v513
    %v516 = vmul.f32 %v506, %v514
    %517 = vrot.lane.b32.xlu0 %v319, 64
    %v518 = vpop.permute.xlu0 %517
    %v521 = vsel %vm494, %v515, 0
    %523 = vmatprep.subr.mxu0 0.0
    %524 = vmatpush1.msra.mxu0 0.0
    %525 = vmatprep.subr.mxu0 0.0
    %526 = vmatpush1.msra.mxu0 0.0
    %527 = vmatprep.subr.mxu0 0.0
    %528 = vmatpush1.msra.mxu0 0.0
    %529 = vmatprep.subr.mxu0 0.0
    %530 = vmatpush1.msra.mxu0 0.0
    %531 = vmatprep.subr.mxu0 0.0
    %532 = vmatpush1.msra.mxu0 0.0
    %533 = vmatprep.subr.mxu0 0.0
    %534 = vmatpush1.msra.mxu0 0.0
    %535 = vmatprep.subr.mxu0 0.0
    %536 = vmatpush1.msra.mxu0 0.0
    %537 = vmatprep.subr.mxu0 0.0
    %538 = vmatpush1.msra.mxu0 0.0
    %539 = vmatprep.subr.mxu0 0.0
    %540 = vmatpush1.msra.mxu0 0.0
    %541 = vmatprep.subr.mxu0 0.0
    %542 = vmatpush1.msra.mxu0 0.0
    %543 = vmatprep.subr.mxu0 0.0
    %544 = vmatpush1.msra.mxu0 0.0
    %545 = vmatprep.subr.mxu0 0.0
    %546 = vmatpush1.msra.mxu0 0.0
    %547 = vmatprep.subr.mxu0 0.0
    %548 = vmatpush1.msra.mxu0 0.0
    %549 = vmatprep.subr.mxu0 0.0
    %550 = vmatpush1.msra.mxu0 0.0
    %551 = vmatprep.subr.mxu0 0.0
    %552 = vmatpush1.msra.mxu0 0.0
    %553 = vmatprep.subr.mxu0 0.0
    %554 = vmatpush1.msra.mxu0 %v518
    %555 = vmatprep.subr.mxu0 0.0
    %556 = vmatpush2.msra.mxu0 0.0
    %557 = vmatprep.subr.mxu0 0.0
    %558 = vmatpush2.msra.mxu0 0.0
    %559 = vmatprep.subr.mxu0 0.0
    %560 = vmatpush2.msra.mxu0 0.0
    %561 = vmatprep.subr.mxu0 0.0
    %562 = vmatpush2.msra.mxu0 0.0
    %563 = vmatprep.subr.mxu0 0.0
    %564 = vmatpush2.msra.mxu0 0.0
    %565 = vmatprep.subr.mxu0 0.0
    %566 = vmatpush2.msra.mxu0 0.0
    %567 = vmatprep.subr.mxu0 0.0
    %568 = vmatpush2.msra.mxu0 0.0
    %569 = vmatprep.subr.mxu0 0.0
    %570 = vmatpush2.msra.mxu0 0.0
    %571 = vmatprep.subr.mxu0 0.0
    %572 = vmatpush2.msra.mxu0 0.0
    %573 = vmatprep.subr.mxu0 0.0
    %574 = vmatpush2.msra.mxu0 0.0
    %575 = vmatprep.subr.mxu0 0.0
    %576 = vmatpush2.msra.mxu0 0.0
    %577 = vmatprep.subr.mxu0 0.0
    %578 = vmatpush2.msra.mxu0 0.0
    %579 = vmatprep.subr.mxu0 0.0
    %580 = vmatpush2.msra.mxu0 0.0
    %581 = vmatprep.subr.mxu0 0.0
    %582 = vmatpush2.msra.mxu0 0.0
    %583 = vmatprep.subr.mxu0 0.0
    %584 = vmatpush2.msra.mxu0 0.0
    %585 = vmatprep.subr.mxu0 0.0
    %586 = vmatpush2.msra.mxu0 0.0
    %587 = vmatprep.mubr.f32.mxu0 0.0
    %588 = vmatmul.mubr.f32.gmra.mxu0 %v521
    %v589 = vpop.f32.mrf.mxu0
    %v590 = vadd.f32 0.0, %v589
    %v591 = vpop.f32.mrf.mxu0
    %592 = vdwg.mxu0
    %593 = vrot.lane.b32.xlu0 %v324, 64
    %v594 = vpop.permute.xlu0 %593
    %v597 = vsel %vm494, %v516, 0
    %599 = vmatprep.subr.mxu0 0.0
    %600 = vmatpush1.msra.mxu0 0.0
    %601 = vmatprep.subr.mxu0 0.0
    %602 = vmatpush1.msra.mxu0 0.0
    %603 = vmatprep.subr.mxu0 0.0
    %604 = vmatpush1.msra.mxu0 0.0
    %605 = vmatprep.subr.mxu0 0.0
    %606 = vmatpush1.msra.mxu0 0.0
    %607 = vmatprep.subr.mxu0 0.0
    %608 = vmatpush1.msra.mxu0 0.0
    %609 = vmatprep.subr.mxu0 0.0
    %610 = vmatpush1.msra.mxu0 0.0
    %611 = vmatprep.subr.mxu0 0.0
    %612 = vmatpush1.msra.mxu0 0.0
    %613 = vmatprep.subr.mxu0 0.0
    %614 = vmatpush1.msra.mxu0 0.0
    %615 = vmatprep.subr.mxu0 0.0
    %616 = vmatpush1.msra.mxu0 0.0
    %617 = vmatprep.subr.mxu0 0.0
    %618 = vmatpush1.msra.mxu0 0.0
    %619 = vmatprep.subr.mxu0 0.0
    %620 = vmatpush1.msra.mxu0 0.0
    %621 = vmatprep.subr.mxu0 0.0
    %622 = vmatpush1.msra.mxu0 0.0
    %623 = vmatprep.subr.mxu0 0.0
    %624 = vmatpush1.msra.mxu0 0.0
    %625 = vmatprep.subr.mxu0 0.0
    %626 = vmatpush1.msra.mxu0 0.0
    %627 = vmatprep.subr.mxu0 0.0
    %628 = vmatpush1.msra.mxu0 0.0
    %629 = vmatprep.subr.mxu0 0.0
    %630 = vmatpush1.msra.mxu0 %v594
    %631 = vmatprep.subr.mxu0 0.0
    %632 = vmatpush2.msra.mxu0 0.0
    %633 = vmatprep.subr.mxu0 0.0
    %634 = vmatpush2.msra.mxu0 0.0
    %635 = vmatprep.subr.mxu0 0.0
    %636 = vmatpush2.msra.mxu0 0.0
    %637 = vmatprep.subr.mxu0 0.0
    %638 = vmatpush2.msra.mxu0 0.0
    %639 = vmatprep.subr.mxu0 0.0
    %640 = vmatpush2.msra.mxu0 0.0
    %641 = vmatprep.subr.mxu0 0.0
    %642 = vmatpush2.msra.mxu0 0.0
    %643 = vmatprep.subr.mxu0 0.0
    %644 = vmatpush2.msra.mxu0 0.0
    %645 = vmatprep.subr.mxu0 0.0
    %646 = vmatpush2.msra.mxu0 0.0
    %647 = vmatprep.subr.mxu0 0.0
    %648 = vmatpush2.msra.mxu0 0.0
    %649 = vmatprep.subr.mxu0 0.0
    %650 = vmatpush2.msra.mxu0 0.0
    %651 = vmatprep.subr.mxu0 0.0
    %652 = vmatpush2.msra.mxu0 0.0
    %653 = vmatprep.subr.mxu0 0.0
    %654 = vmatpush2.msra.mxu0 0.0
    %655 = vmatprep.subr.mxu0 0.0
    %656 = vmatpush2.msra.mxu0 0.0
    %657 = vmatprep.subr.mxu0 0.0
    %658 = vmatpush2.msra.mxu0 0.0
    %659 = vmatprep.subr.mxu0 0.0
    %660 = vmatpush2.msra.mxu0 0.0
    %661 = vmatprep.subr.mxu0 0.0
    %662 = vmatpush2.msra.mxu0 0.0
    %663 = vmatprep.mubr.f32.mxu0 0.0
    %664 = vmatmul.mubr.f32.gmra.mxu0 %v597
    %v665 = vpop.f32.mrf.mxu0
    %v666 = vadd.f32 0.0, %v665
    %v667 = vpop.f32.mrf.mxu0
    %668 = vdwg.mxu0
    %669 = vrot.lane.b32.xlu0 %v319, 112
    %v670 = vpop.permute.xlu0 %669
    %671 = vrot.lane.b32.xlu0 %v319, 80
    %v672 = vpop.permute.xlu0 %671
    %v673 = vsel %vm342, %v670, 0
    %v675 = vsel %vm342, %v672, 0
    %677 = vmatprep.subr.mxu0 0.0
    %678 = vmatpush1.xpose.msra.mxu0 0.0
    %679 = vmatprep.subr.mxu0 0.0
    %680 = vmatpush1.xpose.msra.mxu0 0.0
    %681 = vmatprep.subr.mxu0 0.0
    %682 = vmatpush1.xpose.msra.mxu0 0.0
    %683 = vmatprep.subr.mxu0 0.0
    %684 = vmatpush1.xpose.msra.mxu0 0.0
    %685 = vmatprep.subr.mxu0 0.0
    %686 = vmatpush1.xpose.msra.mxu0 0.0
    %687 = vmatprep.subr.mxu0 0.0
    %688 = vmatpush1.xpose.msra.mxu0 0.0
    %689 = vmatprep.subr.mxu0 0.0
    %690 = vmatpush1.xpose.msra.mxu0 0.0
    %691 = vmatprep.subr.mxu0 0.0
    %692 = vmatpush1.xpose.msra.mxu0 0.0
    %693 = vmatprep.subr.mxu0 0.0
    %694 = vmatpush1.xpose.msra.mxu0 0.0
    %695 = vmatprep.subr.mxu0 0.0
    %696 = vmatpush1.xpose.msra.mxu0 0.0
    %697 = vmatprep.subr.mxu0 0.0
    %698 = vmatpush1.xpose.msra.mxu0 0.0
    %699 = vmatprep.subr.mxu0 0.0
    %700 = vmatpush1.xpose.msra.mxu0 0.0
    %701 = vmatprep.subr.mxu0 0.0
    %702 = vmatpush1.xpose.msra.mxu0 0.0
    %703 = vmatprep.subr.mxu0 0.0
    %704 = vmatpush1.xpose.msra.mxu0 0.0
    %705 = vmatprep.subr.mxu0 0.0
    %706 = vmatpush1.xpose.msra.mxu0 0.0
    %707 = vmatprep.subr.mxu0 0.0
    %708 = vmatpush1.xpose.msra.mxu0 %v675
    %709 = vmatprep.subr.mxu0 0.0
    %710 = vmatpush2.xpose.msra.mxu0 0.0
    %711 = vmatprep.subr.mxu0 0.0
    %712 = vmatpush2.xpose.msra.mxu0 0.0
    %713 = vmatprep.subr.mxu0 0.0
    %714 = vmatpush2.xpose.msra.mxu0 0.0
    %715 = vmatprep.subr.mxu0 0.0
    %716 = vmatpush2.xpose.msra.mxu0 0.0
    %717 = vmatprep.subr.mxu0 0.0
    %718 = vmatpush2.xpose.msra.mxu0 0.0
    %719 = vmatprep.subr.mxu0 0.0
    %720 = vmatpush2.xpose.msra.mxu0 0.0
    %721 = vmatprep.subr.mxu0 0.0
    %722 = vmatpush2.xpose.msra.mxu0 0.0
    %723 = vmatprep.subr.mxu0 0.0
    %724 = vmatpush2.xpose.msra.mxu0 0.0
    %725 = vmatprep.subr.mxu0 0.0
    %726 = vmatpush2.xpose.msra.mxu0 0.0
    %727 = vmatprep.subr.mxu0 0.0
    %728 = vmatpush2.xpose.msra.mxu0 0.0
    %729 = vmatprep.subr.mxu0 0.0
    %730 = vmatpush2.xpose.msra.mxu0 0.0
    %731 = vmatprep.subr.mxu0 0.0
    %732 = vmatpush2.xpose.msra.mxu0 0.0
    %733 = vmatprep.subr.mxu0 0.0
    %734 = vmatpush2.xpose.msra.mxu0 0.0
    %735 = vmatprep.subr.mxu0 0.0
    %736 = vmatpush2.xpose.msra.mxu0 0.0
    %737 = vmatprep.subr.mxu0 0.0
    %738 = vmatpush2.xpose.msra.mxu0 0.0
    %739 = vmatprep.subr.mxu0 0.0
    %740 = vmatpush2.xpose.msra.mxu0 0.0
    %741 = vmatprep.mubr.f32.mxu0 0.0
    %742 = vmatmul.mubr.f32.gmra.mxu0 %v673
    %v743 = vpop.f32.mrf.mxu0
    %v744 = vadd.f32 %v332, %v743
    %v745 = vpop.f32.mrf.mxu0
    %746 = vdwg.mxu0
    %747 = vrot.lane.b32.xlu0 %v324, 112
    %v748 = vpop.permute.xlu0 %747
    %749 = vrot.lane.b32.xlu0 %v324, 80
    %v750 = vpop.permute.xlu0 %749
    %v751 = vsel %vm342, %v748, 0
    %v753 = vsel %vm342, %v750, 0
    %755 = vmatprep.subr.mxu0 0.0
    %756 = vmatpush1.xpose.msra.mxu0 0.0
    %757 = vmatprep.subr.mxu0 0.0
    %758 = vmatpush1.xpose.msra.mxu0 0.0
    %759 = vmatprep.subr.mxu0 0.0
    %760 = vmatpush1.xpose.msra.mxu0 0.0
    %761 = vmatprep.subr.mxu0 0.0
    %762 = vmatpush1.xpose.msra.mxu0 0.0
    %763 = vmatprep.subr.mxu0 0.0
    %764 = vmatpush1.xpose.msra.mxu0 0.0
    %765 = vmatprep.subr.mxu0 0.0
    %766 = vmatpush1.xpose.msra.mxu0 0.0
    %767 = vmatprep.subr.mxu0 0.0
    %768 = vmatpush1.xpose.msra.mxu0 0.0
    %769 = vmatprep.subr.mxu0 0.0
    %770 = vmatpush1.xpose.msra.mxu0 0.0
    %771 = vmatprep.subr.mxu0 0.0
    %772 = vmatpush1.xpose.msra.mxu0 0.0
    %773 = vmatprep.subr.mxu0 0.0
    %774 = vmatpush1.xpose.msra.mxu0 0.0
    %775 = vmatprep.subr.mxu0 0.0
    %776 = vmatpush1.xpose.msra.mxu0 0.0
    %777 = vmatprep.subr.mxu0 0.0
    %778 = vmatpush1.xpose.msra.mxu0 0.0
    %779 = vmatprep.subr.mxu0 0.0
    %780 = vmatpush1.xpose.msra.mxu0 0.0
    %781 = vmatprep.subr.mxu0 0.0
    %782 = vmatpush1.xpose.msra.mxu0 0.0
    %783 = vmatprep.subr.mxu0 0.0
    %784 = vmatpush1.xpose.msra.mxu0 0.0
    %785 = vmatprep.subr.mxu0 0.0
    %786 = vmatpush1.xpose.msra.mxu0 %v753
    %787 = vmatprep.subr.mxu0 0.0
    %788 = vmatpush2.xpose.msra.mxu0 0.0
    %789 = vmatprep.subr.mxu0 0.0
    %790 = vmatpush2.xpose.msra.mxu0 0.0
    %791 = vmatprep.subr.mxu0 0.0
    %792 = vmatpush2.xpose.msra.mxu0 0.0
    %793 = vmatprep.subr.mxu0 0.0
    %794 = vmatpush2.xpose.msra.mxu0 0.0
    %795 = vmatprep.subr.mxu0 0.0
    %796 = vmatpush2.xpose.msra.mxu0 0.0
    %797 = vmatprep.subr.mxu0 0.0
    %798 = vmatpush2.xpose.msra.mxu0 0.0
    %799 = vmatprep.subr.mxu0 0.0
    %800 = vmatpush2.xpose.msra.mxu0 0.0
    %801 = vmatprep.subr.mxu0 0.0
    %802 = vmatpush2.xpose.msra.mxu0 0.0
    %803 = vmatprep.subr.mxu0 0.0
    %804 = vmatpush2.xpose.msra.mxu0 0.0
    %805 = vmatprep.subr.mxu0 0.0
    %806 = vmatpush2.xpose.msra.mxu0 0.0
    %807 = vmatprep.subr.mxu0 0.0
    %808 = vmatpush2.xpose.msra.mxu0 0.0
    %809 = vmatprep.subr.mxu0 0.0
    %810 = vmatpush2.xpose.msra.mxu0 0.0
    %811 = vmatprep.subr.mxu0 0.0
    %812 = vmatpush2.xpose.msra.mxu0 0.0
    %813 = vmatprep.subr.mxu0 0.0
    %814 = vmatpush2.xpose.msra.mxu0 0.0
    %815 = vmatprep.subr.mxu0 0.0
    %816 = vmatpush2.xpose.msra.mxu0 0.0
    %817 = vmatprep.subr.mxu0 0.0
    %818 = vmatpush2.xpose.msra.mxu0 0.0
    %819 = vmatprep.mubr.f32.mxu0 0.0
    %820 = vmatmul.mubr.f32.gmra.mxu0 %v751
    %v821 = vpop.f32.mrf.mxu0
    %v822 = vadd.f32 %v336, %v821
    %v823 = vpop.f32.mrf.mxu0
    %824 = vdwg.mxu0
    %v825 = vsel %vm494, %v744, -inf
    %826 = vmax.xlane.f32.xlu0 %v825
    %v827 = vpop.xlane.xlu0 %826
    %v828 = vsel %vm494, %v822, -inf
    %829 = vmax.xlane.f32.xlu0 %v828
    %v830 = vpop.xlane.xlu0 %829
    %v831 = vsub.f32 %v744, %v827
    %v832 = vsub.f32 %v822, %v830
    %v833 = vmul.f32 %v831, 1.442695
    %v834 = vpow.pop %v833
    %v835 = vmul.f32 %v832, 1.442695
    %v836 = vpow.pop %v835
    %v837 = vsel %vm494, %v834, 0.0
    %838 = vadd.xlane.f32.xlu0 %v837
    %v839 = vpop.xlane.xlu0 %838
    %v840 = vsel %vm494, %v836, 0.0
    %841 = vadd.xlane.f32.xlu0 %v840
    %v842 = vpop.xlane.xlu0 %841
    %v843 = vrcp.pop %v839
    %v844 = vrcp.pop %v842
    %v845 = vmul.f32 %v834, %v843
    %v846 = vmul.f32 %v836, %v844
    %847 = vrot.lane.b32.xlu0 %v319, 48
    %v848 = vpop.permute.xlu0 %847
    %v851 = vsel %vm494, %v845, 0
    %853 = vmatprep.subr.mxu0 0.0
    %854 = vmatpush1.msra.mxu0 0.0
    %855 = vmatprep.subr.mxu0 0.0
    %856 = vmatpush1.msra.mxu0 0.0
    %857 = vmatprep.subr.mxu0 0.0
    %858 = vmatpush1.msra.mxu0 0.0
    %859 = vmatprep.subr.mxu0 0.0
    %860 = vmatpush1.msra.mxu0 0.0
    %861 = vmatprep.subr.mxu0 0.0
    %862 = vmatpush1.msra.mxu0 0.0
    %863 = vmatprep.subr.mxu0 0.0
    %864 = vmatpush1.msra.mxu0 0.0
    %865 = vmatprep.subr.mxu0 0.0
    %866 = vmatpush1.msra.mxu0 0.0
    %867 = vmatprep.subr.mxu0 0.0
    %868 = vmatpush1.msra.mxu0 0.0
    %869 = vmatprep.subr.mxu0 0.0
    %870 = vmatpush1.msra.mxu0 0.0
    %871 = vmatprep.subr.mxu0 0.0
    %872 = vmatpush1.msra.mxu0 0.0
    %873 = vmatprep.subr.mxu0 0.0
    %874 = vmatpush1.msra.mxu0 0.0
    %875 = vmatprep.subr.mxu0 0.0
    %876 = vmatpush1.msra.mxu0 0.0
    %877 = vmatprep.subr.mxu0 0.0
    %878 = vmatpush1.msra.mxu0 0.0
    %879 = vmatprep.subr.mxu0 0.0
    %880 = vmatpush1.msra.mxu0 0.0
    %881 = vmatprep.subr.mxu0 0.0
    %882 = vmatpush1.msra.mxu0 0.0
    %883 = vmatprep.subr.mxu0 0.0
    %884 = vmatpush1.msra.mxu0 %v848
    %885 = vmatprep.subr.mxu0 0.0
    %886 = vmatpush2.msra.mxu0 0.0
    %887 = vmatprep.subr.mxu0 0.0
    %888 = vmatpush2.msra.mxu0 0.0
    %889 = vmatprep.subr.mxu0 0.0
    %890 = vmatpush2.msra.mxu0 0.0
    %891 = vmatprep.subr.mxu0 0.0
    %892 = vmatpush2.msra.mxu0 0.0
    %893 = vmatprep.subr.mxu0 0.0
    %894 = vmatpush2.msra.mxu0 0.0
    %895 = vmatprep.subr.mxu0 0.0
    %896 = vmatpush2.msra.mxu0 0.0
    %897 = vmatprep.subr.mxu0 0.0
    %898 = vmatpush2.msra.mxu0 0.0
    %899 = vmatprep.subr.mxu0 0.0
    %900 = vmatpush2.msra.mxu0 0.0
    %901 = vmatprep.subr.mxu0 0.0
    %902 = vmatpush2.msra.mxu0 0.0
    %903 = vmatprep.subr.mxu0 0.0
    %904 = vmatpush2.msra.mxu0 0.0
    %905 = vmatprep.subr.mxu0 0.0
    %906 = vmatpush2.msra.mxu0 0.0
    %907 = vmatprep.subr.mxu0 0.0
    %908 = vmatpush2.msra.mxu0 0.0
    %909 = vmatprep.subr.mxu0 0.0
    %910 = vmatpush2.msra.mxu0 0.0
    %911 = vmatprep.subr.mxu0 0.0
    %912 = vmatpush2.msra.mxu0 0.0
    %913 = vmatprep.subr.mxu0 0.0
    %914 = vmatpush2.msra.mxu0 0.0
    %915 = vmatprep.subr.mxu0 0.0
    %916 = vmatpush2.msra.mxu0 0.0
    %917 = vmatprep.mubr.f32.mxu0 0.0
    %918 = vmatmul.mubr.f32.gmra.mxu0 %v851
    %v919 = vpop.f32.mrf.mxu0
    %v920 = vadd.f32 0.0, %v919
    %v921 = vpop.f32.mrf.mxu0
    %922 = vdwg.mxu0
    %923 = vrot.lane.b32.xlu0 %v324, 48
    %v924 = vpop.permute.xlu0 %923
    %v927 = vsel %vm494, %v846, 0
    %929 = vmatprep.subr.mxu0 0.0
    %930 = vmatpush1.msra.mxu0 0.0
    %931 = vmatprep.subr.mxu0 0.0
    %932 = vmatpush1.msra.mxu0 0.0
    %933 = vmatprep.subr.mxu0 0.0
    %934 = vmatpush1.msra.mxu0 0.0
    %935 = vmatprep.subr.mxu0 0.0
    %936 = vmatpush1.msra.mxu0 0.0
    %937 = vmatprep.subr.mxu0 0.0
    %938 = vmatpush1.msra.mxu0 0.0
    %939 = vmatprep.subr.mxu0 0.0
    %940 = vmatpush1.msra.mxu0 0.0
    %941 = vmatprep.subr.mxu0 0.0
    %942 = vmatpush1.msra.mxu0 0.0
    %943 = vmatprep.subr.mxu0 0.0
    %944 = vmatpush1.msra.mxu0 0.0
    %945 = vmatprep.subr.mxu0 0.0
    %946 = vmatpush1.msra.mxu0 0.0
    %947 = vmatprep.subr.mxu0 0.0
    %948 = vmatpush1.msra.mxu0 0.0
    %949 = vmatprep.subr.mxu0 0.0
    %950 = vmatpush1.msra.mxu0 0.0
    %951 = vmatprep.subr.mxu0 0.0
    %952 = vmatpush1.msra.mxu0 0.0
    %953 = vmatprep.subr.mxu0 0.0
    %954 = vmatpush1.msra.mxu0 0.0
    %955 = vmatprep.subr.mxu0 0.0
    %956 = vmatpush1.msra.mxu0 0.0
    %957 = vmatprep.subr.mxu0 0.0
    %958 = vmatpush1.msra.mxu0 0.0
    %959 = vmatprep.subr.mxu0 0.0
    %960 = vmatpush1.msra.mxu0 %v924
    %961 = vmatprep.subr.mxu0 0.0
    %962 = vmatpush2.msra.mxu0 0.0
    %963 = vmatprep.subr.mxu0 0.0
    %964 = vmatpush2.msra.mxu0 0.0
    %965 = vmatprep.subr.mxu0 0.0
    %966 = vmatpush2.msra.mxu0 0.0
    %967 = vmatprep.subr.mxu0 0.0
    %968 = vmatpush2.msra.mxu0 0.0
    %969 = vmatprep.subr.mxu0 0.0
    %970 = vmatpush2.msra.mxu0 0.0
    %971 = vmatprep.subr.mxu0 0.0
    %972 = vmatpush2.msra.mxu0 0.0
    %973 = vmatprep.subr.mxu0 0.0
    %974 = vmatpush2.msra.mxu0 0.0
    %975 = vmatprep.subr.mxu0 0.0
    %976 = vmatpush2.msra.mxu0 0.0
    %977 = vmatprep.subr.mxu0 0.0
    %978 = vmatpush2.msra.mxu0 0.0
    %979 = vmatprep.subr.mxu0 0.0
    %980 = vmatpush2.msra.mxu0 0.0
    %981 = vmatprep.subr.mxu0 0.0
    %982 = vmatpush2.msra.mxu0 0.0
    %983 = vmatprep.subr.mxu0 0.0
    %984 = vmatpush2.msra.mxu0 0.0
    %985 = vmatprep.subr.mxu0 0.0
    %986 = vmatpush2.msra.mxu0 0.0
    %987 = vmatprep.subr.mxu0 0.0
    %988 = vmatpush2.msra.mxu0 0.0
    %989 = vmatprep.subr.mxu0 0.0
    %990 = vmatpush2.msra.mxu0 0.0
    %991 = vmatprep.subr.mxu0 0.0
    %992 = vmatpush2.msra.mxu0 0.0
    %993 = vmatprep.mubr.f32.mxu0 0.0
    %994 = vmatmul.mubr.f32.gmra.mxu0 %v927
    %v995 = vpop.f32.mrf.mxu0
    %v996 = vadd.f32 0.0, %v995
    %v997 = vpop.f32.mrf.mxu0
    %998 = vdwg.mxu0
    %1001 = vrot.lane.b32.xlu0 %v920, 16
    %v1002 = vpop.permute.xlu0 %1001
    %1003 = vrot.lane.b32.xlu0 %v996, 16
    %v1004 = vpop.permute.xlu0 %1003
    %v1007 = vsel %vm342, %v590, %v1002
    %v1008 = vsel %vm342, %v666, %v1004
    %v1009 = vld [vmem:[%s9] sm:$0xff]
    %v1010 = vld [vmem:[%s9 + $0x8] sm:$0xff]
    %v1011 = vld [vmem:[%s9 + $0x10] sm:$0xff]
    %v1012 = vld [vmem:[%s9 + $0x18] sm:$0xff]
    %v1013 = vld [vmem:[%s10] sm:$0x1]
    %v1015 = vlaneseq
    %v1016 = vshrl.u32 %v1015, 7
    %v1017 = vsub.s32 0, %v1016
    %v1018 = vrot.slane %v1013, %v1017
    %v1021 = vsel %vm185, %v1007, 0
    %v1024 = vsel %vm185, %v1008, 0
    %1026 = vmatprep.subr.mxu0 0.0
    %1027 = vmatpush1.msra.mxu0 0.0
    %1028 = vmatprep.subr.mxu0 0.0
    %1029 = vmatpush1.msra.mxu0 0.0
    %1030 = vmatprep.subr.mxu0 0.0
    %1031 = vmatpush1.msra.mxu0 0.0
    %1032 = vmatprep.subr.mxu0 0.0
    %1033 = vmatpush1.msra.mxu0 0.0
    %1034 = vmatprep.subr.mxu0 0.0
    %1035 = vmatpush1.msra.mxu0 0.0
    %1036 = vmatprep.subr.mxu0 0.0
    %1037 = vmatpush1.msra.mxu0 0.0
    %1038 = vmatprep.subr.mxu0 0.0
    %1039 = vmatpush1.msra.mxu0 0.0
    %1040 = vmatprep.subr.mxu0 0.0
    %1041 = vmatpush1.msra.mxu0 0.0
    %1042 = vmatprep.subr.mxu0 0.0
    %1043 = vmatpush1.msra.mxu0 0.0
    %1044 = vmatprep.subr.mxu0 0.0
    %1045 = vmatpush1.msra.mxu0 0.0
    %1046 = vmatprep.subr.mxu0 0.0
    %1047 = vmatpush1.msra.mxu0 0.0
    %1048 = vmatprep.subr.mxu0 0.0
    %1049 = vmatpush1.msra.mxu0 0.0
    %1050 = vmatprep.subr.mxu0 0.0
    %1051 = vmatpush1.msra.mxu0 %v1012
    %1052 = vmatprep.subr.mxu0 0.0
    %1053 = vmatpush1.msra.mxu0 %v1011
    %1054 = vmatprep.subr.mxu0 0.0
    %1055 = vmatpush1.msra.mxu0 %v1010
    %1056 = vmatprep.subr.mxu0 0.0
    %1057 = vmatpush1.msra.mxu0 %v1009
    %1058 = vmatprep.subr.mxu0 0.0
    %1059 = vmatpush2.msra.mxu0 0.0
    %1060 = vmatprep.subr.mxu0 0.0
    %1061 = vmatpush2.msra.mxu0 0.0
    %1062 = vmatprep.subr.mxu0 0.0
    %1063 = vmatpush2.msra.mxu0 0.0
    %1064 = vmatprep.subr.mxu0 0.0
    %1065 = vmatpush2.msra.mxu0 0.0
    %1066 = vmatprep.subr.mxu0 0.0
    %1067 = vmatpush2.msra.mxu0 0.0
    %1068 = vmatprep.subr.mxu0 0.0
    %1069 = vmatpush2.msra.mxu0 0.0
    %1070 = vmatprep.subr.mxu0 0.0
    %1071 = vmatpush2.msra.mxu0 0.0
    %1072 = vmatprep.subr.mxu0 0.0
    %1073 = vmatpush2.msra.mxu0 0.0
    %1074 = vmatprep.subr.mxu0 0.0
    %1075 = vmatpush2.msra.mxu0 0.0
    %1076 = vmatprep.subr.mxu0 0.0
    %1077 = vmatpush2.msra.mxu0 0.0
    %1078 = vmatprep.subr.mxu0 0.0
    %1079 = vmatpush2.msra.mxu0 0.0
    %1080 = vmatprep.subr.mxu0 0.0
    %1081 = vmatpush2.msra.mxu0 0.0
    %1082 = vmatprep.subr.mxu0 0.0
    %1083 = vmatpush2.msra.mxu0 0.0
    %1084 = vmatprep.subr.mxu0 0.0
    %1085 = vmatpush2.msra.mxu0 0.0
    %1086 = vmatprep.subr.mxu0 0.0
    %1087 = vmatpush2.msra.mxu0 0.0
    %1088 = vmatprep.subr.mxu0 0.0
    %1089 = vmatpush2.msra.mxu0 0.0
    %1090 = vmatprep.mubr.f32.mxu0 0.0
    %1091 = vmatmul.mubr.f32.gmra.mxu0 %v1021
    %v1092 = vpop.f32.mrf.mxu0
    %v1093 = vadd.f32 %v1018, %v1092
    %v1094 = vpop.f32.mrf.mxu0
    %1095 = vmatprep.mubr.f32.mxu0 0.0
    %1096 = vmatmul.mubr.f32.gmra.mxu0 %v1024
    %v1097 = vpop.f32.mrf.mxu0
    %v1098 = vadd.f32 %v1018, %v1097
    %v1099 = vpop.f32.mrf.mxu0
    %1100 = vdwg.mxu0
    %v1101 = vadd.f32 %v227, %v1093
    %v1102 = vadd.f32 %v228, %v1098
    %v1103 = vld [vmem:[%s11] sm:$0x1]
    %v1104 = vld [vmem:[%s12] sm:$0x1]
    %v1105 = vsel %vm185, %v1101, 0.0
    %1106 = vadd.xlane.f32.xlu0 %v1105
    %v1107 = vpop.xlane.xlu0 %1106
    %v1108 = vsel %vm185, %v1102, 0.0
    %1109 = vadd.xlane.f32.xlu0 %v1108
    %v1110 = vpop.xlane.xlu0 %1109
    %v1111 = vmul.f32 %v1107, %v192
    %v1112 = vmul.f32 %v1110, %v192
    %v1113 = vsub.f32 %v1101, %v1111
    %v1114 = vsub.f32 %v1102, %v1112
    %v1115 = vmul.f32 %v1113, %v1113
    %v1116 = vmul.f32 %v1114, %v1114
    %v1117 = vsel %vm185, %v1115, 0.0
    %1118 = vadd.xlane.f32.xlu0 %v1117
    %v1119 = vpop.xlane.xlu0 %1118
    %v1120 = vsel %vm185, %v1116, 0.0
    %1121 = vadd.xlane.f32.xlu0 %v1120
    %v1122 = vpop.xlane.xlu0 %1121
    %v1123 = vmul.f32 %v1119, %v192
    %v1124 = vmul.f32 %v1122, %v192
    %v1125 = vadd.f32 %v1123, 1e-12
    %v1126 = vadd.f32 %v1124, 1e-12
    %v1127 = vrsqrt.pop %v1125
    %v1128 = vrsqrt.pop %v1126
    %v1129 = vmul.f32 %v1113, %v1127
    %v1130 = vmul.f32 %v1114, %v1128
    %v1132 = vlaneseq
    %v1133 = vshrl.u32 %v1132, 7
    %v1134 = vsub.s32 0, %v1133
    %v1135 = vrot.slane %v1103, %v1134
    %v1137 = vmul.f32 %v1129, %v1135
    %v1138 = vmul.f32 %v1130, %v1135
    %v1140 = vlaneseq
    %v1141 = vshrl.u32 %v1140, 7
    %v1142 = vsub.s32 0, %v1141
    %v1143 = vrot.slane %v1104, %v1142
    %v1145 = vadd.f32 %v1137, %v1143
    %v1146 = vadd.f32 %v1138, %v1143
    %v1147 = vld [vmem:[%s13] sm:$0xff]
    %v1148 = vld [vmem:[%s13 + $0x8] sm:$0xff]
    %v1149 = vld [vmem:[%s13 + $0x10] sm:$0xff]
    %v1150 = vld [vmem:[%s13 + $0x18] sm:$0xff]
    %v1151 = vld [vmem:[%s14] sm:$0x1]
    %v1153 = vlaneseq
    %v1154 = vshrl.u32 %v1153, 7
    %v1155 = vsub.s32 0, %v1154
    %v1156 = vrot.slane %v1151, %v1155
    %v1159 = vsel %vm185, %v1145, 0
    %v1162 = vsel %vm185, %v1146, 0
    %1164 = vmatprep.subr.mxu0 0.0
    %1165 = vmatpush1.msra.mxu0 0.0
    %1166 = vmatprep.subr.mxu0 0.0
    %1167 = vmatpush1.msra.mxu0 0.0
    %1168 = vmatprep.subr.mxu0 0.0
    %1169 = vmatpush1.msra.mxu0 0.0
    %1170 = vmatprep.subr.mxu0 0.0
    %1171 = vmatpush1.msra.mxu0 0.0
    %1172 = vmatprep.subr.mxu0 0.0
    %1173 = vmatpush1.msra.mxu0 0.0
    %1174 = vmatprep.subr.mxu0 0.0
    %1175 = vmatpush1.msra.mxu0 0.0
    %1176 = vmatprep.subr.mxu0 0.0
    %1177 = vmatpush1.msra.mxu0 0.0
    %1178 = vmatprep.subr.mxu0 0.0
    %1179 = vmatpush1.msra.mxu0 0.0
    %1180 = vmatprep.subr.mxu0 0.0
    %1181 = vmatpush1.msra.mxu0 0.0
    %1182 = vmatprep.subr.mxu0 0.0
    %1183 = vmatpush1.msra.mxu0 0.0
    %1184 = vmatprep.subr.mxu0 0.0
    %1185 = vmatpush1.msra.mxu0 0.0
    %1186 = vmatprep.subr.mxu0 0.0
    %1187 = vmatpush1.msra.mxu0 0.0
    %1188 = vmatprep.subr.mxu0 0.0
    %1189 = vmatpush1.msra.mxu0 %v1150
    %1190 = vmatprep.subr.mxu0 0.0
    %1191 = vmatpush1.msra.mxu0 %v1149
    %1192 = vmatprep.subr.mxu0 0.0
    %1193 = vmatpush1.msra.mxu0 %v1148
    %1194 = vmatprep.subr.mxu0 0.0
    %1195 = vmatpush1.msra.mxu0 %v1147
    %1196 = vmatprep.subr.mxu0 0.0
    %1197 = vmatpush2.msra.mxu0 0.0
    %1198 = vmatprep.subr.mxu0 0.0
    %1199 = vmatpush2.msra.mxu0 0.0
    %1200 = vmatprep.subr.mxu0 0.0
    %1201 = vmatpush2.msra.mxu0 0.0
    %1202 = vmatprep.subr.mxu0 0.0
    %1203 = vmatpush2.msra.mxu0 0.0
    %1204 = vmatprep.subr.mxu0 0.0
    %1205 = vmatpush2.msra.mxu0 0.0
    %1206 = vmatprep.subr.mxu0 0.0
    %1207 = vmatpush2.msra.mxu0 0.0
    %1208 = vmatprep.subr.mxu0 0.0
    %1209 = vmatpush2.msra.mxu0 0.0
    %1210 = vmatprep.subr.mxu0 0.0
    %1211 = vmatpush2.msra.mxu0 0.0
    %1212 = vmatprep.subr.mxu0 0.0
    %1213 = vmatpush2.msra.mxu0 0.0
    %1214 = vmatprep.subr.mxu0 0.0
    %1215 = vmatpush2.msra.mxu0 0.0
    %1216 = vmatprep.subr.mxu0 0.0
    %1217 = vmatpush2.msra.mxu0 0.0
    %1218 = vmatprep.subr.mxu0 0.0
    %1219 = vmatpush2.msra.mxu0 0.0
    %1220 = vmatprep.subr.mxu0 0.0
    %1221 = vmatpush2.msra.mxu0 0.0
    %1222 = vmatprep.subr.mxu0 0.0
    %1223 = vmatpush2.msra.mxu0 0.0
    %1224 = vmatprep.subr.mxu0 0.0
    %1225 = vmatpush2.msra.mxu0 0.0
    %1226 = vmatprep.subr.mxu0 0.0
    %1227 = vmatpush2.msra.mxu0 0.0
    %1228 = vmatprep.mubr.f32.mxu0 0.0
    %1229 = vmatmul.mubr.f32.gmra.mxu0 %v1159
    %v1230 = vpop.f32.mrf.mxu0
    %v1231 = vadd.f32 %v1156, %v1230
    %v1232 = vpop.f32.mrf.mxu0
    %1233 = vmatprep.mubr.f32.mxu0 0.0
    %1234 = vmatmul.mubr.f32.gmra.mxu0 %v1162
    %v1235 = vpop.f32.mrf.mxu0
    %v1236 = vadd.f32 %v1156, %v1235
    %v1237 = vpop.f32.mrf.mxu0
    %1238 = vdwg.mxu0
    %v1239 = vmul.f32 %v1231, 0.5
    %v1240 = vmul.f32 %v1236, 0.5
    %v1241 = vmul.f32 %v1231, 0.044715
    %v1242 = vmul.f32 %v1236, 0.044715
    %v1243 = vmul.f32 %v1241, %v1231
    %v1244 = vmul.f32 %v1242, %v1236
    %v1245 = vmul.f32 %v1243, %v1231
    %v1246 = vmul.f32 %v1244, %v1236
    %v1247 = vadd.f32 %v1231, %v1245
    %v1248 = vadd.f32 %v1236, %v1246
    %v1249 = vmul.f32 %v1247, 0.7978846
    %v1250 = vmul.f32 %v1248, 0.7978846
    %v1251 = vtanh.pop %v1249
    %v1252 = vtanh.pop %v1250
    %v1253 = vadd.f32 %v1251, 1.0
    %v1254 = vadd.f32 %v1252, 1.0
    %v1255 = vmul.f32 %v1239, %v1253
    %v1256 = vmul.f32 %v1240, %v1254
    %v1257 = vld [vmem:[%s15] sm:$0xff]
    %v1258 = vld [vmem:[%s15 + $0x8] sm:$0xff]
    %v1259 = vld [vmem:[%s15 + $0x10] sm:$0xff]
    %v1260 = vld [vmem:[%s15 + $0x18] sm:$0xff]
    %v1261 = vld [vmem:[%s15 + $0x20] sm:$0xff]
    %v1262 = vld [vmem:[%s15 + $0x28] sm:$0xff]
    %v1263 = vld [vmem:[%s15 + $0x30] sm:$0xff]
    %v1264 = vld [vmem:[%s15 + $0x38] sm:$0xff]
    %v1265 = vld [vmem:[%s16] sm:$0x1]
    %v1267 = vlaneseq
    %v1268 = vshrl.u32 %v1267, 7
    %v1269 = vsub.s32 0, %v1268
    %v1270 = vrot.slane %v1265, %v1269
    %vm1272 = vcmask 523264
    %v1274 = vsel %vm1272, %v1255, 0
    %v1277 = vsel %vm1272, %v1256, 0
    %1279 = vmatprep.subr.mxu0 0.0
    %1280 = vmatpush1.msra.mxu0 0.0
    %1281 = vmatprep.subr.mxu0 0.0
    %1282 = vmatpush1.msra.mxu0 0.0
    %1283 = vmatprep.subr.mxu0 0.0
    %1284 = vmatpush1.msra.mxu0 0.0
    %1285 = vmatprep.subr.mxu0 0.0
    %1286 = vmatpush1.msra.mxu0 0.0
    %1287 = vmatprep.subr.mxu0 0.0
    %1288 = vmatpush1.msra.mxu0 0.0
    %1289 = vmatprep.subr.mxu0 0.0
    %1290 = vmatpush1.msra.mxu0 0.0
    %1291 = vmatprep.subr.mxu0 0.0
    %1292 = vmatpush1.msra.mxu0 0.0
    %1293 = vmatprep.subr.mxu0 0.0
    %1294 = vmatpush1.msra.mxu0 0.0
    %1295 = vmatprep.subr.mxu0 0.0
    %1296 = vmatpush1.msra.mxu0 %v1264
    %1297 = vmatprep.subr.mxu0 0.0
    %1298 = vmatpush1.msra.mxu0 %v1263
    %1299 = vmatprep.subr.mxu0 0.0
    %1300 = vmatpush1.msra.mxu0 %v1262
    %1301 = vmatprep.subr.mxu0 0.0
    %1302 = vmatpush1.msra.mxu0 %v1261
    %1303 = vmatprep.subr.mxu0 0.0
    %1304 = vmatpush1.msra.mxu0 %v1260
    %1305 = vmatprep.subr.mxu0 0.0
    %1306 = vmatpush1.msra.mxu0 %v1259
    %1307 = vmatprep.subr.mxu0 0.0
    %1308 = vmatpush1.msra.mxu0 %v1258
    %1309 = vmatprep.subr.mxu0 0.0
    %1310 = vmatpush1.msra.mxu0 %v1257
    %1311 = vmatprep.subr.mxu0 0.0
    %1312 = vmatpush2.msra.mxu0 0.0
    %1313 = vmatprep.subr.mxu0 0.0
    %1314 = vmatpush2.msra.mxu0 0.0
    %1315 = vmatprep.subr.mxu0 0.0
    %1316 = vmatpush2.msra.mxu0 0.0
    %1317 = vmatprep.subr.mxu0 0.0
    %1318 = vmatpush2.msra.mxu0 0.0
    %1319 = vmatprep.subr.mxu0 0.0
    %1320 = vmatpush2.msra.mxu0 0.0
    %1321 = vmatprep.subr.mxu0 0.0
    %1322 = vmatpush2.msra.mxu0 0.0
    %1323 = vmatprep.subr.mxu0 0.0
    %1324 = vmatpush2.msra.mxu0 0.0
    %1325 = vmatprep.subr.mxu0 0.0
    %1326 = vmatpush2.msra.mxu0 0.0
    %1327 = vmatprep.subr.mxu0 0.0
    %1328 = vmatpush2.msra.mxu0 0.0
    %1329 = vmatprep.subr.mxu0 0.0
    %1330 = vmatpush2.msra.mxu0 0.0
    %1331 = vmatprep.subr.mxu0 0.0
    %1332 = vmatpush2.msra.mxu0 0.0
    %1333 = vmatprep.subr.mxu0 0.0
    %1334 = vmatpush2.msra.mxu0 0.0
    %1335 = vmatprep.subr.mxu0 0.0
    %1336 = vmatpush2.msra.mxu0 0.0
    %1337 = vmatprep.subr.mxu0 0.0
    %1338 = vmatpush2.msra.mxu0 0.0
    %1339 = vmatprep.subr.mxu0 0.0
    %1340 = vmatpush2.msra.mxu0 0.0
    %1341 = vmatprep.subr.mxu0 0.0
    %1342 = vmatpush2.msra.mxu0 0.0
    %1343 = vmatprep.mubr.f32.mxu0 0.0
    %1344 = vmatmul.mubr.f32.gmra.mxu0 %v1274
    %v1345 = vpop.f32.mrf.mxu0
    %v1346 = vadd.f32 %v1270, %v1345
    %v1347 = vpop.f32.mrf.mxu0
    %1348 = vmatprep.mubr.f32.mxu0 0.0
    %1349 = vmatmul.mubr.f32.gmra.mxu0 %v1277
    %v1350 = vpop.f32.mrf.mxu0
    %v1351 = vadd.f32 %v1270, %v1350
    %v1352 = vpop.f32.mrf.mxu0
    %1353 = vdwg.mxu0
    %v1354 = vadd.f32 %v1145, %v1346
    %v1355 = vadd.f32 %v1146, %v1351
    %v1356 = vld [vmem:[%s17] sm:$0x1]
    %v1357 = vld [vmem:[%s18] sm:$0x1]
    %v1358 = vsel %vm185, %v1354, 0.0
    %1359 = vadd.xlane.f32.xlu0 %v1358
    %v1360 = vpop.xlane.xlu0 %1359
    %v1361 = vsel %vm185, %v1355, 0.0
    %1362 = vadd.xlane.f32.xlu0 %v1361
    %v1363 = vpop.xlane.xlu0 %1362
    %v1364 = vmul.f32 %v1360, %v192
    %v1365 = vmul.f32 %v1363, %v192
    %v1366 = vsub.f32 %v1354, %v1364
    %v1367 = vsub.f32 %v1355, %v1365
    %v1368 = vmul.f32 %v1366, %v1366
    %v1369 = vmul.f32 %v1367, %v1367
    %v1370 = vsel %vm185, %v1368, 0.0
    %1371 = vadd.xlane.f32.xlu0 %v1370
    %v1372 = vpop.xlane.xlu0 %1371
    %v1373 = vsel %vm185, %v1369, 0.0
    %1374 = vadd.xlane.f32.xlu0 %v1373
    %v1375 = vpop.xlane.xlu0 %1374
    %v1376 = vmul.f32 %v1372, %v192
    %v1377 = vmul.f32 %v1375, %v192
    %v1378 = vadd.f32 %v1376, 1e-12
    %v1379 = vadd.f32 %v1377, 1e-12
    %v1380 = vrsqrt.pop %v1378
    %v1381 = vrsqrt.pop %v1379
    %v1382 = vmul.f32 %v1366, %v1380
    %v1383 = vmul.f32 %v1367, %v1381
    %v1385 = vlaneseq
    %v1386 = vshrl.u32 %v1385, 7
    %v1387 = vsub.s32 0, %v1386
    %v1388 = vrot.slane %v1356, %v1387
    %v1390 = vmul.f32 %v1382, %v1388
    %v1391 = vmul.f32 %v1383, %v1388
    %v1393 = vlaneseq
    %v1394 = vshrl.u32 %v1393, 7
    %v1395 = vsub.s32 0, %v1394
    %v1396 = vrot.slane %v1357, %v1395
    %v1398 = vadd.f32 %v1390, %v1396
    %v1399 = vadd.f32 %v1391, %v1396
    %s1400 = scalar_lea.vmem %s7, 32
    %v1401 = vld [vmem:[%s1400] sm:$0xff]
    %v1402 = vld [vmem:[%s1400 + $0x8] sm:$0xff]
    %v1403 = vld [vmem:[%s1400 + $0x10] sm:$0xff]
    %v1404 = vld [vmem:[%s1400 + $0x18] sm:$0xff]
    %s1405 = scalar_lea.vmem %s8, 1
    %v1406 = vld [vmem:[%s1405] sm:$0x1]
    %v1408 = vlaneseq
    %v1409 = vshrl.u32 %v1408, 7
    %v1410 = vsub.s32 0, %v1409
    %v1411 = vrot.slane %v1406, %v1410
    %v1414 = vsel %vm185, %v1398, 0
    %v1417 = vsel %vm185, %v1399, 0
    %1419 = vmatprep.subr.mxu0 0.0
    %1420 = vmatpush1.msra.mxu0 0.0
    %1421 = vmatprep.subr.mxu0 0.0
    %1422 = vmatpush1.msra.mxu0 0.0
    %1423 = vmatprep.subr.mxu0 0.0
    %1424 = vmatpush1.msra.mxu0 0.0
    %1425 = vmatprep.subr.mxu0 0.0
    %1426 = vmatpush1.msra.mxu0 0.0
    %1427 = vmatprep.subr.mxu0 0.0
    %1428 = vmatpush1.msra.mxu0 0.0
    %1429 = vmatprep.subr.mxu0 0.0
    %1430 = vmatpush1.msra.mxu0 0.0
    %1431 = vmatprep.subr.mxu0 0.0
    %1432 = vmatpush1.msra.mxu0 0.0
    %1433 = vmatprep.subr.mxu0 0.0
    %1434 = vmatpush1.msra.mxu0 0.0
    %1435 = vmatprep.subr.mxu0 0.0
    %1436 = vmatpush1.msra.mxu0 0.0
    %1437 = vmatprep.subr.mxu0 0.0
    %1438 = vmatpush1.msra.mxu0 0.0
    %1439 = vmatprep.subr.mxu0 0.0
    %1440 = vmatpush1.msra.mxu0 0.0
    %1441 = vmatprep.subr.mxu0 0.0
    %1442 = vmatpush1.msra.mxu0 0.0
    %1443 = vmatprep.subr.mxu0 0.0
    %1444 = vmatpush1.msra.mxu0 %v1404
    %1445 = vmatprep.subr.mxu0 0.0
    %1446 = vmatpush1.msra.mxu0 %v1403
    %1447 = vmatprep.subr.mxu0 0.0
    %1448 = vmatpush1.msra.mxu0 %v1402
    %1449 = vmatprep.subr.mxu0 0.0
    %1450 = vmatpush1.msra.mxu0 %v1401
    %1451 = vmatprep.subr.mxu0 0.0
    %1452 = vmatpush2.msra.mxu0 0.0
    %1453 = vmatprep.subr.mxu0 0.0
    %1454 = vmatpush2.msra.mxu0 0.0
    %1455 = vmatprep.subr.mxu0 0.0
    %1456 = vmatpush2.msra.mxu0 0.0
    %1457 = vmatprep.subr.mxu0 0.0
    %1458 = vmatpush2.msra.mxu0 0.0
    %1459 = vmatprep.subr.mxu0 0.0
    %1460 = vmatpush2.msra.mxu0 0.0
    %1461 = vmatprep.subr.mxu0 0.0
    %1462 = vmatpush2.msra.mxu0 0.0
    %1463 = vmatprep.subr.mxu0 0.0
    %1464 = vmatpush2.msra.mxu0 0.0
    %1465 = vmatprep.subr.mxu0 0.0
    %1466 = vmatpush2.msra.mxu0 0.0
    %1467 = vmatprep.subr.mxu0 0.0
    %1468 = vmatpush2.msra.mxu0 0.0
    %1469 = vmatprep.subr.mxu0 0.0
    %1470 = vmatpush2.msra.mxu0 0.0
    %1471 = vmatprep.subr.mxu0 0.0
    %1472 = vmatpush2.msra.mxu0 0.0
    %1473 = vmatprep.subr.mxu0 0.0
    %1474 = vmatpush2.msra.mxu0 0.0
    %1475 = vmatprep.subr.mxu0 0.0
    %1476 = vmatpush2.msra.mxu0 0.0
    %1477 = vmatprep.subr.mxu0 0.0
    %1478 = vmatpush2.msra.mxu0 0.0
    %1479 = vmatprep.subr.mxu0 0.0
    %1480 = vmatpush2.msra.mxu0 0.0
    %1481 = vmatprep.subr.mxu0 0.0
    %1482 = vmatpush2.msra.mxu0 0.0
    %1483 = vmatprep.mubr.f32.mxu0 0.0
    %1484 = vmatmul.mubr.f32.gmra.mxu0 %v1414
    %v1485 = vpop.f32.mrf.mxu0
    %v1486 = vadd.f32 %v1411, %v1485
    %v1487 = vpop.f32.mrf.mxu0
    %1488 = vmatprep.mubr.f32.mxu0 0.0
    %1489 = vmatmul.mubr.f32.gmra.mxu0 %v1417
    %v1490 = vpop.f32.mrf.mxu0
    %v1491 = vadd.f32 %v1411, %v1490
    %v1492 = vpop.f32.mrf.mxu0
    %1493 = vdwg.mxu0
    %1495 = vrot.lane.b32.xlu0 %v1486, 96
    %v1496 = vpop.permute.xlu0 %1495
    %v1497 = vsel %vm342, %v1486, 0
    %v1499 = vsel %vm342, %v1496, 0
    %1501 = vmatprep.subr.mxu0 0.0
    %1502 = vmatpush1.xpose.msra.mxu0 0.0
    %1503 = vmatprep.subr.mxu0 0.0
    %1504 = vmatpush1.xpose.msra.mxu0 0.0
    %1505 = vmatprep.subr.mxu0 0.0
    %1506 = vmatpush1.xpose.msra.mxu0 0.0
    %1507 = vmatprep.subr.mxu0 0.0
    %1508 = vmatpush1.xpose.msra.mxu0 0.0
    %1509 = vmatprep.subr.mxu0 0.0
    %1510 = vmatpush1.xpose.msra.mxu0 0.0
    %1511 = vmatprep.subr.mxu0 0.0
    %1512 = vmatpush1.xpose.msra.mxu0 0.0
    %1513 = vmatprep.subr.mxu0 0.0
    %1514 = vmatpush1.xpose.msra.mxu0 0.0
    %1515 = vmatprep.subr.mxu0 0.0
    %1516 = vmatpush1.xpose.msra.mxu0 0.0
    %1517 = vmatprep.subr.mxu0 0.0
    %1518 = vmatpush1.xpose.msra.mxu0 0.0
    %1519 = vmatprep.subr.mxu0 0.0
    %1520 = vmatpush1.xpose.msra.mxu0 0.0
    %1521 = vmatprep.subr.mxu0 0.0
    %1522 = vmatpush1.xpose.msra.mxu0 0.0
    %1523 = vmatprep.subr.mxu0 0.0
    %1524 = vmatpush1.xpose.msra.mxu0 0.0
    %1525 = vmatprep.subr.mxu0 0.0
    %1526 = vmatpush1.xpose.msra.mxu0 0.0
    %1527 = vmatprep.subr.mxu0 0.0
    %1528 = vmatpush1.xpose.msra.mxu0 0.0
    %1529 = vmatprep.subr.mxu0 0.0
    %1530 = vmatpush1.xpose.msra.mxu0 0.0
    %1531 = vmatprep.subr.mxu0 0.0
    %1532 = vmatpush1.xpose.msra.mxu0 %v1499
    %1533 = vmatprep.subr.mxu0 0.0
    %1534 = vmatpush2.xpose.msra.mxu0 0.0
    %1535 = vmatprep.subr.mxu0 0.0
    %1536 = vmatpush2.xpose.msra.mxu0 0.0
    %1537 = vmatprep.subr.mxu0 0.0
    %1538 = vmatpush2.xpose.msra.mxu0 0.0
    %1539 = vmatprep.subr.mxu0 0.0
    %1540 = vmatpush2.xpose.msra.mxu0 0.0
    %1541 = vmatprep.subr.mxu0 0.0
    %1542 = vmatpush2.xpose.msra.mxu0 0.0
    %1543 = vmatprep.subr.mxu0 0.0
    %1544 = vmatpush2.xpose.msra.mxu0 0.0
    %1545 = vmatprep.subr.mxu0 0.0
    %1546 = vmatpush2.xpose.msra.mxu0 0.0
    %1547 = vmatprep.subr.mxu0 0.0
    %1548 = vmatpush2.xpose.msra.mxu0 0.0
    %1549 = vmatprep.subr.mxu0 0.0
    %1550 = vmatpush2.xpose.msra.mxu0 0.0
    %1551 = vmatprep.subr.mxu0 0.0
    %1552 = vmatpush2.xpose.msra.mxu0 0.0
    %1553 = vmatprep.subr.mxu0 0.0
    %1554 = vmatpush2.xpose.msra.mxu0 0.0
    %1555 = vmatprep.subr.mxu0 0.0
    %1556 = vmatpush2.xpose.msra.mxu0 0.0
    %1557 = vmatprep.subr.mxu0 0.0
    %1558 = vmatpush2.xpose.msra.mxu0 0.0
    %1559 = vmatprep.subr.mxu0 0.0
    %1560 = vmatpush2.xpose.msra.mxu0 0.0
    %1561 = vmatprep.subr.mxu0 0.0
    %1562 = vmatpush2.xpose.msra.mxu0 0.0
    %1563 = vmatprep.subr.mxu0 0.0
    %1564 = vmatpush2.xpose.msra.mxu0 0.0
    %1565 = vmatprep.mubr.f32.mxu0 0.0
    %1566 = vmatmul.mubr.f32.gmra.mxu0 %v1497
    %v1567 = vpop.f32.mrf.mxu0
    %v1568 = vadd.f32 %v332, %v1567
    %v1569 = vpop.f32.mrf.mxu0
    %1570 = vdwg.mxu0
    %1572 = vrot.lane.b32.xlu0 %v1491, 96
    %v1573 = vpop.permute.xlu0 %1572
    %v1574 = vsel %vm342, %v1491, 0
    %v1576 = vsel %vm342, %v1573, 0
    %1578 = vmatprep.subr.mxu0 0.0
    %1579 = vmatpush1.xpose.msra.mxu0 0.0
    %1580 = vmatprep.subr.mxu0 0.0
    %1581 = vmatpush1.xpose.msra.mxu0 0.0
    %1582 = vmatprep.subr.mxu0 0.0
    %1583 = vmatpush1.xpose.msra.mxu0 0.0
    %1584 = vmatprep.subr.mxu0 0.0
    %1585 = vmatpush1.xpose.msra.mxu0 0.0
    %1586 = vmatprep.subr.mxu0 0.0
    %1587 = vmatpush1.xpose.msra.mxu0 0.0
    %1588 = vmatprep.subr.mxu0 0.0
    %1589 = vmatpush1.xpose.msra.mxu0 0.0
    %1590 = vmatprep.subr.mxu0 0.0
    %1591 = vmatpush1.xpose.msra.mxu0 0.0
    %1592 = vmatprep.subr.mxu0 0.0
    %1593 = vmatpush1.xpose.msra.mxu0 0.0
    %1594 = vmatprep.subr.mxu0 0.0
    %1595 = vmatpush1.xpose.msra.mxu0 0.0
    %1596 = vmatprep.subr.mxu0 0.0
    %1597 = vmatpush1.xpose.msra.mxu0 0.0
    %1598 = vmatprep.subr.mxu0 0.0
    %1599 = vmatpush1.xpose.msra.mxu0 0.0
    %1600 = vmatprep.subr.mxu0 0.0
    %1601 = vmatpush1.xpose.msra.mxu0 0.0
    %1602 = vmatprep.subr.mxu0 0.0
    %1603 = vmatpush1.xpose.msra.mxu0 0.0
    %1604 = vmatprep.subr.mxu0 0.0
    %1605 = vmatpush1.xpose.msra.mxu0 0.0
    %1606 = vmatprep.subr.mxu0 0.0
    %1607 = vmatpush1.xpose.msra.mxu0 0.0
    %1608 = vmatprep.subr.mxu0 0.0
    %1609 = vmatpush1.xpose.msra.mxu0 %v1576
    %1610 = vmatprep.subr.mxu0 0.0
    %1611 = vmatpush2.xpose.msra.mxu0 0.0
    %1612 = vmatprep.subr.mxu0 0.0
    %1613 = vmatpush2.xpose.msra.mxu0 0.0
    %1614 = vmatprep.subr.mxu0 0.0
    %1615 = vmatpush2.xpose.msra.mxu0 0.0
    %1616 = vmatprep.subr.mxu0 0.0
    %1617 = vmatpush2.xpose.msra.mxu0 0.0
    %1618 = vmatprep.subr.mxu0 0.0
    %1619 = vmatpush2.xpose.msra.mxu0 0.0
    %1620 = vmatprep.subr.mxu0 0.0
    %1621 = vmatpush2.xpose.msra.mxu0 0.0
    %1622 = vmatprep.subr.mxu0 0.0
    %1623 = vmatpush2.xpose.msra.mxu0 0.0
    %1624 = vmatprep.subr.mxu0 0.0
    %1625 = vmatpush2.xpose.msra.mxu0 0.0
    %1626 = vmatprep.subr.mxu0 0.0
    %1627 = vmatpush2.xpose.msra.mxu0 0.0
    %1628 = vmatprep.subr.mxu0 0.0
    %1629 = vmatpush2.xpose.msra.mxu0 0.0
    %1630 = vmatprep.subr.mxu0 0.0
    %1631 = vmatpush2.xpose.msra.mxu0 0.0
    %1632 = vmatprep.subr.mxu0 0.0
    %1633 = vmatpush2.xpose.msra.mxu0 0.0
    %1634 = vmatprep.subr.mxu0 0.0
    %1635 = vmatpush2.xpose.msra.mxu0 0.0
    %1636 = vmatprep.subr.mxu0 0.0
    %1637 = vmatpush2.xpose.msra.mxu0 0.0
    %1638 = vmatprep.subr.mxu0 0.0
    %1639 = vmatpush2.xpose.msra.mxu0 0.0
    %1640 = vmatprep.subr.mxu0 0.0
    %1641 = vmatpush2.xpose.msra.mxu0 0.0
    %1642 = vmatprep.mubr.f32.mxu0 0.0
    %1643 = vmatmul.mubr.f32.gmra.mxu0 %v1574
    %v1644 = vpop.f32.mrf.mxu0
    %v1645 = vadd.f32 %v336, %v1644
    %v1646 = vpop.f32.mrf.mxu0
    %1647 = vdwg.mxu0
    %v1648 = vsel %vm494, %v1568, -inf
    %1649 = vmax.xlane.f32.xlu0 %v1648
    %v1650 = vpop.xlane.xlu0 %1649
    %v1651 = vsel %vm494, %v1645, -inf
    %1652 = vmax.xlane.f32.xlu0 %v1651
    %v1653 = vpop.xlane.xlu0 %1652
    %v1654 = vsub.f32 %v1568, %v1650
    %v1655 = vsub.f32 %v1645, %v1653
    %v1656 = vmul.f32 %v1654, 1.442695
    %v1657 = vpow.pop %v1656
    %v1658 = vmul.f32 %v1655, 1.442695
    %v1659 = vpow.pop %v1658
    %v1660 = vsel %vm494, %v1657, 0.0
    %1661 = vadd.xlane.f32.xlu0 %v1660
    %v1662 = vpop.xlane.xlu0 %1661
    %v1663 = vsel %vm494, %v1659, 0.0
    %1664 = vadd.xlane.f32.xlu0 %v1663
    %v1665 = vpop.xlane.xlu0 %1664
    %v1666 = vrcp.pop %v1662
    %v1667 = vrcp.pop %v1665
    %v1668 = vmul.f32 %v1657, %v1666
    %v1669 = vmul.f32 %v1659, %v1667
    %1670 = vrot.lane.b32.xlu0 %v1486, 64
    %v1671 = vpop.permute.xlu0 %1670
    %v1674 = vsel %vm494, %v1668, 0
    %1676 = vmatprep.subr.mxu0 0.0
    %1677 = vmatpush1.msra.mxu0 0.0
    %1678 = vmatprep.subr.mxu0 0.0
    %1679 = vmatpush1.msra.mxu0 0.0
    %1680 = vmatprep.subr.mxu0 0.0
    %1681 = vmatpush1.msra.mxu0 0.0
    %1682 = vmatprep.subr.mxu0 0.0
    %1683 = vmatpush1.msra.mxu0 0.0
    %1684 = vmatprep.subr.mxu0 0.0
    %1685 = vmatpush1.msra.mxu0 0.0
    %1686 = vmatprep.subr.mxu0 0.0
    %1687 = vmatpush1.msra.mxu0 0.0
    %1688 = vmatprep.subr.mxu0 0.0
    %1689 = vmatpush1.msra.mxu0 0.0
    %1690 = vmatprep.subr.mxu0 0.0
    %1691 = vmatpush1.msra.mxu0 0.0
    %1692 = vmatprep.subr.mxu0 0.0
    %1693 = vmatpush1.msra.mxu0 0.0
    %1694 = vmatprep.subr.mxu0 0.0
    %1695 = vmatpush1.msra.mxu0 0.0
    %1696 = vmatprep.subr.mxu0 0.0
    %1697 = vmatpush1.msra.mxu0 0.0
    %1698 = vmatprep.subr.mxu0 0.0
    %1699 = vmatpush1.msra.mxu0 0.0
    %1700 = vmatprep.subr.mxu0 0.0
    %1701 = vmatpush1.msra.mxu0 0.0
    %1702 = vmatprep.subr.mxu0 0.0
    %1703 = vmatpush1.msra.mxu0 0.0
    %1704 = vmatprep.subr.mxu0 0.0
    %1705 = vmatpush1.msra.mxu0 0.0
    %1706 = vmatprep.subr.mxu0 0.0
    %1707 = vmatpush1.msra.mxu0 %v1671
    %1708 = vmatprep.subr.mxu0 0.0
    %1709 = vmatpush2.msra.mxu0 0.0
    %1710 = vmatprep.subr.mxu0 0.0
    %1711 = vmatpush2.msra.mxu0 0.0
    %1712 = vmatprep.subr.mxu0 0.0
    %1713 = vmatpush2.msra.mxu0 0.0
    %1714 = vmatprep.subr.mxu0 0.0
    %1715 = vmatpush2.msra.mxu0 0.0
    %1716 = vmatprep.subr.mxu0 0.0
    %1717 = vmatpush2.msra.mxu0 0.0
    %1718 = vmatprep.subr.mxu0 0.0
    %1719 = vmatpush2.msra.mxu0 0.0
    %1720 = vmatprep.subr.mxu0 0.0
    %1721 = vmatpush2.msra.mxu0 0.0
    %1722 = vmatprep.subr.mxu0 0.0
    %1723 = vmatpush2.msra.mxu0 0.0
    %1724 = vmatprep.subr.mxu0 0.0
    %1725 = vmatpush2.msra.mxu0 0.0
    %1726 = vmatprep.subr.mxu0 0.0
    %1727 = vmatpush2.msra.mxu0 0.0
    %1728 = vmatprep.subr.mxu0 0.0
    %1729 = vmatpush2.msra.mxu0 0.0
    %1730 = vmatprep.subr.mxu0 0.0
    %1731 = vmatpush2.msra.mxu0 0.0
    %1732 = vmatprep.subr.mxu0 0.0
    %1733 = vmatpush2.msra.mxu0 0.0
    %1734 = vmatprep.subr.mxu0 0.0
    %1735 = vmatpush2.msra.mxu0 0.0
    %1736 = vmatprep.subr.mxu0 0.0
    %1737 = vmatpush2.msra.mxu0 0.0
    %1738 = vmatprep.subr.mxu0 0.0
    %1739 = vmatpush2.msra.mxu0 0.0
    %1740 = vmatprep.mubr.f32.mxu0 0.0
    %1741 = vmatmul.mubr.f32.gmra.mxu0 %v1674
    %v1742 = vpop.f32.mrf.mxu0
    %v1743 = vadd.f32 0.0, %v1742
    %v1744 = vpop.f32.mrf.mxu0
    %1745 = vdwg.mxu0
    %1746 = vrot.lane.b32.xlu0 %v1491, 64
    %v1747 = vpop.permute.xlu0 %1746
    %v1750 = vsel %vm494, %v1669, 0
    %1752 = vmatprep.subr.mxu0 0.0
    %1753 = vmatpush1.msra.mxu0 0.0
    %1754 = vmatprep.subr.mxu0 0.0
    %1755 = vmatpush1.msra.mxu0 0.0
    %1756 = vmatprep.subr.mxu0 0.0
    %1757 = vmatpush1.msra.mxu0 0.0
    %1758 = vmatprep.subr.mxu0 0.0
    %1759 = vmatpush1.msra.mxu0 0.0
    %1760 = vmatprep.subr.mxu0 0.0
    %1761 = vmatpush1.msra.mxu0 0.0
    %1762 = vmatprep.subr.mxu0 0.0
    %1763 = vmatpush1.msra.mxu0 0.0
    %1764 = vmatprep.subr.mxu0 0.0
    %1765 = vmatpush1.msra.mxu0 0.0
    %1766 = vmatprep.subr.mxu0 0.0
    %1767 = vmatpush1.msra.mxu0 0.0
    %1768 = vmatprep.subr.mxu0 0.0
    %1769 = vmatpush1.msra.mxu0 0.0
    %1770 = vmatprep.subr.mxu0 0.0
    %1771 = vmatpush1.msra.mxu0 0.0
    %1772 = vmatprep.subr.mxu0 0.0
    %1773 = vmatpush1.msra.mxu0 0.0
    %1774 = vmatprep.subr.mxu0 0.0
    %1775 = vmatpush1.msra.mxu0 0.0
    %1776 = vmatprep.subr.mxu0 0.0
    %1777 = vmatpush1.msra.mxu0 0.0
    %1778 = vmatprep.subr.mxu0 0.0
    %1779 = vmatpush1.msra.mxu0 0.0
    %1780 = vmatprep.subr.mxu0 0.0
    %1781 = vmatpush1.msra.mxu0 0.0
    %1782 = vmatprep.subr.mxu0 0.0
    %1783 = vmatpush1.msra.mxu0 %v1747
    %1784 = vmatprep.subr.mxu0 0.0
    %1785 = vmatpush2.msra.mxu0 0.0
    %1786 = vmatprep.subr.mxu0 0.0
    %1787 = vmatpush2.msra.mxu0 0.0
    %1788 = vmatprep.subr.mxu0 0.0
    %1789 = vmatpush2.msra.mxu0 0.0
    %1790 = vmatprep.subr.mxu0 0.0
    %1791 = vmatpush2.msra.mxu0 0.0
    %1792 = vmatprep.subr.mxu0 0.0
    %1793 = vmatpush2.msra.mxu0 0.0
    %1794 = vmatprep.subr.mxu0 0.0
    %1795 = vmatpush2.msra.mxu0 0.0
    %1796 = vmatprep.subr.mxu0 0.0
    %1797 = vmatpush2.msra.mxu0 0.0
    %1798 = vmatprep.subr.mxu0 0.0
    %1799 = vmatpush2.msra.mxu0 0.0
    %1800 = vmatprep.subr.mxu0 0.0
    %1801 = vmatpush2.msra.mxu0 0.0
    %1802 = vmatprep.subr.mxu0 0.0
    %1803 = vmatpush2.msra.mxu0 0.0
    %1804 = vmatprep.subr.mxu0 0.0
    %1805 = vmatpush2.msra.mxu0 0.0
    %1806 = vmatprep.subr.mxu0 0.0
    %1807 = vmatpush2.msra.mxu0 0.0
    %1808 = vmatprep.subr.mxu0 0.0
    %1809 = vmatpush2.msra.mxu0 0.0
    %1810 = vmatprep.subr.mxu0 0.0
    %1811 = vmatpush2.msra.mxu0 0.0
    %1812 = vmatprep.subr.mxu0 0.0
    %1813 = vmatpush2.msra.mxu0 0.0
    %1814 = vmatprep.subr.mxu0 0.0
    %1815 = vmatpush2.msra.mxu0 0.0
    %1816 = vmatprep.mubr.f32.mxu0 0.0
    %1817 = vmatmul.mubr.f32.gmra.mxu0 %v1750
    %v1818 = vpop.f32.mrf.mxu0
    %v1819 = vadd.f32 0.0, %v1818
    %v1820 = vpop.f32.mrf.mxu0
    %1821 = vdwg.mxu0
    %1822 = vrot.lane.b32.xlu0 %v1486, 112
    %v1823 = vpop.permute.xlu0 %1822
    %1824 = vrot.lane.b32.xlu0 %v1486, 80
    %v1825 = vpop.permute.xlu0 %1824
    %v1826 = vsel %vm342, %v1823, 0
    %v1828 = vsel %vm342, %v1825, 0
    %1830 = vmatprep.subr.mxu0 0.0
    %1831 = vmatpush1.xpose.msra.mxu0 0.0
    %1832 = vmatprep.subr.mxu0 0.0
    %1833 = vmatpush1.xpose.msra.mxu0 0.0
    %1834 = vmatprep.subr.mxu0 0.0
    %1835 = vmatpush1.xpose.msra.mxu0 0.0
    %1836 = vmatprep.subr.mxu0 0.0
    %1837 = vmatpush1.xpose.msra.mxu0 0.0
    %1838 = vmatprep.subr.mxu0 0.0
    %1839 = vmatpush1.xpose.msra.mxu0 0.0
    %1840 = vmatprep.subr.mxu0 0.0
    %1841 = vmatpush1.xpose.msra.mxu0 0.0
    %1842 = vmatprep.subr.mxu0 0.0
    %1843 = vmatpush1.xpose.msra.mxu0 0.0
    %1844 = vmatprep.subr.mxu0 0.0
    %1845 = vmatpush1.xpose.msra.mxu0 0.0
    %1846 = vmatprep.subr.mxu0 0.0
    %1847 = vmatpush1.xpose.msra.mxu0 0.0
    %1848 = vmatprep.subr.mxu0 0.0
    %1849 = vmatpush1.xpose.msra.mxu0 0.0
    %1850 = vmatprep.subr.mxu0 0.0
    %1851 = vmatpush1.xpose.msra.mxu0 0.0
    %1852 = vmatprep.subr.mxu0 0.0
    %1853 = vmatpush1.xpose.msra.mxu0 0.0
    %1854 = vmatprep.subr.mxu0 0.0
    %1855 = vmatpush1.xpose.msra.mxu0 0.0
    %1856 = vmatprep.subr.mxu0 0.0
    %1857 = vmatpush1.xpose.msra.mxu0 0.0
    %1858 = vmatprep.subr.mxu0 0.0
    %1859 = vmatpush1.xpose.msra.mxu0 0.0
    %1860 = vmatprep.subr.mxu0 0.0
    %1861 = vmatpush1.xpose.msra.mxu0 %v1828
    %1862 = vmatprep.subr.mxu0 0.0
    %1863 = vmatpush2.xpose.msra.mxu0 0.0
    %1864 = vmatprep.subr.mxu0 0.0
    %1865 = vmatpush2.xpose.msra.mxu0 0.0
    %1866 = vmatprep.subr.mxu0 0.0
    %1867 = vmatpush2.xpose.msra.mxu0 0.0
    %1868 = vmatprep.subr.mxu0 0.0
    %1869 = vmatpush2.xpose.msra.mxu0 0.0
    %1870 = vmatprep.subr.mxu0 0.0
    %1871 = vmatpush2.xpose.msra.mxu0 0.0
    %1872 = vmatprep.subr.mxu0 0.0
    %1873 = vmatpush2.xpose.msra.mxu0 0.0
    %1874 = vmatprep.subr.mxu0 0.0
    %1875 = vmatpush2.xpose.msra.mxu0 0.0
    %1876 = vmatprep.subr.mxu0 0.0
    %1877 = vmatpush2.xpose.msra.mxu0 0.0
    %1878 = vmatprep.subr.mxu0 0.0
    %1879 = vmatpush2.xpose.msra.mxu0 0.0
    %1880 = vmatprep.subr.mxu0 0.0
    %1881 = vmatpush2.xpose.msra.mxu0 0.0
    %1882 = vmatprep.subr.mxu0 0.0
    %1883 = vmatpush2.xpose.msra.mxu0 0.0
    %1884 = vmatprep.subr.mxu0 0.0
    %1885 = vmatpush2.xpose.msra.mxu0 0.0
    %1886 = vmatprep.subr.mxu0 0.0
    %1887 = vmatpush2.xpose.msra.mxu0 0.0
    %1888 = vmatprep.subr.mxu0 0.0
    %1889 = vmatpush2.xpose.msra.mxu0 0.0
    %1890 = vmatprep.subr.mxu0 0.0
    %1891 = vmatpush2.xpose.msra.mxu0 0.0
    %1892 = vmatprep.subr.mxu0 0.0
    %1893 = vmatpush2.xpose.msra.mxu0 0.0
    %1894 = vmatprep.mubr.f32.mxu0 0.0
    %1895 = vmatmul.mubr.f32.gmra.mxu0 %v1826
    %v1896 = vpop.f32.mrf.mxu0
    %v1897 = vadd.f32 %v332, %v1896
    %v1898 = vpop.f32.mrf.mxu0
    %1899 = vdwg.mxu0
    %1900 = vrot.lane.b32.xlu0 %v1491, 112
    %v1901 = vpop.permute.xlu0 %1900
    %1902 = vrot.lane.b32.xlu0 %v1491, 80
    %v1903 = vpop.permute.xlu0 %1902
    %v1904 = vsel %vm342, %v1901, 0
    %v1906 = vsel %vm342, %v1903, 0
    %1908 = vmatprep.subr.mxu0 0.0
    %1909 = vmatpush1.xpose.msra.mxu0 0.0
    %1910 = vmatprep.subr.mxu0 0.0
    %1911 = vmatpush1.xpose.msra.mxu0 0.0
    %1912 = vmatprep.subr.mxu0 0.0
    %1913 = vmatpush1.xpose.msra.mxu0 0.0
    %1914 = vmatprep.subr.mxu0 0.0
    %1915 = vmatpush1.xpose.msra.mxu0 0.0
    %1916 = vmatprep.subr.mxu0 0.0
    %1917 = vmatpush1.xpose.msra.mxu0 0.0
    %1918 = vmatprep.subr.mxu0 0.0
    %1919 = vmatpush1.xpose.msra.mxu0 0.0
    %1920 = vmatprep.subr.mxu0 0.0
    %1921 = vmatpush1.xpose.msra.mxu0 0.0
    %1922 = vmatprep.subr.mxu0 0.0
    %1923 = vmatpush1.xpose.msra.mxu0 0.0
    %1924 = vmatprep.subr.mxu0 0.0
    %1925 = vmatpush1.xpose.msra.mxu0 0.0
    %1926 = vmatprep.subr.mxu0 0.0
    %1927 = vmatpush1.xpose.msra.mxu0 0.0
    %1928 = vmatprep.subr.mxu0 0.0
    %1929 = vmatpush1.xpose.msra.mxu0 0.0
    %1930 = vmatprep.subr.mxu0 0.0
    %1931 = vmatpush1.xpose.msra.mxu0 0.0
    %1932 = vmatprep.subr.mxu0 0.0
    %1933 = vmatpush1.xpose.msra.mxu0 0.0
    %1934 = vmatprep.subr.mxu0 0.0
    %1935 = vmatpush1.xpose.msra.mxu0 0.0
    %1936 = vmatprep.subr.mxu0 0.0
    %1937 = vmatpush1.xpose.msra.mxu0 0.0
    %1938 = vmatprep.subr.mxu0 0.0
    %1939 = vmatpush1.xpose.msra.mxu0 %v1906
    %1940 = vmatprep.subr.mxu0 0.0
    %1941 = vmatpush2.xpose.msra.mxu0 0.0
    %1942 = vmatprep.subr.mxu0 0.0
    %1943 = vmatpush2.xpose.msra.mxu0 0.0
    %1944 = vmatprep.subr.mxu0 0.0
    %1945 = vmatpush2.xpose.msra.mxu0 0.0
    %1946 = vmatprep.subr.mxu0 0.0
    %1947 = vmatpush2.xpose.msra.mxu0 0.0
    %1948 = vmatprep.subr.mxu0 0.0
    %1949 = vmatpush2.xpose.msra.mxu0 0.0
    %1950 = vmatprep.subr.mxu0 0.0
    %1951 = vmatpush2.xpose.msra.mxu0 0.0
    %1952 = vmatprep.subr.mxu0 0.0
    %1953 = vmatpush2.xpose.msra.mxu0 0.0
    %1954 = vmatprep.subr.mxu0 0.0
    %1955 = vmatpush2.xpose.msra.mxu0 0.0
    %1956 = vmatprep.subr.mxu0 0.0
    %1957 = vmatpush2.xpose.msra.mxu0 0.0
    %1958 = vmatprep.subr.mxu0 0.0
    %1959 = vmatpush2.xpose.msra.mxu0 0.0
    %1960 = vmatprep.subr.mxu0 0.0
    %1961 = vmatpush2.xpose.msra.mxu0 0.0
    %1962 = vmatprep.subr.mxu0 0.0
    %1963 = vmatpush2.xpose.msra.mxu0 0.0
    %1964 = vmatprep.subr.mxu0 0.0
    %1965 = vmatpush2.xpose.msra.mxu0 0.0
    %1966 = vmatprep.subr.mxu0 0.0
    %1967 = vmatpush2.xpose.msra.mxu0 0.0
    %1968 = vmatprep.subr.mxu0 0.0
    %1969 = vmatpush2.xpose.msra.mxu0 0.0
    %1970 = vmatprep.subr.mxu0 0.0
    %1971 = vmatpush2.xpose.msra.mxu0 0.0
    %1972 = vmatprep.mubr.f32.mxu0 0.0
    %1973 = vmatmul.mubr.f32.gmra.mxu0 %v1904
    %v1974 = vpop.f32.mrf.mxu0
    %v1975 = vadd.f32 %v336, %v1974
    %v1976 = vpop.f32.mrf.mxu0
    %1977 = vdwg.mxu0
    %v1978 = vsel %vm494, %v1897, -inf
    %1979 = vmax.xlane.f32.xlu0 %v1978
    %v1980 = vpop.xlane.xlu0 %1979
    %v1981 = vsel %vm494, %v1975, -inf
    %1982 = vmax.xlane.f32.xlu0 %v1981
    %v1983 = vpop.xlane.xlu0 %1982
    %v1984 = vsub.f32 %v1897, %v1980
    %v1985 = vsub.f32 %v1975, %v1983
    %v1986 = vmul.f32 %v1984, 1.442695
    %v1987 = vpow.pop %v1986
    %v1988 = vmul.f32 %v1985, 1.442695
    %v1989 = vpow.pop %v1988
    %v1990 = vsel %vm494, %v1987, 0.0
    %1991 = vadd.xlane.f32.xlu0 %v1990
    %v1992 = vpop.xlane.xlu0 %1991
    %v1993 = vsel %vm494, %v1989, 0.0
    %1994 = vadd.xlane.f32.xlu0 %v1993
    %v1995 = vpop.xlane.xlu0 %1994
    %v1996 = vrcp.pop %v1992
    %v1997 = vrcp.pop %v1995
    %v1998 = vmul.f32 %v1987, %v1996
    %v1999 = vmul.f32 %v1989, %v1997
    %2000 = vrot.lane.b32.xlu0 %v1486, 48
    %v2001 = vpop.permute.xlu0 %2000
    %v2004 = vsel %vm494, %v1998, 0
    %2006 = vmatprep.subr.mxu0 0.0
    %2007 = vmatpush1.msra.mxu0 0.0
    %2008 = vmatprep.subr.mxu0 0.0
    %2009 = vmatpush1.msra.mxu0 0.0
    %2010 = vmatprep.subr.mxu0 0.0
    %2011 = vmatpush1.msra.mxu0 0.0
    %2012 = vmatprep.subr.mxu0 0.0
    %2013 = vmatpush1.msra.mxu0 0.0
    %2014 = vmatprep.subr.mxu0 0.0
    %2015 = vmatpush1.msra.mxu0 0.0
    %2016 = vmatprep.subr.mxu0 0.0
    %2017 = vmatpush1.msra.mxu0 0.0
    %2018 = vmatprep.subr.mxu0 0.0
    %2019 = vmatpush1.msra.mxu0 0.0
    %2020 = vmatprep.subr.mxu0 0.0
    %2021 = vmatpush1.msra.mxu0 0.0
    %2022 = vmatprep.subr.mxu0 0.0
    %2023 = vmatpush1.msra.mxu0 0.0
    %2024 = vmatprep.subr.mxu0 0.0
    %2025 = vmatpush1.msra.mxu0 0.0
    %2026 = vmatprep.subr.mxu0 0.0
    %2027 = vmatpush1.msra.mxu0 0.0
    %2028 = vmatprep.subr.mxu0 0.0
    %2029 = vmatpush1.msra.mxu0 0.0
    %2030 = vmatprep.subr.mxu0 0.0
    %2031 = vmatpush1.msra.mxu0 0.0
    %2032 = vmatprep.subr.mxu0 0.0
    %2033 = vmatpush1.msra.mxu0 0.0
    %2034 = vmatprep.subr.mxu0 0.0
    %2035 = vmatpush1.msra.mxu0 0.0
    %2036 = vmatprep.subr.mxu0 0.0
    %2037 = vmatpush1.msra.mxu0 %v2001
    %2038 = vmatprep.subr.mxu0 0.0
    %2039 = vmatpush2.msra.mxu0 0.0
    %2040 = vmatprep.subr.mxu0 0.0
    %2041 = vmatpush2.msra.mxu0 0.0
    %2042 = vmatprep.subr.mxu0 0.0
    %2043 = vmatpush2.msra.mxu0 0.0
    %2044 = vmatprep.subr.mxu0 0.0
    %2045 = vmatpush2.msra.mxu0 0.0
    %2046 = vmatprep.subr.mxu0 0.0
    %2047 = vmatpush2.msra.mxu0 0.0
    %2048 = vmatprep.subr.mxu0 0.0
    %2049 = vmatpush2.msra.mxu0 0.0
    %2050 = vmatprep.subr.mxu0 0.0
    %2051 = vmatpush2.msra.mxu0 0.0
    %2052 = vmatprep.subr.mxu0 0.0
    %2053 = vmatpush2.msra.mxu0 0.0
    %2054 = vmatprep.subr.mxu0 0.0
    %2055 = vmatpush2.msra.mxu0 0.0
    %2056 = vmatprep.subr.mxu0 0.0
    %2057 = vmatpush2.msra.mxu0 0.0
    %2058 = vmatprep.subr.mxu0 0.0
    %2059 = vmatpush2.msra.mxu0 0.0
    %2060 = vmatprep.subr.mxu0 0.0
    %2061 = vmatpush2.msra.mxu0 0.0
    %2062 = vmatprep.subr.mxu0 0.0
    %2063 = vmatpush2.msra.mxu0 0.0
    %2064 = vmatprep.subr.mxu0 0.0
    %2065 = vmatpush2.msra.mxu0 0.0
    %2066 = vmatprep.subr.mxu0 0.0
    %2067 = vmatpush2.msra.mxu0 0.0
    %2068 = vmatprep.subr.mxu0 0.0
    %2069 = vmatpush2.msra.mxu0 0.0
    %2070 = vmatprep.mubr.f32.mxu0 0.0
    %2071 = vmatmul.mubr.f32.gmra.mxu0 %v2004
    %v2072 = vpop.f32.mrf.mxu0
    %v2073 = vadd.f32 0.0, %v2072
    %v2074 = vpop.f32.mrf.mxu0
    %2075 = vdwg.mxu0
    %2076 = vrot.lane.b32.xlu0 %v1491, 48
    %v2077 = vpop.permute.xlu0 %2076
    %v2080 = vsel %vm494, %v1999, 0
    %2082 = vmatprep.subr.mxu0 0.0
    %2083 = vmatpush1.msra.mxu0 0.0
    %2084 = vmatprep.subr.mxu0 0.0
    %2085 = vmatpush1.msra.mxu0 0.0
    %2086 = vmatprep.subr.mxu0 0.0
    %2087 = vmatpush1.msra.mxu0 0.0
    %2088 = vmatprep.subr.mxu0 0.0
    %2089 = vmatpush1.msra.mxu0 0.0
    %2090 = vmatprep.subr.mxu0 0.0
    %2091 = vmatpush1.msra.mxu0 0.0
    %2092 = vmatprep.subr.mxu0 0.0
    %2093 = vmatpush1.msra.mxu0 0.0
    %2094 = vmatprep.subr.mxu0 0.0
    %2095 = vmatpush1.msra.mxu0 0.0
    %2096 = vmatprep.subr.mxu0 0.0
    %2097 = vmatpush1.msra.mxu0 0.0
    %2098 = vmatprep.subr.mxu0 0.0
    %2099 = vmatpush1.msra.mxu0 0.0
    %2100 = vmatprep.subr.mxu0 0.0
    %2101 = vmatpush1.msra.mxu0 0.0
    %2102 = vmatprep.subr.mxu0 0.0
    %2103 = vmatpush1.msra.mxu0 0.0
    %2104 = vmatprep.subr.mxu0 0.0
    %2105 = vmatpush1.msra.mxu0 0.0
    %2106 = vmatprep.subr.mxu0 0.0
    %2107 = vmatpush1.msra.mxu0 0.0
    %2108 = vmatprep.subr.mxu0 0.0
    %2109 = vmatpush1.msra.mxu0 0.0
    %2110 = vmatprep.subr.mxu0 0.0
    %2111 = vmatpush1.msra.mxu0 0.0
    %2112 = vmatprep.subr.mxu0 0.0
    %2113 = vmatpush1.msra.mxu0 %v2077
    %2114 = vmatprep.subr.mxu0 0.0
    %2115 = vmatpush2.msra.mxu0 0.0
    %2116 = vmatprep.subr.mxu0 0.0
    %2117 = vmatpush2.msra.mxu0 0.0
    %2118 = vmatprep.subr.mxu0 0.0
    %2119 = vmatpush2.msra.mxu0 0.0
    %2120 = vmatprep.subr.mxu0 0.0
    %2121 = vmatpush2.msra.mxu0 0.0
    %2122 = vmatprep.subr.mxu0 0.0
    %2123 = vmatpush2.msra.mxu0 0.0
    %2124 = vmatprep.subr.mxu0 0.0
    %2125 = vmatpush2.msra.mxu0 0.0
    %2126 = vmatprep.subr.mxu0 0.0
    %2127 = vmatpush2.msra.mxu0 0.0
    %2128 = vmatprep.subr.mxu0 0.0
    %2129 = vmatpush2.msra.mxu0 0.0
    %2130 = vmatprep.subr.mxu0 0.0
    %2131 = vmatpush2.msra.mxu0 0.0
    %2132 = vmatprep.subr.mxu0 0.0
    %2133 = vmatpush2.msra.mxu0 0.0
    %2134 = vmatprep.subr.mxu0 0.0
    %2135 = vmatpush2.msra.mxu0 0.0
    %2136 = vmatprep.subr.mxu0 0.0
    %2137 = vmatpush2.msra.mxu0 0.0
    %2138 = vmatprep.subr.mxu0 0.0
    %2139 = vmatpush2.msra.mxu0 0.0
    %2140 = vmatprep.subr.mxu0 0.0
    %2141 = vmatpush2.msra.mxu0 0.0
    %2142 = vmatprep.subr.mxu0 0.0
    %2143 = vmatpush2.msra.mxu0 0.0
    %2144 = vmatprep.subr.mxu0 0.0
    %2145 = vmatpush2.msra.mxu0 0.0
    %2146 = vmatprep.mubr.f32.mxu0 0.0
    %2147 = vmatmul.mubr.f32.gmra.mxu0 %v2080
    %v2148 = vpop.f32.mrf.mxu0
    %v2149 = vadd.f32 0.0, %v2148
    %v2150 = vpop.f32.mrf.mxu0
    %2151 = vdwg.mxu0
    %2154 = vrot.lane.b32.xlu0 %v2073, 16
    %v2155 = vpop.permute.xlu0 %2154
    %2156 = vrot.lane.b32.xlu0 %v2149, 16
    %v2157 = vpop.permute.xlu0 %2156
    %v2160 = vsel %vm342, %v1743, %v2155
    %v2161 = vsel %vm342, %v1819, %v2157
    %s2162 = scalar_lea.vmem %s9, 32
    %v2163 = vld [vmem:[%s2162] sm:$0xff]
    %v2164 = vld [vmem:[%s2162 + $0x8] sm:$0xff]
    %v2165 = vld [vmem:[%s2162 + $0x10] sm:$0xff]
    %v2166 = vld [vmem:[%s2162 + $0x18] sm:$0xff]
    %s2167 = scalar_lea.vmem %s10, 1
    %v2168 = vld [vmem:[%s2167] sm:$0x1]
    %v2170 = vlaneseq
    %v2171 = vshrl.u32 %v2170, 7
    %v2172 = vsub.s32 0, %v2171
    %v2173 = vrot.slane %v2168, %v2172
    %v2176 = vsel %vm185, %v2160, 0
    %v2179 = vsel %vm185, %v2161, 0
    %2181 = vmatprep.subr.mxu0 0.0
    %2182 = vmatpush1.msra.mxu0 0.0
    %2183 = vmatprep.subr.mxu0 0.0
    %2184 = vmatpush1.msra.mxu0 0.0
    %2185 = vmatprep.subr.mxu0 0.0
    %2186 = vmatpush1.msra.mxu0 0.0
    %2187 = vmatprep.subr.mxu0 0.0
    %2188 = vmatpush1.msra.mxu0 0.0
    %2189 = vmatprep.subr.mxu0 0.0
    %2190 = vmatpush1.msra.mxu0 0.0
    %2191 = vmatprep.subr.mxu0 0.0
    %2192 = vmatpush1.msra.mxu0 0.0
    %2193 = vmatprep.subr.mxu0 0.0
    %2194 = vmatpush1.msra.mxu0 0.0
    %2195 = vmatprep.subr.mxu0 0.0
    %2196 = vmatpush1.msra.mxu0 0.0
    %2197 = vmatprep.subr.mxu0 0.0
    %2198 = vmatpush1.msra.mxu0 0.0
    %2199 = vmatprep.subr.mxu0 0.0
    %2200 = vmatpush1.msra.mxu0 0.0
    %2201 = vmatprep.subr.mxu0 0.0
    %2202 = vmatpush1.msra.mxu0 0.0
    %2203 = vmatprep.subr.mxu0 0.0
    %2204 = vmatpush1.msra.mxu0 0.0
    %2205 = vmatprep.subr.mxu0 0.0
    %2206 = vmatpush1.msra.mxu0 %v2166
    %2207 = vmatprep.subr.mxu0 0.0
    %2208 = vmatpush1.msra.mxu0 %v2165
    %2209 = vmatprep.subr.mxu0 0.0
    %2210 = vmatpush1.msra.mxu0 %v2164
    %2211 = vmatprep.subr.mxu0 0.0
    %2212 = vmatpush1.msra.mxu0 %v2163
    %2213 = vmatprep.subr.mxu0 0.0
    %2214 = vmatpush2.msra.mxu0 0.0
    %2215 = vmatprep.subr.mxu0 0.0
    %2216 = vmatpush2.msra.mxu0 0.0
    %2217 = vmatprep.subr.mxu0 0.0
    %2218 = vmatpush2.msra.mxu0 0.0
    %2219 = vmatprep.subr.mxu0 0.0
    %2220 = vmatpush2.msra.mxu0 0.0
    %2221 = vmatprep.subr.mxu0 0.0
    %2222 = vmatpush2.msra.mxu0 0.0
    %2223 = vmatprep.subr.mxu0 0.0
    %2224 = vmatpush2.msra.mxu0 0.0
    %2225 = vmatprep.subr.mxu0 0.0
    %2226 = vmatpush2.msra.mxu0 0.0
    %2227 = vmatprep.subr.mxu0 0.0
    %2228 = vmatpush2.msra.mxu0 0.0
    %2229 = vmatprep.subr.mxu0 0.0
    %2230 = vmatpush2.msra.mxu0 0.0
    %2231 = vmatprep.subr.mxu0 0.0
    %2232 = vmatpush2.msra.mxu0 0.0
    %2233 = vmatprep.subr.mxu0 0.0
    %2234 = vmatpush2.msra.mxu0 0.0
    %2235 = vmatprep.subr.mxu0 0.0
    %2236 = vmatpush2.msra.mxu0 0.0
    %2237 = vmatprep.subr.mxu0 0.0
    %2238 = vmatpush2.msra.mxu0 0.0
    %2239 = vmatprep.subr.mxu0 0.0
    %2240 = vmatpush2.msra.mxu0 0.0
    %2241 = vmatprep.subr.mxu0 0.0
    %2242 = vmatpush2.msra.mxu0 0.0
    %2243 = vmatprep.subr.mxu0 0.0
    %2244 = vmatpush2.msra.mxu0 0.0
    %2245 = vmatprep.mubr.f32.mxu0 0.0
    %2246 = vmatmul.mubr.f32.gmra.mxu0 %v2176
    %v2247 = vpop.f32.mrf.mxu0
    %v2248 = vadd.f32 %v2173, %v2247
    %v2249 = vpop.f32.mrf.mxu0
    %2250 = vmatprep.mubr.f32.mxu0 0.0
    %2251 = vmatmul.mubr.f32.gmra.mxu0 %v2179
    %v2252 = vpop.f32.mrf.mxu0
    %v2253 = vadd.f32 %v2173, %v2252
    %v2254 = vpop.f32.mrf.mxu0
    %2255 = vdwg.mxu0
    %v2256 = vadd.f32 %v1398, %v2248
    %v2257 = vadd.f32 %v1399, %v2253
    %s2258 = scalar_lea.vmem %s11, 1
    %v2259 = vld [vmem:[%s2258] sm:$0x1]
    %s2260 = scalar_lea.vmem %s12, 1
    %v2261 = vld [vmem:[%s2260] sm:$0x1]
    %v2262 = vsel %vm185, %v2256, 0.0
    %2263 = vadd.xlane.f32.xlu0 %v2262
    %v2264 = vpop.xlane.xlu0 %2263
    %v2265 = vsel %vm185, %v2257, 0.0
    %2266 = vadd.xlane.f32.xlu0 %v2265
    %v2267 = vpop.xlane.xlu0 %2266
    %v2268 = vmul.f32 %v2264, %v192
    %v2269 = vmul.f32 %v2267, %v192
    %v2270 = vsub.f32 %v2256, %v2268
    %v2271 = vsub.f32 %v2257, %v2269
    %v2272 = vmul.f32 %v2270, %v2270
    %v2273 = vmul.f32 %v2271, %v2271
    %v2274 = vsel %vm185, %v2272, 0.0
    %2275 = vadd.xlane.f32.xlu0 %v2274
    %v2276 = vpop.xlane.xlu0 %2275
    %v2277 = vsel %vm185, %v2273, 0.0
    %2278 = vadd.xlane.f32.xlu0 %v2277
    %v2279 = vpop.xlane.xlu0 %2278
    %v2280 = vmul.f32 %v2276, %v192
    %v2281 = vmul.f32 %v2279, %v192
    %v2282 = vadd.f32 %v2280, 1e-12
    %v2283 = vadd.f32 %v2281, 1e-12
    %v2284 = vrsqrt.pop %v2282
    %v2285 = vrsqrt.pop %v2283
    %v2286 = vmul.f32 %v2270, %v2284
    %v2287 = vmul.f32 %v2271, %v2285
    %v2289 = vlaneseq
    %v2290 = vshrl.u32 %v2289, 7
    %v2291 = vsub.s32 0, %v2290
    %v2292 = vrot.slane %v2259, %v2291
    %v2294 = vmul.f32 %v2286, %v2292
    %v2295 = vmul.f32 %v2287, %v2292
    %v2297 = vlaneseq
    %v2298 = vshrl.u32 %v2297, 7
    %v2299 = vsub.s32 0, %v2298
    %v2300 = vrot.slane %v2261, %v2299
    %v2302 = vadd.f32 %v2294, %v2300
    %v2303 = vadd.f32 %v2295, %v2300
    %s2304 = scalar_lea.vmem %s13, 32
    %v2305 = vld [vmem:[%s2304] sm:$0xff]
    %v2306 = vld [vmem:[%s2304 + $0x8] sm:$0xff]
    %v2307 = vld [vmem:[%s2304 + $0x10] sm:$0xff]
    %v2308 = vld [vmem:[%s2304 + $0x18] sm:$0xff]
    %s2309 = scalar_lea.vmem %s14, 1
    %v2310 = vld [vmem:[%s2309] sm:$0x1]
    %v2312 = vlaneseq
    %v2313 = vshrl.u32 %v2312, 7
    %v2314 = vsub.s32 0, %v2313
    %v2315 = vrot.slane %v2310, %v2314
    %v2318 = vsel %vm185, %v2302, 0
    %v2321 = vsel %vm185, %v2303, 0
    %2323 = vmatprep.subr.mxu0 0.0
    %2324 = vmatpush1.msra.mxu0 0.0
    %2325 = vmatprep.subr.mxu0 0.0
    %2326 = vmatpush1.msra.mxu0 0.0
    %2327 = vmatprep.subr.mxu0 0.0
    %2328 = vmatpush1.msra.mxu0 0.0
    %2329 = vmatprep.subr.mxu0 0.0
    %2330 = vmatpush1.msra.mxu0 0.0
    %2331 = vmatprep.subr.mxu0 0.0
    %2332 = vmatpush1.msra.mxu0 0.0
    %2333 = vmatprep.subr.mxu0 0.0
    %2334 = vmatpush1.msra.mxu0 0.0
    %2335 = vmatprep.subr.mxu0 0.0
    %2336 = vmatpush1.msra.mxu0 0.0
    %2337 = vmatprep.subr.mxu0 0.0
    %2338 = vmatpush1.msra.mxu0 0.0
    %2339 = vmatprep.subr.mxu0 0.0
    %2340 = vmatpush1.msra.mxu0 0.0
    %2341 = vmatprep.subr.mxu0 0.0
    %2342 = vmatpush1.msra.mxu0 0.0
    %2343 = vmatprep.subr.mxu0 0.0
    %2344 = vmatpush1.msra.mxu0 0.0
    %2345 = vmatprep.subr.mxu0 0.0
    %2346 = vmatpush1.msra.mxu0 0.0
    %2347 = vmatprep.subr.mxu0 0.0
    %2348 = vmatpush1.msra.mxu0 %v2308
    %2349 = vmatprep.subr.mxu0 0.0
    %2350 = vmatpush1.msra.mxu0 %v2307
    %2351 = vmatprep.subr.mxu0 0.0
    %2352 = vmatpush1.msra.mxu0 %v2306
    %2353 = vmatprep.subr.mxu0 0.0
    %2354 = vmatpush1.msra.mxu0 %v2305
    %2355 = vmatprep.subr.mxu0 0.0
    %2356 = vmatpush2.msra.mxu0 0.0
    %2357 = vmatprep.subr.mxu0 0.0
    %2358 = vmatpush2.msra.mxu0 0.0
    %2359 = vmatprep.subr.mxu0 0.0
    %2360 = vmatpush2.msra.mxu0 0.0
    %2361 = vmatprep.subr.mxu0 0.0
    %2362 = vmatpush2.msra.mxu0 0.0
    %2363 = vmatprep.subr.mxu0 0.0
    %2364 = vmatpush2.msra.mxu0 0.0
    %2365 = vmatprep.subr.mxu0 0.0
    %2366 = vmatpush2.msra.mxu0 0.0
    %2367 = vmatprep.subr.mxu0 0.0
    %2368 = vmatpush2.msra.mxu0 0.0
    %2369 = vmatprep.subr.mxu0 0.0
    %2370 = vmatpush2.msra.mxu0 0.0
    %2371 = vmatprep.subr.mxu0 0.0
    %2372 = vmatpush2.msra.mxu0 0.0
    %2373 = vmatprep.subr.mxu0 0.0
    %2374 = vmatpush2.msra.mxu0 0.0
    %2375 = vmatprep.subr.mxu0 0.0
    %2376 = vmatpush2.msra.mxu0 0.0
    %2377 = vmatprep.subr.mxu0 0.0
    %2378 = vmatpush2.msra.mxu0 0.0
    %2379 = vmatprep.subr.mxu0 0.0
    %2380 = vmatpush2.msra.mxu0 0.0
    %2381 = vmatprep.subr.mxu0 0.0
    %2382 = vmatpush2.msra.mxu0 0.0
    %2383 = vmatprep.subr.mxu0 0.0
    %2384 = vmatpush2.msra.mxu0 0.0
    %2385 = vmatprep.subr.mxu0 0.0
    %2386 = vmatpush2.msra.mxu0 0.0
    %2387 = vmatprep.mubr.f32.mxu0 0.0
    %2388 = vmatmul.mubr.f32.gmra.mxu0 %v2318
    %v2389 = vpop.f32.mrf.mxu0
    %v2390 = vadd.f32 %v2315, %v2389
    %v2391 = vpop.f32.mrf.mxu0
    %2392 = vmatprep.mubr.f32.mxu0 0.0
    %2393 = vmatmul.mubr.f32.gmra.mxu0 %v2321
    %v2394 = vpop.f32.mrf.mxu0
    %v2395 = vadd.f32 %v2315, %v2394
    %v2396 = vpop.f32.mrf.mxu0
    %2397 = vdwg.mxu0
    %v2398 = vmul.f32 %v2390, 0.5
    %v2399 = vmul.f32 %v2395, 0.5
    %v2400 = vmul.f32 %v2390, 0.044715
    %v2401 = vmul.f32 %v2395, 0.044715
    %v2402 = vmul.f32 %v2400, %v2390
    %v2403 = vmul.f32 %v2401, %v2395
    %v2404 = vmul.f32 %v2402, %v2390
    %v2405 = vmul.f32 %v2403, %v2395
    %v2406 = vadd.f32 %v2390, %v2404
    %v2407 = vadd.f32 %v2395, %v2405
    %v2408 = vmul.f32 %v2406, 0.7978846
    %v2409 = vmul.f32 %v2407, 0.7978846
    %v2410 = vtanh.pop %v2408
    %v2411 = vtanh.pop %v2409
    %v2412 = vadd.f32 %v2410, 1.0
    %v2413 = vadd.f32 %v2411, 1.0
    %v2414 = vmul.f32 %v2398, %v2412
    %v2415 = vmul.f32 %v2399, %v2413
    %s2416 = scalar_lea.vmem %s15, 64
    %v2417 = vld [vmem:[%s2416] sm:$0xff]
    %v2418 = vld [vmem:[%s2416 + $0x8] sm:$0xff]
    %v2419 = vld [vmem:[%s2416 + $0x10] sm:$0xff]
    %v2420 = vld [vmem:[%s2416 + $0x18] sm:$0xff]
    %v2421 = vld [vmem:[%s2416 + $0x20] sm:$0xff]
    %v2422 = vld [vmem:[%s2416 + $0x28] sm:$0xff]
    %v2423 = vld [vmem:[%s2416 + $0x30] sm:$0xff]
    %v2424 = vld [vmem:[%s2416 + $0x38] sm:$0xff]
    %s2425 = scalar_lea.vmem %s16, 1
    %v2426 = vld [vmem:[%s2425] sm:$0x1]
    %v2428 = vlaneseq
    %v2429 = vshrl.u32 %v2428, 7
    %v2430 = vsub.s32 0, %v2429
    %v2431 = vrot.slane %v2426, %v2430
    %v2434 = vsel %vm1272, %v2414, 0
    %v2437 = vsel %vm1272, %v2415, 0
    %2439 = vmatprep.subr.mxu0 0.0
    %2440 = vmatpush1.msra.mxu0 0.0
    %2441 = vmatprep.subr.mxu0 0.0
    %2442 = vmatpush1.msra.mxu0 0.0
    %2443 = vmatprep.subr.mxu0 0.0
    %2444 = vmatpush1.msra.mxu0 0.0
    %2445 = vmatprep.subr.mxu0 0.0
    %2446 = vmatpush1.msra.mxu0 0.0
    %2447 = vmatprep.subr.mxu0 0.0
    %2448 = vmatpush1.msra.mxu0 0.0
    %2449 = vmatprep.subr.mxu0 0.0
    %2450 = vmatpush1.msra.mxu0 0.0
    %2451 = vmatprep.subr.mxu0 0.0
    %2452 = vmatpush1.msra.mxu0 0.0
    %2453 = vmatprep.subr.mxu0 0.0
    %2454 = vmatpush1.msra.mxu0 0.0
    %2455 = vmatprep.subr.mxu0 0.0
    %2456 = vmatpush1.msra.mxu0 %v2424
    %2457 = vmatprep.subr.mxu0 0.0
    %2458 = vmatpush1.msra.mxu0 %v2423
    %2459 = vmatprep.subr.mxu0 0.0
    %2460 = vmatpush1.msra.mxu0 %v2422
    %2461 = vmatprep.subr.mxu0 0.0
    %2462 = vmatpush1.msra.mxu0 %v2421
    %2463 = vmatprep.subr.mxu0 0.0
    %2464 = vmatpush1.msra.mxu0 %v2420
    %2465 = vmatprep.subr.mxu0 0.0
    %2466 = vmatpush1.msra.mxu0 %v2419
    %2467 = vmatprep.subr.mxu0 0.0
    %2468 = vmatpush1.msra.mxu0 %v2418
    %2469 = vmatprep.subr.mxu0 0.0
    %2470 = vmatpush1.msra.mxu0 %v2417
    %2471 = vmatprep.subr.mxu0 0.0
    %2472 = vmatpush2.msra.mxu0 0.0
    %2473 = vmatprep.subr.mxu0 0.0
    %2474 = vmatpush2.msra.mxu0 0.0
    %2475 = vmatprep.subr.mxu0 0.0
    %2476 = vmatpush2.msra.mxu0 0.0
    %2477 = vmatprep.subr.mxu0 0.0
    %2478 = vmatpush2.msra.mxu0 0.0
    %2479 = vmatprep.subr.mxu0 0.0
    %2480 = vmatpush2.msra.mxu0 0.0
    %2481 = vmatprep.subr.mxu0 0.0
    %2482 = vmatpush2.msra.mxu0 0.0
    %2483 = vmatprep.subr.mxu0 0.0
    %2484 = vmatpush2.msra.mxu0 0.0
    %2485 = vmatprep.subr.mxu0 0.0
    %2486 = vmatpush2.msra.mxu0 0.0
    %2487 = vmatprep.subr.mxu0 0.0
    %2488 = vmatpush2.msra.mxu0 0.0
    %2489 = vmatprep.subr.mxu0 0.0
    %2490 = vmatpush2.msra.mxu0 0.0
    %2491 = vmatprep.subr.mxu0 0.0
    %2492 = vmatpush2.msra.mxu0 0.0
    %2493 = vmatprep.subr.mxu0 0.0
    %2494 = vmatpush2.msra.mxu0 0.0
    %2495 = vmatprep.subr.mxu0 0.0
    %2496 = vmatpush2.msra.mxu0 0.0
    %2497 = vmatprep.subr.mxu0 0.0
    %2498 = vmatpush2.msra.mxu0 0.0
    %2499 = vmatprep.subr.mxu0 0.0
    %2500 = vmatpush2.msra.mxu0 0.0
    %2501 = vmatprep.subr.mxu0 0.0
    %2502 = vmatpush2.msra.mxu0 0.0
    %2503 = vmatprep.mubr.f32.mxu0 0.0
    %2504 = vmatmul.mubr.f32.gmra.mxu0 %v2434
    %v2505 = vpop.f32.mrf.mxu0
    %v2506 = vadd.f32 %v2431, %v2505
    %v2507 = vpop.f32.mrf.mxu0
    %2508 = vmatprep.mubr.f32.mxu0 0.0
    %2509 = vmatmul.mubr.f32.gmra.mxu0 %v2437
    %v2510 = vpop.f32.mrf.mxu0
    %v2511 = vadd.f32 %v2431, %v2510
    %v2512 = vpop.f32.mrf.mxu0
    %2513 = vdwg.mxu0
    %v2514 = vadd.f32 %v2302, %v2506
    %v2515 = vadd.f32 %v2303, %v2511
    %s2516 = scalar_lea.vmem %s17, 1
    %v2517 = vld [vmem:[%s2516] sm:$0x1]
    %s2518 = scalar_lea.vmem %s18, 1
    %v2519 = vld [vmem:[%s2518] sm:$0x1]
    %v2520 = vsel %vm185, %v2514, 0.0
    %2521 = vadd.xlane.f32.xlu0 %v2520
    %v2522 = vpop.xlane.xlu0 %2521
    %v2523 = vsel %vm185, %v2515, 0.0
    %2524 = vadd.xlane.f32.xlu0 %v2523
    %v2525 = vpop.xlane.xlu0 %2524
    %v2526 = vmul.f32 %v2522, %v192
    %v2527 = vmul.f32 %v2525, %v192
    %v2528 = vsub.f32 %v2514, %v2526
    %v2529 = vsub.f32 %v2515, %v2527
    %v2530 = vmul.f32 %v2528, %v2528
    %v2531 = vmul.f32 %v2529, %v2529
    %v2532 = vsel %vm185, %v2530, 0.0
    %2533 = vadd.xlane.f32.xlu0 %v2532
    %v2534 = vpop.xlane.xlu0 %2533
    %v2535 = vsel %vm185, %v2531, 0.0
    %2536 = vadd.xlane.f32.xlu0 %v2535
    %v2537 = vpop.xlane.xlu0 %2536
    %v2538 = vmul.f32 %v2534, %v192
    %v2539 = vmul.f32 %v2537, %v192
    %v2540 = vadd.f32 %v2538, 1e-12
    %v2541 = vadd.f32 %v2539, 1e-12
    %v2542 = vrsqrt.pop %v2540
    %v2543 = vrsqrt.pop %v2541
    %v2544 = vmul.f32 %v2528, %v2542
    %v2545 = vmul.f32 %v2529, %v2543
    %v2547 = vlaneseq
    %v2548 = vshrl.u32 %v2547, 7
    %v2549 = vsub.s32 0, %v2548
    %v2550 = vrot.slane %v2517, %v2549
    %v2552 = vmul.f32 %v2544, %v2550
    %v2553 = vmul.f32 %v2545, %v2550
    %v2555 = vlaneseq
    %v2556 = vshrl.u32 %v2555, 7
    %v2557 = vsub.s32 0, %v2556
    %v2558 = vrot.slane %v2519, %v2557
    %v2560 = vadd.f32 %v2552, %v2558
    %v2561 = vadd.f32 %v2553, %v2558
    %v2562 = vld [vmem:[%s19] sm:$0xff]
    %v2563 = vld [vmem:[%s19 + $0x8] sm:$0xff]
    %v2564 = vld [vmem:[%s19 + $0x10] sm:$0xff]
    %v2565 = vld [vmem:[%s19 + $0x18] sm:$0xff]
    %v2566 = vld [vmem:[%s20] sm:$0x1]
    %v2568 = vlaneseq
    %v2569 = vshrl.u32 %v2568, 7
    %v2570 = vsub.s32 0, %v2569
    %v2571 = vrot.slane %v2566, %v2570
    %v2574 = vsel %vm185, %v2560, 0
    %v2577 = vsel %vm185, %v2561, 0
    %2579 = vmatprep.subr.mxu0 0.0
    %2580 = vmatpush1.msra.mxu0 0.0
    %2581 = vmatprep.subr.mxu0 0.0
    %2582 = vmatpush1.msra.mxu0 0.0
    %2583 = vmatprep.subr.mxu0 0.0
    %2584 = vmatpush1.msra.mxu0 0.0
    %2585 = vmatprep.subr.mxu0 0.0
    %2586 = vmatpush1.msra.mxu0 0.0
    %2587 = vmatprep.subr.mxu0 0.0
    %2588 = vmatpush1.msra.mxu0 0.0
    %2589 = vmatprep.subr.mxu0 0.0
    %2590 = vmatpush1.msra.mxu0 0.0
    %2591 = vmatprep.subr.mxu0 0.0
    %2592 = vmatpush1.msra.mxu0 0.0
    %2593 = vmatprep.subr.mxu0 0.0
    %2594 = vmatpush1.msra.mxu0 0.0
    %2595 = vmatprep.subr.mxu0 0.0
    %2596 = vmatpush1.msra.mxu0 0.0
    %2597 = vmatprep.subr.mxu0 0.0
    %2598 = vmatpush1.msra.mxu0 0.0
    %2599 = vmatprep.subr.mxu0 0.0
    %2600 = vmatpush1.msra.mxu0 0.0
    %2601 = vmatprep.subr.mxu0 0.0
    %2602 = vmatpush1.msra.mxu0 0.0
    %2603 = vmatprep.subr.mxu0 0.0
    %2604 = vmatpush1.msra.mxu0 %v2565
    %2605 = vmatprep.subr.mxu0 0.0
    %2606 = vmatpush1.msra.mxu0 %v2564
    %2607 = vmatprep.subr.mxu0 0.0
    %2608 = vmatpush1.msra.mxu0 %v2563
    %2609 = vmatprep.subr.mxu0 0.0
    %2610 = vmatpush1.msra.mxu0 %v2562
    %2611 = vmatprep.subr.mxu0 0.0
    %2612 = vmatpush2.msra.mxu0 0.0
    %2613 = vmatprep.subr.mxu0 0.0
    %2614 = vmatpush2.msra.mxu0 0.0
    %2615 = vmatprep.subr.mxu0 0.0
    %2616 = vmatpush2.msra.mxu0 0.0
    %2617 = vmatprep.subr.mxu0 0.0
    %2618 = vmatpush2.msra.mxu0 0.0
    %2619 = vmatprep.subr.mxu0 0.0
    %2620 = vmatpush2.msra.mxu0 0.0
    %2621 = vmatprep.subr.mxu0 0.0
    %2622 = vmatpush2.msra.mxu0 0.0
    %2623 = vmatprep.subr.mxu0 0.0
    %2624 = vmatpush2.msra.mxu0 0.0
    %2625 = vmatprep.subr.mxu0 0.0
    %2626 = vmatpush2.msra.mxu0 0.0
    %2627 = vmatprep.subr.mxu0 0.0
    %2628 = vmatpush2.msra.mxu0 0.0
    %2629 = vmatprep.subr.mxu0 0.0
    %2630 = vmatpush2.msra.mxu0 0.0
    %2631 = vmatprep.subr.mxu0 0.0
    %2632 = vmatpush2.msra.mxu0 0.0
    %2633 = vmatprep.subr.mxu0 0.0
    %2634 = vmatpush2.msra.mxu0 0.0
    %2635 = vmatprep.subr.mxu0 0.0
    %2636 = vmatpush2.msra.mxu0 0.0
    %2637 = vmatprep.subr.mxu0 0.0
    %2638 = vmatpush2.msra.mxu0 0.0
    %2639 = vmatprep.subr.mxu0 0.0
    %2640 = vmatpush2.msra.mxu0 0.0
    %2641 = vmatprep.subr.mxu0 0.0
    %2642 = vmatpush2.msra.mxu0 0.0
    %2643 = vmatprep.mubr.f32.mxu0 0.0
    %2644 = vmatmul.mubr.f32.gmra.mxu0 %v2574
    %v2645 = vpop.f32.mrf.mxu0
    %v2646 = vadd.f32 %v2571, %v2645
    %v2647 = vpop.f32.mrf.mxu0
    %2648 = vmatprep.mubr.f32.mxu0 0.0
    %2649 = vmatmul.mubr.f32.gmra.mxu0 %v2577
    %v2650 = vpop.f32.mrf.mxu0
    %v2651 = vadd.f32 %v2571, %v2650
    %v2652 = vpop.f32.mrf.mxu0
    %2653 = vdwg.mxu0
    %2654 = vmax.xlane.f32.xlu0 %v2646
    %v2655 = vpop.xlane.xlu0 %2654
    %2656 = vmax.xlane.f32.xlu0 %v2651
    %v2657 = vpop.xlane.xlu0 %2656
    %v2658 = vsub.f32 %v2646, %v2655
    %v2659 = vsub.f32 %v2651, %v2657
    %v2660 = vmul.f32 %v2658, 1.442695
    %v2661 = vpow.pop %v2660
    %v2662 = vmul.f32 %v2659, 1.442695
    %v2663 = vpow.pop %v2662
    %2664 = vadd.xlane.f32.xlu0 %v2661
    %v2665 = vpop.xlane.xlu0 %2664
    %2666 = vadd.xlane.f32.xlu0 %v2663
    %v2667 = vpop.xlane.xlu0 %2666
    %v2668 = vrcp.pop %v2665
    %v2669 = vmul.f32 1.0, %v2668
    %v2670 = vrcp.pop %v2667
    %v2671 = vmul.f32 1.0, %v2670
    %v2672 = vmul.f32 %v2661, %v2669
    %v2673 = vmul.f32 %v2663, %v2671
    %2674 = vst [vmem:[#allocation2] sm:$0xff] %v2672
    %2675 = vst [vmem:[#allocation2 + $0x8] sm:$0xff] %v2673
    // Predicated region
    $region86: #{tpu_custom_call.1} parent=1 // pred_check
      _
    $region87: #{tpu_custom_call.1} parent=1 // pred_check_branch
      %2677 = sbr.rel (0) target = $region89
    $region88: #{tpu_custom_call.1} parent=1 // pred_region
      %s2679 = ssub.s32 256, 256
      %2680 = vsyncadd [#allocation3], %s2679
      %s2681 = sshll.u32 [#allocation2], 4
      %s2682 = int_to_ptr.vmem [resolvable:$true] %s2681
      %2687 = dma.vmem_to_hbm [thread:$0]  %s2682, 256, %s21, [#allocation3], 128, 128, 8
    $region89: #{tpu_custom_call.1} parent=1 // pred_fallthru
      _
    // Predicated region
    $region90: #{tpu_custom_call.1} parent=1 // pred_check
      _
    $region91: #{tpu_custom_call.1} parent=1 // pred_check_branch
      %2689 = sbr.rel (0) target = $region93
    $region92: #{tpu_custom_call.1} parent=1 // pred_region
      %2690 = dma.done [#allocation3], 256
    $region93: #{tpu_custom_call.1} parent=1 // pred_fallthru
      _
    %2691 = vsyncpa [#allocation3], 1

</llo_original>
